<compile_context>
chip_gen: v7x
topology: tpu7x:2x2x1
jax: 0.10.0
libtpu: 0.0.40
codegen_flags: <defaults>
</compile_context>

<pallas_src>
import math

import jax
import jax.numpy as jnp
from jax.experimental import pallas as pl
from jax.experimental.pallas import tpu as pltpu

BN_EPS = 1e-5       # nn.BatchNorm1d default
LANE = 128          # TPU lane width
N_LOGITS = 2        # head output size of the module


def _round_up(n, m):
    return ((n + m - 1) // m) * m


# ----------------------------- Pallas kernel ------------------------------- #

def make_fused_mlp_kernel(bias_slices, n_big, n_tail):
    """Build the fused-MLP kernel body.

    Ref order: (x, w_big_0..w_big_{n_big-1}, [w_tail_stacked], biases, out).
    bias_slices[i] = (start, stop) static lane offsets of layer i's bias inside the
    packed (1, total) bias slab.  Layers 0..L-2 end with ReLU, the last layer is the
    linear head.  Dropout is identity in eval mode.
    """
    n_layers = n_big + n_tail

    def kernel(*refs):
        x_ref = refs[0]
        big_refs = refs[1:1 + n_big]
        pos = 1 + n_big
        wtail_ref = refs[pos] if n_tail else None
        b_ref = refs[pos + (1 if n_tail else 0)]
        out_ref = refs[-1]

        h = x_ref[...]                                           # (TB, in_pad) f32
        for li in range(n_layers):
            w = big_refs[li][...] if li < n_big else wtail_ref[li - n_big]
            s, e = bias_slices[li]
            b = b_ref[:, s:e]                                    # (1, width) f32
            y = jnp.dot(h.astype(jnp.bfloat16), w,
                        preferred_element_type=jnp.float32) + b  # f32 accumulation
            h = jnp.maximum(y, 0.0) if li < n_layers - 1 else y
            # Dropout: identity in eval mode.
        out_ref[...] = h

    return kernel


# ------------------------------ Wrapper ------------------------------------ #

def make_forward(packed, batch, input_dim, tb):
    """Return a jitted forward fn (x, big_ws, wtail, biases) -> (batch, 2) logits."""
    assert tb % 8 == 0, "batch tile must be a sublane multiple"
    bias_slices = tuple(packed["bias_slices"])
    n_big, n_tail = packed["n_big"], packed["n_tail"]
    in_pad, out_pad = packed["in_pad"], packed["out_pad"]
    b_pad = _round_up(batch, tb)
    grid = (b_pad // tb,)

    kernel = make_fused_mlp_kernel(bias_slices, n_big, n_tail)

    # Advisory cost model (static shapes only).
    w_shapes = [tuple(w.shape) for w in packed["big_ws"]]
    if n_tail:
        t = packed["wtail"].shape
        w_shapes += [(t[1], t[2])] * t[0]
    flops = sum(2 * b_pad * ki * no for ki, no in w_shapes)
    param_bytes = sum(w.size * w.dtype.itemsize for w in packed["big_ws"])
    if n_tail:
        param_bytes += packed["wtail"].size * packed["wtail"].dtype.itemsize
    param_bytes += packed["biases"].size * packed["biases"].dtype.itemsize
    bytes_accessed = param_bytes + b_pad * in_pad * 4 + b_pad * out_pad * 4
    cost = pl.CostEstimate(flops=flops, transcendentals=0,
                           bytes_accessed=bytes_accessed)

    def forward(x, big_ws, wtail, biases):
        # Zero-pad input to (b_pad, 128): lane/sublane aligned, padded lanes are zero.
        xp = jnp.zeros((b_pad, in_pad), jnp.float32)
        xp = xp.at[:batch, :input_dim].set(x)

        args = [xp]
        in_specs = [pl.BlockSpec((tb, in_pad), lambda i: (i, 0))]
        for w in big_ws:      # constant index_map -> fetched once, reused every tile
            args.append(w)
            in_specs.append(pl.BlockSpec(w.shape, lambda i: (0, 0)))
        if wtail is not None:
            args.append(wtail)
            in_specs.append(pl.BlockSpec(wtail.shape, lambda i: (0, 0, 0)))
        args.append(biases)
        in_specs.append(pl.BlockSpec(biases.shape, lambda i: (0, 0)))

        out = pl.pallas_call(
            kernel,
            out_shape=jax.ShapeDtypeStruct((b_pad, out_pad), jnp.float32),
            grid=grid,
            in_specs=in_specs,
            out_specs=pl.BlockSpec((tb, out_pad), lambda i: (i, 0)),
            compiler_params=pltpu.CompilerParams(
                dimension_semantics=("parallel",)),
            cost_estimate=cost,
        )(*args)
        # Single post-call slice; padded rows/lanes are discarded exactly once here.
        return out[:batch, :N_LOGITS]

    return jax.jit(forward)


# --------------------------- Parameter init -------------------------------- #

def xavier_uniform(key, fan_in, fan_out):
    a = math.sqrt(6.0 / (fan_in + fan_out))
    # Stored as (in, out): transpose of PyTorch's (out, in) weight.
    return jax.random.uniform(key, (fan_in, fan_out), jnp.float32, minval=-a, maxval=a)


def init_params(key, input_dim, hidden_dims):
    """PyTorch-equivalent init: xavier_uniform_ weights, zero bias, fresh BN stats."""
    params = []
    prev = input_dim
    keys = jax.random.split(key, len(hidden_dims) + 1)
    for i, h in enumerate(hidden_dims):
        params.append({
            "w": xavier_uniform(keys[i], prev, h),
            "b": jnp.zeros((h,), jnp.float32),
            "gamma": jnp.ones((h,), jnp.float32),
            "beta": jnp.zeros((h,), jnp.float32),
            "mean": jnp.zeros((h,), jnp.float32),
            "var": jnp.ones((h,), jnp.float32),
        })
        prev = h
    head = {"w": xavier_uniform(keys[-1], prev, N_LOGITS),
            "b": jnp.zeros((N_LOGITS,), jnp.float32)}
    return params, head


def fold_and_pack_params(params, head, input_dim):
    """Fold eval-mode BN into each Linear, pad widths to 128, pack for few DMAs.

      W' = W * gamma*rsqrt(var+eps),  b' = (b - mean)*gamma*rsqrt(var+eps) + beta
    Padded rows/cols are zero, so padded lanes stay exactly zero through bias+ReLU.
    Weights are stored bf16; biases stay f32 and are packed into one (1, total) slab.
    The trailing suffix of (128,128) weights is stacked into one (n_tail,128,128).
    """
    in_pad = _round_up(input_dim, LANE)
    layers = []
    prev_real, prev_pad = input_dim, in_pad
    for layer in params:
        scale = layer["gamma"] / jnp.sqrt(layer["var"] + BN_EPS)
        w_f = layer["w"] * scale[None, :]
        b_f = (layer["b"] - layer["mean"]) * scale + layer["beta"]
        out_dim = layer["w"].shape[1]
        out_pad = _round_up(out_dim, LANE)
        wp = jnp.zeros((prev_pad, out_pad), jnp.float32).at[:prev_real, :out_dim].set(w_f)
        bp = jnp.zeros((out_pad,), jnp.float32).at[:out_dim].set(b_f)
        layers.append((wp, bp))
        prev_real, prev_pad = out_dim, out_pad

    out_dim = head["w"].shape[1]
    out_pad = _round_up(out_dim, LANE)
    wp = jnp.zeros((prev_pad, out_pad), jnp.float32).at[:prev_real, :out_dim].set(head["w"])
    bp = jnp.zeros((out_pad,), jnp.float32).at[:out_dim].set(head["b"])
    layers.append((wp, bp))

    n = len(layers)
    split = n
    while split > 0 and layers[split - 1][0].shape == (LANE, LANE):
        split -= 1
    if n - split < 2:            # not worth stacking a single matrix
        split = n
    big_ws = [layers[i][0].astype(jnp.bfloat16) for i in range(split)]
    wtail = (jnp.stack([layers[i][0] for i in range(split, n)]).astype(jnp.bfloat16)
             if split < n else None)

    bias_slices, off = [], 0
    for _, bp in layers:
        bias_slices.append((off, off + bp.shape[0]))
        off += bp.shape[0]
    biases = jnp.concatenate([bp for _, bp in layers]).reshape(1, -1)

    return {
        "big_ws": big_ws, "wtail": wtail, "biases": biases,
        "bias_slices": bias_slices, "n_big": split, "n_tail": n - split,
        "in_pad": in_pad, "out_pad": layers[-1][0].shape[1],
    }


# ---------------------------- References (JAX) ------------------------------ #

def reference_forward_f32(x, params, head):
    """Full-f32 eval-mode forward of the original module."""
    h = x
    for layer in params:
        y = h @ layer["w"] + layer["b"]
        y = (y - layer["mean"]) / jnp.sqrt(layer["var"] + BN_EPS) * layer["gamma"] + layer["beta"]
        h = jnp.maximum(y, 0.0)
    return h @ head["w"] + head["b"]


def reference_forward_quantized(x, packed, batch, input_dim):
    """Pure-JAX replica of the kernel math (bf16 weights/activations, f32 accum)."""
    xp = jnp.zeros((batch, packed["in_pad"]), jnp.float32).at[:, :input_dim].set(x)
    ws = list(packed["big_ws"])
    if packed["wtail"] is not None:
        ws += [packed["wtail"][i] for i in range(packed["wtail"].shape[0])]
    h = xp
    for i, (w, (s, e)) in enumerate(zip(ws, packed["bias_slices"])):
        b = packed["biases"][:, s:e]
        y = jnp.dot(h.astype(jnp.bfloat16), w, preferred_element_type=jnp.float32) + b
        h = jnp.maximum(y, 0.0) if i < len(ws) - 1 else y
    return h[:, :N_LOGITS]


# --------------------------------- Main ------------------------------------ #

if __name__ == "__main__":
    input_dim = 32
    hidden_dims = [1024, 512, 256, 128, 64, 32]   # module defaults
    batch = 16
    tb = 8                                        # batch tile -> grid=(2,), weights reused

    root = jax.random.PRNGKey(0)
    k_x, k_p = jax.random.split(root)
    x = jax.random.normal(k_x, (batch, input_dim), jnp.float32)

    params, head = init_params(k_p, input_dim, hidden_dims)
    packed = fold_and_pack_params(params, head, input_dim)

    forward = make_forward(packed, batch, input_dim, tb)
    out = forward(x, packed["big_ws"], packed["wtail"], packed["biases"])
    out = jax.block_until_ready(out)
    assert out.shape == (batch, N_LOGITS), out.shape

    ref_q = reference_forward_quantized(x, packed, batch, input_dim)  # same quantization
    ref_f = reference_forward_f32(x, params, head)                    # original f32 module
    err_q = float(jnp.max(jnp.abs(out - ref_q)))
    err_f = float(jnp.max(jnp.abs(out - ref_f)))
    assert err_q < 5e-4, ("mismatch vs. matched-quantization reference", err_q)
    assert err_f < 5e-2, ("mismatch vs. full-f32 module reference", err_f)

    print("KERNEL_OK")
</pallas_src>

<mosaic_0001>
module attributes {stable_mosaic.version = 11 : i64} {
  func.func @kernel(%arg0: i32, %arg1: memref<8x128xf32, #tpu.memory_space<vmem>>, %arg2: memref<128x1024xbf16, #tpu.memory_space<vmem>>, %arg3: memref<1024x512xbf16, #tpu.memory_space<vmem>>, %arg4: memref<512x256xbf16, #tpu.memory_space<vmem>>, %arg5: memref<256x128xbf16, #tpu.memory_space<vmem>>, %arg6: memref<3x128x128xbf16, #tpu.memory_space<vmem>>, %arg7: memref<1x2304xf32, #tpu.memory_space<vmem>>, %arg8: memref<8x128xf32, #tpu.memory_space<vmem>>) attributes {dimension_semantics = [#tpu.dimension_semantics<parallel>], iteration_bounds = array<i64: 2>, scalar_prefetch = 0 : i64, scratch_operands = 0 : i64, tpu.core_type = #tpu.core_type<tc>, window_params = [{transform_indices = @transform_0, window_bounds = array<i64: 8, 128>}, {pipeline_mode = #tpu.pipeline_mode<synchronous>, transform_indices = @transform_1, window_bounds = array<i64: 128, 1024>}, {pipeline_mode = #tpu.pipeline_mode<synchronous>, transform_indices = @transform_2, window_bounds = array<i64: 1024, 512>}, {pipeline_mode = #tpu.pipeline_mode<synchronous>, transform_indices = @transform_3, window_bounds = array<i64: 512, 256>}, {pipeline_mode = #tpu.pipeline_mode<synchronous>, transform_indices = @transform_4, window_bounds = array<i64: 256, 128>}, {pipeline_mode = #tpu.pipeline_mode<synchronous>, transform_indices = @transform_5, window_bounds = array<i64: 3, 128, 128>}, {pipeline_mode = #tpu.pipeline_mode<synchronous>, transform_indices = @transform_6, window_bounds = array<i64: 1, 2304>}, {transform_indices = @transform_7, window_bounds = array<i64: 8, 128>}]} {
    %c0 = arith.constant 0 : index
    %c0_0 = arith.constant 0 : index
    %0 = vector.load %arg1[%c0, %c0_0] : memref<8x128xf32, #tpu.memory_space<vmem>>, vector<8x128xf32>
    %c0_1 = arith.constant 0 : index
    %c0_2 = arith.constant 0 : index
    %1 = vector.load %arg2[%c0_1, %c0_2] : memref<128x1024xbf16, #tpu.memory_space<vmem>>, vector<128x1024xbf16>
    %c0_3 = arith.constant 0 : index
    %c0_4 = arith.constant 0 : index
    %2 = vector.load %arg7[%c0_3, %c0_4] : memref<1x2304xf32, #tpu.memory_space<vmem>>, vector<1x1024xf32>
    %3 = arith.truncf %0 : vector<8x128xf32> to vector<8x128xbf16>
    %cst = arith.constant dense<0.000000e+00> : vector<8x1024xf32>
    %4 = tpu.matmul %3, %1, %cst {dimension_numbers = #tpu.dot_dimension_numbers<[1], [0], [0], [1], [0, 0, 1, 1], [], []>} : vector<8x128xbf16>, vector<128x1024xbf16>, vector<8x1024xf32> -> vector<8x1024xf32>
    %5 = vector.broadcast %2 : vector<1x1024xf32> to vector<8x1024xf32>
    %6 = arith.addf %4, %5 : vector<8x1024xf32>
    %cst_5 = arith.constant 0.000000e+00 : f32
    %7 = vector.broadcast %cst_5 : f32 to vector<8x1024xf32>
    %8 = arith.maximumf %6, %7 : vector<8x1024xf32>
    %c0_6 = arith.constant 0 : index
    %c0_7 = arith.constant 0 : index
    %9 = vector.load %arg3[%c0_6, %c0_7] : memref<1024x512xbf16, #tpu.memory_space<vmem>>, vector<1024x512xbf16>
    %c0_8 = arith.constant 0 : index
    %c1024 = arith.constant 1024 : index
    %10 = vector.load %arg7[%c0_8, %c1024] : memref<1x2304xf32, #tpu.memory_space<vmem>>, vector<1x512xf32>
    %11 = arith.truncf %8 : vector<8x1024xf32> to vector<8x1024xbf16>
    %cst_9 = arith.constant dense<0.000000e+00> : vector<8x512xf32>
    %12 = tpu.matmul %11, %9, %cst_9 {dimension_numbers = #tpu.dot_dimension_numbers<[1], [0], [0], [1], [0, 0, 1, 1], [], []>} : vector<8x1024xbf16>, vector<1024x512xbf16>, vector<8x512xf32> -> vector<8x512xf32>
    %13 = vector.broadcast %10 : vector<1x512xf32> to vector<8x512xf32>
    %14 = arith.addf %12, %13 : vector<8x512xf32>
    %cst_10 = arith.constant 0.000000e+00 : f32
    %15 = vector.broadcast %cst_10 : f32 to vector<8x512xf32>
    %16 = arith.maximumf %14, %15 : vector<8x512xf32>
    %c0_11 = arith.constant 0 : index
    %c0_12 = arith.constant 0 : index
    %17 = vector.load %arg4[%c0_11, %c0_12] : memref<512x256xbf16, #tpu.memory_space<vmem>>, vector<512x256xbf16>
    %c0_13 = arith.constant 0 : index
    %c1536 = arith.constant 1536 : index
    %18 = vector.load %arg7[%c0_13, %c1536] : memref<1x2304xf32, #tpu.memory_space<vmem>>, vector<1x256xf32>
    %19 = arith.truncf %16 : vector<8x512xf32> to vector<8x512xbf16>
    %cst_14 = arith.constant dense<0.000000e+00> : vector<8x256xf32>
    %20 = tpu.matmul %19, %17, %cst_14 {dimension_numbers = #tpu.dot_dimension_numbers<[1], [0], [0], [1], [0, 0, 1, 1], [], []>} : vector<8x512xbf16>, vector<512x256xbf16>, vector<8x256xf32> -> vector<8x256xf32>
    %21 = vector.broadcast %18 : vector<1x256xf32> to vector<8x256xf32>
    %22 = arith.addf %20, %21 : vector<8x256xf32>
    %cst_15 = arith.constant 0.000000e+00 : f32
    %23 = vector.broadcast %cst_15 : f32 to vector<8x256xf32>
    %24 = arith.maximumf %22, %23 : vector<8x256xf32>
    %c0_16 = arith.constant 0 : index
    %c0_17 = arith.constant 0 : index
    %25 = vector.load %arg5[%c0_16, %c0_17] : memref<256x128xbf16, #tpu.memory_space<vmem>>, vector<256x128xbf16>
    %c0_18 = arith.constant 0 : index
    %c1792 = arith.constant 1792 : index
    %26 = vector.load %arg7[%c0_18, %c1792] : memref<1x2304xf32, #tpu.memory_space<vmem>>, vector<1x128xf32>
    %27 = arith.truncf %24 : vector<8x256xf32> to vector<8x256xbf16>
    %cst_19 = arith.constant dense<0.000000e+00> : vector<8x128xf32>
    %28 = tpu.matmul %27, %25, %cst_19 {dimension_numbers = #tpu.dot_dimension_numbers<[1], [0], [0], [1], [0, 0, 1, 1], [], []>} : vector<8x256xbf16>, vector<256x128xbf16>, vector<8x128xf32> -> vector<8x128xf32>
    %29 = vector.broadcast %26 : vector<1x128xf32> to vector<8x128xf32>
    %30 = arith.addf %28, %29 : vector<8x128xf32>
    %cst_20 = arith.constant 0.000000e+00 : f32
    %31 = vector.broadcast %cst_20 : f32 to vector<8x128xf32>
    %32 = arith.maximumf %30, %31 : vector<8x128xf32>
    %c0_21 = arith.constant 0 : index
    %c0_22 = arith.constant 0 : index
    %c0_23 = arith.constant 0 : index
    %33 = vector.load %arg6[%c0_21, %c0_22, %c0_23] : memref<3x128x128xbf16, #tpu.memory_space<vmem>>, vector<1x128x128xbf16>
    %34 = vector.shape_cast %33 : vector<1x128x128xbf16> to vector<128x128xbf16>
    %c0_24 = arith.constant 0 : index
    %c1920 = arith.constant 1920 : index
    %35 = vector.load %arg7[%c0_24, %c1920] : memref<1x2304xf32, #tpu.memory_space<vmem>>, vector<1x128xf32>
    %36 = arith.truncf %32 : vector<8x128xf32> to vector<8x128xbf16>
    %cst_25 = arith.constant dense<0.000000e+00> : vector<8x128xf32>
    %37 = tpu.matmul %36, %34, %cst_25 {dimension_numbers = #tpu.dot_dimension_numbers<[1], [0], [0], [1], [0, 0, 1, 1], [], []>} : vector<8x128xbf16>, vector<128x128xbf16>, vector<8x128xf32> -> vector<8x128xf32>
    %38 = vector.broadcast %35 : vector<1x128xf32> to vector<8x128xf32>
    %39 = arith.addf %37, %38 : vector<8x128xf32>
    %cst_26 = arith.constant 0.000000e+00 : f32
    %40 = vector.broadcast %cst_26 : f32 to vector<8x128xf32>
    %41 = arith.maximumf %39, %40 : vector<8x128xf32>
    %c1 = arith.constant 1 : index
    %c0_27 = arith.constant 0 : index
    %c0_28 = arith.constant 0 : index
    %42 = vector.load %arg6[%c1, %c0_27, %c0_28] : memref<3x128x128xbf16, #tpu.memory_space<vmem>>, vector<1x128x128xbf16>
    %43 = vector.shape_cast %42 : vector<1x128x128xbf16> to vector<128x128xbf16>
    %c0_29 = arith.constant 0 : index
    %c2048 = arith.constant 2048 : index
    %44 = vector.load %arg7[%c0_29, %c2048] : memref<1x2304xf32, #tpu.memory_space<vmem>>, vector<1x128xf32>
    %45 = arith.truncf %41 : vector<8x128xf32> to vector<8x128xbf16>
    %cst_30 = arith.constant dense<0.000000e+00> : vector<8x128xf32>
    %46 = tpu.matmul %45, %43, %cst_30 {dimension_numbers = #tpu.dot_dimension_numbers<[1], [0], [0], [1], [0, 0, 1, 1], [], []>} : vector<8x128xbf16>, vector<128x128xbf16>, vector<8x128xf32> -> vector<8x128xf32>
    %47 = vector.broadcast %44 : vector<1x128xf32> to vector<8x128xf32>
    %48 = arith.addf %46, %47 : vector<8x128xf32>
    %cst_31 = arith.constant 0.000000e+00 : f32
    %49 = vector.broadcast %cst_31 : f32 to vector<8x128xf32>
    %50 = arith.maximumf %48, %49 : vector<8x128xf32>
    %c2 = arith.constant 2 : index
    %c0_32 = arith.constant 0 : index
    %c0_33 = arith.constant 0 : index
    %51 = vector.load %arg6[%c2, %c0_32, %c0_33] : memref<3x128x128xbf16, #tpu.memory_space<vmem>>, vector<1x128x128xbf16>
    %52 = vector.shape_cast %51 : vector<1x128x128xbf16> to vector<128x128xbf16>
    %c0_34 = arith.constant 0 : index
    %c2176 = arith.constant 2176 : index
    %53 = vector.load %arg7[%c0_34, %c2176] : memref<1x2304xf32, #tpu.memory_space<vmem>>, vector<1x128xf32>
    %54 = arith.truncf %50 : vector<8x128xf32> to vector<8x128xbf16>
    %cst_35 = arith.constant dense<0.000000e+00> : vector<8x128xf32>
    %55 = tpu.matmul %54, %52, %cst_35 {dimension_numbers = #tpu.dot_dimension_numbers<[1], [0], [0], [1], [0, 0, 1, 1], [], []>} : vector<8x128xbf16>, vector<128x128xbf16>, vector<8x128xf32> -> vector<8x128xf32>
    %56 = vector.broadcast %53 : vector<1x128xf32> to vector<8x128xf32>
    %57 = arith.addf %55, %56 : vector<8x128xf32>
    %c0_36 = arith.constant 0 : index
    %c0_37 = arith.constant 0 : index
    %58 = vector.load %arg8[%c0_36, %c0_37] : memref<8x128xf32, #tpu.memory_space<vmem>>, vector<8x128xf32>
    tpu.vector_store %arg8[%c0_36, %c0_37], %57 {strides = array<i32>} : memref<8x128xf32, #tpu.memory_space<vmem>>, vector<8x128xf32>,
    return
  }
  func.func @transform_0(%arg0: i32) -> (i32, i32) {
    %c0_i32 = arith.constant 0 : i32
    %c0_i32_0 = arith.constant 0 : i32
    return %arg0, %c0_i32 : i32, i32
  }
  func.func @transform_1(%arg0: i32) -> (i32, i32) {
    %c0_i32 = arith.constant 0 : i32
    %c0_i32_0 = arith.constant 0 : i32
    %c0_i32_1 = arith.constant 0 : i32
    return %c0_i32, %c0_i32_0 : i32, i32
  }
  func.func @transform_2(%arg0: i32) -> (i32, i32) {
    %c0_i32 = arith.constant 0 : i32
    %c0_i32_0 = arith.constant 0 : i32
    %c0_i32_1 = arith.constant 0 : i32
    return %c0_i32, %c0_i32_0 : i32, i32
  }
  func.func @transform_3(%arg0: i32) -> (i32, i32) {
    %c0_i32 = arith.constant 0 : i32
    %c0_i32_0 = arith.constant 0 : i32
    %c0_i32_1 = arith.constant 0 : i32
    return %c0_i32, %c0_i32_0 : i32, i32
  }
  func.func @transform_4(%arg0: i32) -> (i32, i32) {
    %c0_i32 = arith.constant 0 : i32
    %c0_i32_0 = arith.constant 0 : i32
    %c0_i32_1 = arith.constant 0 : i32
    return %c0_i32, %c0_i32_0 : i32, i32
  }
  func.func @transform_5(%arg0: i32) -> (i32, i32, i32) {
    %c0_i32 = arith.constant 0 : i32
    %c0_i32_0 = arith.constant 0 : i32
    %c0_i32_1 = arith.constant 0 : i32
    %c0_i32_2 = arith.constant 0 : i32
    return %c0_i32, %c0_i32_0, %c0_i32_1 : i32, i32, i32
  }
  func.func @transform_6(%arg0: i32) -> (i32, i32) {
    %c0_i32 = arith.constant 0 : i32
    %c0_i32_0 = arith.constant 0 : i32
    %c0_i32_1 = arith.constant 0 : i32
    return %c0_i32, %c0_i32_0 : i32, i32
  }
  func.func @transform_7(%arg0: i32) -> (i32, i32) {
    %c0_i32 = arith.constant 0 : i32
    %c0_i32_0 = arith.constant 0 : i32
    return %arg0, %c0_i32 : i32, i32
  }
}

</mosaic_0001>

<llo_original>
// kernel: forward.1
$region0: #{forward.1}
  #allocation0 [shape = 'u32[]', space=smem, size = 0x4, offset = 0x4, fixed_abs, tag = 'smem constant byte address 0x4 - core index']
  #allocation1 [shape = 'u32[144,128]{1,0:T(1,128)}', space=vmem, size = 0x12000, scoped, tag = 'internal scratch']
  %s0 = inlined_call_operand.vmem [shape: f32[16,128], index: 0, kind: input, shape index: {}]
  %s1 = inlined_call_operand.hbm [shape: bf16[128,1024], index: 1, kind: input, shape index: {}]
  %s2 = inlined_call_operand.hbm [shape: bf16[1024,512], index: 2, kind: input, shape index: {}]
  %s3 = inlined_call_operand.hbm [shape: bf16[512,256], index: 3, kind: input, shape index: {}]
  %s4 = inlined_call_operand.hbm [shape: bf16[256,128], index: 4, kind: input, shape index: {}]
  %s5 = inlined_call_operand.hbm [shape: bf16[3,128,128], index: 5, kind: input, shape index: {}]
  %s6 = inlined_call_operand.vmem [shape: f32[1,2304], index: 6, kind: input, shape index: {}]
  %s7 = inlined_call_operand.vmem [shape: f32[16,128], index: 7, kind: output, shape index: {}]
  %s8 = sld [smem:[#allocation0]]
  $region81: #{forward.1} parent=0
    _
  %s10 = ssub.s32 1, %s8
  %s11 = scalar_select 0, %s10, %s8
  $region1: #{forward.1} parent=0
    #allocation2 [shape = 'u8[262144]{0}', space=vmem, size = 0x40000, scoped, tag = 'input window, operand 1, single buffered']
    #allocation3 [shape = 's32[2]{0}', space=sflag, size = 0x8, scoped, tag = 'scoped memory for forward.1']
    #allocation4 [shape = 'u8[1048576]{0}', space=vmem, size = 0x100000, scoped, tag = 'input window, operand 2, single buffered']
    #allocation5 [shape = 's32[1]{0}', space=sflag, size = 0x4, scoped, tag = 'scoped memory for forward.1']
    #allocation6 [shape = 'u8[262144]{0}', space=vmem, size = 0x40000, scoped, tag = 'input window, operand 3, single buffered']
    #allocation7 [shape = 'u8[65536]{0}', space=vmem, size = 0x10000, scoped, tag = 'input window, operand 4, single buffered']
    #allocation8 [shape = 's32[1]{0}', space=sflag, size = 0x4, scoped, tag = 'scoped memory for forward.1']
    #allocation9 [shape = 'u8[98304]{0}', space=vmem, size = 0x18000, scoped, tag = 'input window, operand 5, single buffered']
    %12 = vsyncpa [#allocation3], 0
    %13 = vsyncpa [#allocation5], 0
    %14 = vsyncpa [#allocation8], 0
    loop: start=0, step=1, limit=4
    $region2: #{forward.1} parent=1 // loop_pre_header
      _
    $region3: #{forward.1} parent=1 // loop_header
      %s16 = sphi 0, %s20
      %p17 = scmp.ge.s32.totalorder %s16, 4
      %s26 = sphi 0, %s28
      %s29 = sphi 0, %s26
      %s30 = sphi 0, %s29
      %s46 = sphi 0, %s30
      %s50 = sphi 0, %s50
      %s52 = sphi 0, %s50
      %s53 = sphi 0, %s52
      %s67 = sphi 0, %s53
      %s71 = sphi 0, %s71
      %s73 = sphi 0, %s71
      %s74 = sphi 0, %s73
      %s88 = sphi 0, %s74
      %s92 = sphi 0, %s92
      %s94 = sphi 0, %s92
      %s95 = sphi 0, %s94
      %s109 = sphi 0, %s95
      %s113 = sphi 0, %s113
      %s115 = sphi 0, %s113
      %s116 = sphi 0, %s115
      %s130 = sphi 0, %s116
      %s134 = sphi 0, %s134
      %s136 = sphi 0, %s134
      %s137 = sphi 0, %s136
      %s151 = sphi 0, %s137
      %s155 = sphi 0, %s155
      %s157 = sphi 0, %s155
      %s158 = sphi 0, %s157
      %s172 = sphi 0, %s158
      %s178 = sphi 0, %s180
      %s181 = sphi 0, %s178
      %s182 = sphi 0, %s181
      %s198 = sphi 0, %s182
    $region4: #{forward.1} parent=1 // loop_header_branch
      %19 = sbr.rel (%p17) target = $region8
    $region5: #{forward.1} parent=1 // loop_body
      %s21 = ssub.s32 %s16, 1
      %s22 = ssub.s32 %s16, 2
      %s23 = sadd.s32 %s16, 1
      %s24 = ssub.s32 %s16, %s23
      %p25 = scmp.eq.s32.totalorder %s24, 0
      %s27 = sadd.s32 %s26, 1
      %s28 = scalar_select %p25, %s26, %s27
      %p31 = pneg %p25
      %p32 = scmp.eq.s32.totalorder %s16, 1
      %p33 = por %p31, %p32
      %p34 = scmp.ne.s32.totalorder %s26, %s29
      %p35 = scmp.eq.s32.totalorder %s16, 0
      %p36 = por %p34, %p35
      %p37 = scmp.ne.s32.totalorder %s26, %s29
      %p38 = scmp.eq.s32.totalorder %s21, 1
      %p39 = por %p37, %p38
      %p40 = scmp.ne.s32.totalorder %s29, %s30
      %p41 = scmp.eq.s32.totalorder %s21, 0
      %p42 = por %p40, %p41
      %p43 = scmp.ne.s32.totalorder %s29, %s30
      %p44 = scmp.eq.s32.totalorder %s22, 1
      %p45 = por %p43, %p44
      %p47 = scmp.ne.s32.totalorder %s30, %s46
      %p48 = scmp.eq.s32.totalorder %s22, 0
      %p49 = por %p47, %p48
      %s51 = sadd.s32 %s50, 1
      %p54 = scmp.eq.s32.totalorder %s16, 1
      %p55 = scmp.ne.s32.totalorder %s50, %s52
      %p56 = scmp.eq.s32.totalorder %s16, 0
      %p57 = por %p55, %p56
      %p58 = scmp.ne.s32.totalorder %s50, %s52
      %p59 = scmp.eq.s32.totalorder %s21, 1
      %p60 = por %p58, %p59
      %p61 = scmp.ne.s32.totalorder %s52, %s53
      %p62 = scmp.eq.s32.totalorder %s21, 0
      %p63 = por %p61, %p62
      %p64 = scmp.ne.s32.totalorder %s52, %s53
      %p65 = scmp.eq.s32.totalorder %s22, 1
      %p66 = por %p64, %p65
      %p68 = scmp.ne.s32.totalorder %s53, %s67
      %p69 = scmp.eq.s32.totalorder %s22, 0
      %p70 = por %p68, %p69
      %s72 = sadd.s32 %s71, 1
      %p75 = scmp.eq.s32.totalorder %s16, 1
      %p76 = scmp.ne.s32.totalorder %s71, %s73
      %p77 = scmp.eq.s32.totalorder %s16, 0
      %p78 = por %p76, %p77
      %p79 = scmp.ne.s32.totalorder %s71, %s73
      %p80 = scmp.eq.s32.totalorder %s21, 1
      %p81 = por %p79, %p80
      %p82 = scmp.ne.s32.totalorder %s73, %s74
      %p83 = scmp.eq.s32.totalorder %s21, 0
      %p84 = por %p82, %p83
      %p85 = scmp.ne.s32.totalorder %s73, %s74
      %p86 = scmp.eq.s32.totalorder %s22, 1
      %p87 = por %p85, %p86
      %p89 = scmp.ne.s32.totalorder %s74, %s88
      %p90 = scmp.eq.s32.totalorder %s22, 0
      %p91 = por %p89, %p90
      %s93 = sadd.s32 %s92, 1
      %p96 = scmp.eq.s32.totalorder %s16, 1
      %p97 = scmp.ne.s32.totalorder %s92, %s94
      %p98 = scmp.eq.s32.totalorder %s16, 0
      %p99 = por %p97, %p98
      %p100 = scmp.ne.s32.totalorder %s92, %s94
      %p101 = scmp.eq.s32.totalorder %s21, 1
      %p102 = por %p100, %p101
      %p103 = scmp.ne.s32.totalorder %s94, %s95
      %p104 = scmp.eq.s32.totalorder %s21, 0
      %p105 = por %p103, %p104
      %p106 = scmp.ne.s32.totalorder %s94, %s95
      %p107 = scmp.eq.s32.totalorder %s22, 1
      %p108 = por %p106, %p107
      %p110 = scmp.ne.s32.totalorder %s95, %s109
      %p111 = scmp.eq.s32.totalorder %s22, 0
      %p112 = por %p110, %p111
      %s114 = sadd.s32 %s113, 1
      %p117 = scmp.eq.s32.totalorder %s16, 1
      %p118 = scmp.ne.s32.totalorder %s113, %s115
      %p119 = scmp.eq.s32.totalorder %s16, 0
      %p120 = por %p118, %p119
      %p121 = scmp.ne.s32.totalorder %s113, %s115
      %p122 = scmp.eq.s32.totalorder %s21, 1
      %p123 = por %p121, %p122
      %p124 = scmp.ne.s32.totalorder %s115, %s116
      %p125 = scmp.eq.s32.totalorder %s21, 0
      %p126 = por %p124, %p125
      %p127 = scmp.ne.s32.totalorder %s115, %s116
      %p128 = scmp.eq.s32.totalorder %s22, 1
      %p129 = por %p127, %p128
      %p131 = scmp.ne.s32.totalorder %s116, %s130
      %p132 = scmp.eq.s32.totalorder %s22, 0
      %p133 = por %p131, %p132
      %s135 = sadd.s32 %s134, 1
      %p138 = scmp.eq.s32.totalorder %s16, 1
      %p139 = scmp.ne.s32.totalorder %s134, %s136
      %p140 = scmp.eq.s32.totalorder %s16, 0
      %p141 = por %p139, %p140
      %p142 = scmp.ne.s32.totalorder %s134, %s136
      %p143 = scmp.eq.s32.totalorder %s21, 1
      %p144 = por %p142, %p143
      %p145 = scmp.ne.s32.totalorder %s136, %s137
      %p146 = scmp.eq.s32.totalorder %s21, 0
      %p147 = por %p145, %p146
      %p148 = scmp.ne.s32.totalorder %s136, %s137
      %p149 = scmp.eq.s32.totalorder %s22, 1
      %p150 = por %p148, %p149
      %p152 = scmp.ne.s32.totalorder %s137, %s151
      %p153 = scmp.eq.s32.totalorder %s22, 0
      %p154 = por %p152, %p153
      %s156 = sadd.s32 %s155, 1
      %p159 = scmp.eq.s32.totalorder %s16, 1
      %p160 = scmp.ne.s32.totalorder %s155, %s157
      %p161 = scmp.eq.s32.totalorder %s16, 0
      %p162 = por %p160, %p161
      %p163 = scmp.ne.s32.totalorder %s155, %s157
      %p164 = scmp.eq.s32.totalorder %s21, 1
      %p165 = por %p163, %p164
      %p166 = scmp.ne.s32.totalorder %s157, %s158
      %p167 = scmp.eq.s32.totalorder %s21, 0
      %p168 = por %p166, %p167
      %p169 = scmp.ne.s32.totalorder %s157, %s158
      %p170 = scmp.eq.s32.totalorder %s22, 1
      %p171 = por %p169, %p170
      %p173 = scmp.ne.s32.totalorder %s158, %s172
      %p174 = scmp.eq.s32.totalorder %s22, 0
      %p175 = por %p173, %p174
      %s176 = ssub.s32 %s16, %s23
      %p177 = scmp.eq.s32.totalorder %s176, 0
      %s179 = sadd.s32 %s178, 1
      %s180 = scalar_select %p177, %s178, %s179
      %p183 = pneg %p177
      %p184 = scmp.eq.s32.totalorder %s16, 1
      %p185 = por %p183, %p184
      %p186 = scmp.ne.s32.totalorder %s178, %s181
      %p187 = scmp.eq.s32.totalorder %s16, 0
      %p188 = por %p186, %p187
      %p189 = scmp.ne.s32.totalorder %s178, %s181
      %p190 = scmp.eq.s32.totalorder %s21, 1
      %p191 = por %p189, %p190
      %p192 = scmp.ne.s32.totalorder %s181, %s182
      %p193 = scmp.eq.s32.totalorder %s21, 0
      %p194 = por %p192, %p193
      %p195 = scmp.ne.s32.totalorder %s181, %s182
      %p196 = scmp.eq.s32.totalorder %s22, 1
      %p197 = por %p195, %p196
      %p199 = scmp.ne.s32.totalorder %s182, %s198
      %p200 = scmp.eq.s32.totalorder %s22, 0
      %p201 = por %p199, %p200
      %p202 = scmp.le.s32.totalorder 1, %s16
      %p203 = scmp.lt.s32.totalorder %s16, 3
      %p204 = pnand %p202, %p203
      %p205 = pneg %p204
      // Predicated region
      $region9: #{forward.1} parent=5 // pred_check
        _
      $region10: #{forward.1} parent=5 // pred_check_branch
        %207 = sbr.rel (%p204) target = $region12
      $region11: #{forward.1} parent=5 // pred_region
        %s208 = ssub.s32 %s16, 1
        // Predicated region
        $region13: #{forward.1} parent=11 // pred_check
          %p209 = pneg %p63
        $region14: #{forward.1} parent=11 // pred_check_branch
          %211 = sbr.rel (%p209) target = $region16
        $region15: #{forward.1} parent=11 // pred_region
          %s213 = ssub.s32 8192, 8192
          %214 = vsyncadd [#allocation3], %s213
          %s215 = sshll.u32 [#allocation2], 4
          %s216 = int_to_ptr.vmem [resolvable:$true] %s215
          %221 = dma.hbm_to_vmem [thread:$0]  %s1, 8192, %s216, [#allocation3], 512, 512, 32
        $region16: #{forward.1} parent=11 // pred_fallthru
          _
        // Predicated region
        $region17: #{forward.1} parent=11 // pred_check
          %p222 = pneg %p84
        $region18: #{forward.1} parent=11 // pred_check_branch
          %224 = sbr.rel (%p222) target = $region20
        $region19: #{forward.1} parent=11 // pred_region
          %s226 = ssub.s32 32768, 32768
          %227 = vsyncadd [#allocation5], %s226
          %s228 = sshll.u32 [#allocation4], 4
          %s229 = int_to_ptr.vmem [resolvable:$true] %s228
          %234 = dma.hbm_to_vmem [thread:$0]  %s2, 32768, %s229, [#allocation5], 256, 256, 16
        $region20: #{forward.1} parent=11 // pred_fallthru
          _
        // Predicated region
        $region21: #{forward.1} parent=11 // pred_check
          %p235 = pneg %p105
        $region22: #{forward.1} parent=11 // pred_check_branch
          %237 = sbr.rel (%p235) target = $region24
        $region23: #{forward.1} parent=11 // pred_region
          %s239 = ssub.s32 8192, 8192
          %240 = vsyncadd [#allocation5], %s239
          %s241 = sshll.u32 [#allocation6], 4
          %s242 = int_to_ptr.vmem [resolvable:$true] %s241
          %247 = dma.hbm_to_vmem [thread:$0]  %s3, 8192, %s242, [#allocation5], 128, 128, 8
        $region24: #{forward.1} parent=11 // pred_fallthru
          _
        // Predicated region
        $region25: #{forward.1} parent=11 // pred_check
          %p248 = pneg %p126
        $region26: #{forward.1} parent=11 // pred_check_branch
          %250 = sbr.rel (%p248) target = $region28
        $region27: #{forward.1} parent=11 // pred_region
          %s252 = ssub.s32 2048, 2048
          %253 = vsyncadd [#allocation8], %s252
          %s254 = sshll.u32 [#allocation7], 4
          %s255 = int_to_ptr.vmem [resolvable:$true] %s254
          %260 = dma.hbm_to_vmem [thread:$0]  %s4, 2048, %s255, [#allocation8], 64, 64, 4
        $region28: #{forward.1} parent=11 // pred_fallthru
          _
        // Predicated region
        $region29: #{forward.1} parent=11 // pred_check
          %p261 = pneg %p147
        $region30: #{forward.1} parent=11 // pred_check_branch
          %263 = sbr.rel (%p261) target = $region32
        $region31: #{forward.1} parent=11 // pred_region
          %s265 = ssub.s32 3072, 3072
          %266 = vsyncadd [#allocation8], %s265
          %s267 = sshll.u32 [#allocation9], 4
          %s268 = int_to_ptr.vmem [resolvable:$true] %s267
          %273 = dma.hbm_to_vmem [thread:$0]  %s5, 3072, %s268, [#allocation8], 64, 64, 4
        $region32: #{forward.1} parent=11 // pred_fallthru
          _
        // Predicated region
        $region33: #{forward.1} parent=11 // pred_check
          %p274 = pneg %p168
        $region34: #{forward.1} parent=11 // pred_check_branch
          %276 = sbr.rel (%p274) target = $region36
        $region35: #{forward.1} parent=11 // pred_region
          _
        $region36: #{forward.1} parent=11 // pred_fallthru
          _
      $region12: #{forward.1} parent=5 // pred_fallthru
        _
      %p277 = scmp.lt.s32.totalorder %s16, 2
      // Predicated region
      $region37: #{forward.1} parent=5 // pred_check
        %p278 = pneg %p277
      $region38: #{forward.1} parent=5 // pred_check_branch
        %280 = sbr.rel (%p278) target = $region40
      $region39: #{forward.1} parent=5 // pred_region
        // Predicated region
        $region41: #{forward.1} parent=39 // pred_check
          %p281 = pneg %p36
        $region42: #{forward.1} parent=39 // pred_check_branch
          %283 = sbr.rel (%p281) target = $region44
        $region43: #{forward.1} parent=39 // pred_region
          %p284 = scmp.lt.s32.totalorder %s16, 1
          %s285 = scalar_select %p284, %s16, 1
          %s286 = smul.addr %s285, 8
          %s287 = scalar_lea.vmem %s0, %s286
        $region44: #{forward.1} parent=39 // pred_fallthru
          _
      $region40: #{forward.1} parent=5 // pred_fallthru
        _
      %p288 = scmp.le.s32.totalorder 1, %s16
      %p289 = scmp.lt.s32.totalorder %s16, 3
      %p290 = pnand %p288, %p289
      %p291 = pneg %p290
      // Predicated region
      $region45: #{forward.1} parent=5 // pred_check
        _
      $region46: #{forward.1} parent=5 // pred_check_branch
        %293 = sbr.rel (%p290) target = $region48
      $region47: #{forward.1} parent=5 // pred_region
        %s294 = ssub.s32 %s16, 1
        // Predicated region
        $region49: #{forward.1} parent=47 // pred_check
          %p295 = pneg %p63
        $region50: #{forward.1} parent=47 // pred_check_branch
          %297 = sbr.rel (%p295) target = $region52
        $region51: #{forward.1} parent=47 // pred_region
          %298 = dma.done [#allocation3], 8192
        $region52: #{forward.1} parent=47 // pred_fallthru
          _
        // Predicated region
        $region53: #{forward.1} parent=47 // pred_check
          %p299 = pneg %p84
        $region54: #{forward.1} parent=47 // pred_check_branch
          %301 = sbr.rel (%p299) target = $region56
        $region55: #{forward.1} parent=47 // pred_region
          %302 = dma.done [#allocation5], 32768
        $region56: #{forward.1} parent=47 // pred_fallthru
          _
        // Predicated region
        $region57: #{forward.1} parent=47 // pred_check
          %p303 = pneg %p105
        $region58: #{forward.1} parent=47 // pred_check_branch
          %305 = sbr.rel (%p303) target = $region60
        $region59: #{forward.1} parent=47 // pred_region
          %306 = dma.done [#allocation5], 8192
        $region60: #{forward.1} parent=47 // pred_fallthru
          _
        // Predicated region
        $region61: #{forward.1} parent=47 // pred_check
          %p307 = pneg %p126
        $region62: #{forward.1} parent=47 // pred_check_branch
          %309 = sbr.rel (%p307) target = $region64
        $region63: #{forward.1} parent=47 // pred_region
          %310 = dma.done [#allocation8], 2048
        $region64: #{forward.1} parent=47 // pred_fallthru
          _
        // Predicated region
        $region65: #{forward.1} parent=47 // pred_check
          %p311 = pneg %p147
        $region66: #{forward.1} parent=47 // pred_check_branch
          %313 = sbr.rel (%p311) target = $region68
        $region67: #{forward.1} parent=47 // pred_region
          %314 = dma.done [#allocation8], 3072
        $region68: #{forward.1} parent=47 // pred_fallthru
          _
        %p315 = scmp.lt.s32.totalorder %s21, 1
        %s316 = scalar_select %p315, %s21, 1
        %s317 = smul.addr %s316, 8
        %s318 = scalar_lea.vmem %s0, %s317
        %p319 = pneg %p42
        %p320 = pneg %p39
        %p321 = pneg %p63
        %p322 = pneg %p60
        %p323 = pneg %p84
        %p324 = pneg %p81
        %p325 = pneg %p105
        %p326 = pneg %p102
        %p327 = pneg %p126
        %p328 = pneg %p123
        %p329 = pneg %p147
        %p330 = pneg %p144
        %p331 = pneg %p168
        %p332 = pneg %p165
        %p333 = pneg %p194
        %p334 = pneg %p191
        %p335 = scmp.lt.s32.totalorder %s21, 1
        %s336 = scalar_select %p335, %s21, 1
        %s337 = smul.addr %s336, 8
        %s338 = scalar_lea.vmem %s7, %s337
        %p339 = scmp.lt.s32.totalorder %s21, 1
        %s340 = scalar_select %p339, %s21, 1
        %s341 = smul.addr %s340, 8
        %s342 = scalar_lea.vmem %s0, %s341
        %p343 = scmp.lt.s32.totalorder %s21, 1
        %s344 = scalar_select %p343, %s21, 1
        %s345 = smul.addr %s344, 8
        %s346 = scalar_lea.vmem %s7, %s345
        %v348 = vld [vmem:[%s342] sm:$0xff]
        %v349 = vld [vmem:[#allocation2] sm:$0xff]
        %v350 = vld [vmem:[#allocation2 + $0x8] sm:$0xff]
        %v351 = vld [vmem:[#allocation2 + $0x10] sm:$0xff]
        %v352 = vld [vmem:[#allocation2 + $0x18] sm:$0xff]
        %v353 = vld [vmem:[#allocation2 + $0x20] sm:$0xff]
        %v354 = vld [vmem:[#allocation2 + $0x28] sm:$0xff]
        %v355 = vld [vmem:[#allocation2 + $0x30] sm:$0xff]
        %v356 = vld [vmem:[#allocation2 + $0x38] sm:$0xff]
        %v357 = vld [vmem:[#allocation2 + $0x40] sm:$0xff]
        %v358 = vld [vmem:[#allocation2 + $0x48] sm:$0xff]
        %v359 = vld [vmem:[#allocation2 + $0x50] sm:$0xff]
        %v360 = vld [vmem:[#allocation2 + $0x58] sm:$0xff]
        %v361 = vld [vmem:[#allocation2 + $0x60] sm:$0xff]
        %v362 = vld [vmem:[#allocation2 + $0x68] sm:$0xff]
        %v363 = vld [vmem:[#allocation2 + $0x70] sm:$0xff]
        %v364 = vld [vmem:[#allocation2 + $0x78] sm:$0xff]
        %v365 = vld [vmem:[#allocation2 + $0x80] sm:$0xff]
        %v366 = vld [vmem:[#allocation2 + $0x88] sm:$0xff]
        %v367 = vld [vmem:[#allocation2 + $0x90] sm:$0xff]
        %v368 = vld [vmem:[#allocation2 + $0x98] sm:$0xff]
        %v369 = vld [vmem:[#allocation2 + $0xa0] sm:$0xff]
        %v370 = vld [vmem:[#allocation2 + $0xa8] sm:$0xff]
        %v371 = vld [vmem:[#allocation2 + $0xb0] sm:$0xff]
        %v372 = vld [vmem:[#allocation2 + $0xb8] sm:$0xff]
        %v373 = vld [vmem:[#allocation2 + $0xc0] sm:$0xff]
        %v374 = vld [vmem:[#allocation2 + $0xc8] sm:$0xff]
        %v375 = vld [vmem:[#allocation2 + $0xd0] sm:$0xff]
        %v376 = vld [vmem:[#allocation2 + $0xd8] sm:$0xff]
        %v377 = vld [vmem:[#allocation2 + $0xe0] sm:$0xff]
        %v378 = vld [vmem:[#allocation2 + $0xe8] sm:$0xff]
        %v379 = vld [vmem:[#allocation2 + $0xf0] sm:$0xff]
        %v380 = vld [vmem:[#allocation2 + $0xf8] sm:$0xff]
        %v381 = vld [vmem:[#allocation2 + $0x100] sm:$0xff]
        %v382 = vld [vmem:[#allocation2 + $0x108] sm:$0xff]
        %v383 = vld [vmem:[#allocation2 + $0x110] sm:$0xff]
        %v384 = vld [vmem:[#allocation2 + $0x118] sm:$0xff]
        %v385 = vld [vmem:[#allocation2 + $0x120] sm:$0xff]
        %v386 = vld [vmem:[#allocation2 + $0x128] sm:$0xff]
        %v387 = vld [vmem:[#allocation2 + $0x130] sm:$0xff]
        %v388 = vld [vmem:[#allocation2 + $0x138] sm:$0xff]
        %v389 = vld [vmem:[#allocation2 + $0x140] sm:$0xff]
        %v390 = vld [vmem:[#allocation2 + $0x148] sm:$0xff]
        %v391 = vld [vmem:[#allocation2 + $0x150] sm:$0xff]
        %v392 = vld [vmem:[#allocation2 + $0x158] sm:$0xff]
        %v393 = vld [vmem:[#allocation2 + $0x160] sm:$0xff]
        %v394 = vld [vmem:[#allocation2 + $0x168] sm:$0xff]
        %v395 = vld [vmem:[#allocation2 + $0x170] sm:$0xff]
        %v396 = vld [vmem:[#allocation2 + $0x178] sm:$0xff]
        %v397 = vld [vmem:[#allocation2 + $0x180] sm:$0xff]
        %v398 = vld [vmem:[#allocation2 + $0x188] sm:$0xff]
        %v399 = vld [vmem:[#allocation2 + $0x190] sm:$0xff]
        %v400 = vld [vmem:[#allocation2 + $0x198] sm:$0xff]
        %v401 = vld [vmem:[#allocation2 + $0x1a0] sm:$0xff]
        %v402 = vld [vmem:[#allocation2 + $0x1a8] sm:$0xff]
        %v403 = vld [vmem:[#allocation2 + $0x1b0] sm:$0xff]
        %v404 = vld [vmem:[#allocation2 + $0x1b8] sm:$0xff]
        %v405 = vld [vmem:[#allocation2 + $0x1c0] sm:$0xff]
        %v406 = vld [vmem:[#allocation2 + $0x1c8] sm:$0xff]
        %v407 = vld [vmem:[#allocation2 + $0x1d0] sm:$0xff]
        %v408 = vld [vmem:[#allocation2 + $0x1d8] sm:$0xff]
        %v409 = vld [vmem:[#allocation2 + $0x1e0] sm:$0xff]
        %v410 = vld [vmem:[#allocation2 + $0x1e8] sm:$0xff]
        %v411 = vld [vmem:[#allocation2 + $0x1f0] sm:$0xff]
        %v412 = vld [vmem:[#allocation2 + $0x1f8] sm:$0xff]
        %v413 = vld [vmem:[%s6] sm:$0xff]
        %v414 = vpack.c.bf16 %v348, %v348
        %v416 = vlaneseq
        %v417 = vshrl.u32 %v416, 7
        %v418 = vsub.s32 0, %v417
        %v419 = vrot.slane %v413, %v418
        %v420 = vlaneseq
        %v421 = vshrl.u32 %v420, 7
        %v422 = vsub.s32 1, %v421
        %v423 = vrot.slane %v413, %v422
        %v424 = vlaneseq
        %v425 = vshrl.u32 %v424, 7
        %v426 = vsub.s32 2, %v425
        %v427 = vrot.slane %v413, %v426
        %v428 = vlaneseq
        %v429 = vshrl.u32 %v428, 7
        %v430 = vsub.s32 3, %v429
        %v431 = vrot.slane %v413, %v430
        %v432 = vlaneseq
        %v433 = vshrl.u32 %v432, 7
        %v434 = vsub.s32 4, %v433
        %v435 = vrot.slane %v413, %v434
        %v436 = vlaneseq
        %v437 = vshrl.u32 %v436, 7
        %v438 = vsub.s32 5, %v437
        %v439 = vrot.slane %v413, %v438
        %v440 = vlaneseq
        %v441 = vshrl.u32 %v440, 7
        %v442 = vsub.s32 6, %v441
        %v443 = vrot.slane %v413, %v442
        %v444 = vlaneseq
        %v445 = vshrl.u32 %v444, 7
        %v446 = vsub.s32 7, %v445
        %v447 = vrot.slane %v413, %v446
        %v520 = vunpack.c.l.b16 %v349
        %v521 = vunpack.c.h.b16 %v349
        %v522 = vunpack.c.l.b16 %v350
        %v523 = vunpack.c.h.b16 %v350
        %v524 = vunpack.c.l.b16 %v351
        %v525 = vunpack.c.h.b16 %v351
        %v526 = vunpack.c.l.b16 %v352
        %v527 = vunpack.c.h.b16 %v352
        %v528 = vunpack.c.l.b16 %v353
        %v529 = vunpack.c.h.b16 %v353
        %v530 = vunpack.c.l.b16 %v354
        %v531 = vunpack.c.h.b16 %v354
        %v532 = vunpack.c.l.b16 %v355
        %v533 = vunpack.c.h.b16 %v355
        %v534 = vunpack.c.l.b16 %v356
        %v535 = vunpack.c.h.b16 %v356
        %v536 = vunpack.c.l.b16 %v357
        %v537 = vunpack.c.h.b16 %v357
        %v538 = vunpack.c.l.b16 %v358
        %v539 = vunpack.c.h.b16 %v358
        %v540 = vunpack.c.l.b16 %v359
        %v541 = vunpack.c.h.b16 %v359
        %v542 = vunpack.c.l.b16 %v360
        %v543 = vunpack.c.h.b16 %v360
        %v544 = vunpack.c.l.b16 %v361
        %v545 = vunpack.c.h.b16 %v361
        %v546 = vunpack.c.l.b16 %v362
        %v547 = vunpack.c.h.b16 %v362
        %v548 = vunpack.c.l.b16 %v363
        %v549 = vunpack.c.h.b16 %v363
        %v550 = vunpack.c.l.b16 %v364
        %v551 = vunpack.c.h.b16 %v364
        %v552 = vunpack.c.l.b16 %v365
        %v553 = vunpack.c.h.b16 %v365
        %v554 = vunpack.c.l.b16 %v366
        %v555 = vunpack.c.h.b16 %v366
        %v556 = vunpack.c.l.b16 %v367
        %v557 = vunpack.c.h.b16 %v367
        %v558 = vunpack.c.l.b16 %v368
        %v559 = vunpack.c.h.b16 %v368
        %v560 = vunpack.c.l.b16 %v369
        %v561 = vunpack.c.h.b16 %v369
        %v562 = vunpack.c.l.b16 %v370
        %v563 = vunpack.c.h.b16 %v370
        %v564 = vunpack.c.l.b16 %v371
        %v565 = vunpack.c.h.b16 %v371
        %v566 = vunpack.c.l.b16 %v372
        %v567 = vunpack.c.h.b16 %v372
        %v568 = vunpack.c.l.b16 %v373
        %v569 = vunpack.c.h.b16 %v373
        %v570 = vunpack.c.l.b16 %v374
        %v571 = vunpack.c.h.b16 %v374
        %v572 = vunpack.c.l.b16 %v375
        %v573 = vunpack.c.h.b16 %v375
        %v574 = vunpack.c.l.b16 %v376
        %v575 = vunpack.c.h.b16 %v376
        %v576 = vunpack.c.l.b16 %v377
        %v577 = vunpack.c.h.b16 %v377
        %v578 = vunpack.c.l.b16 %v378
        %v579 = vunpack.c.h.b16 %v378
        %v580 = vunpack.c.l.b16 %v379
        %v581 = vunpack.c.h.b16 %v379
        %v582 = vunpack.c.l.b16 %v380
        %v583 = vunpack.c.h.b16 %v380
        %v584 = vunpack.c.l.b16 %v381
        %v585 = vunpack.c.h.b16 %v381
        %v586 = vunpack.c.l.b16 %v382
        %v587 = vunpack.c.h.b16 %v382
        %v588 = vunpack.c.l.b16 %v383
        %v589 = vunpack.c.h.b16 %v383
        %v590 = vunpack.c.l.b16 %v384
        %v591 = vunpack.c.h.b16 %v384
        %v592 = vunpack.c.l.b16 %v385
        %v593 = vunpack.c.h.b16 %v385
        %v594 = vunpack.c.l.b16 %v386
        %v595 = vunpack.c.h.b16 %v386
        %v596 = vunpack.c.l.b16 %v387
        %v597 = vunpack.c.h.b16 %v387
        %v598 = vunpack.c.l.b16 %v388
        %v599 = vunpack.c.h.b16 %v388
        %v600 = vunpack.c.l.b16 %v389
        %v601 = vunpack.c.h.b16 %v389
        %v602 = vunpack.c.l.b16 %v390
        %v603 = vunpack.c.h.b16 %v390
        %v604 = vunpack.c.l.b16 %v391
        %v605 = vunpack.c.h.b16 %v391
        %v606 = vunpack.c.l.b16 %v392
        %v607 = vunpack.c.h.b16 %v392
        %v608 = vunpack.c.l.b16 %v393
        %v609 = vunpack.c.h.b16 %v393
        %v610 = vunpack.c.l.b16 %v394
        %v611 = vunpack.c.h.b16 %v394
        %v612 = vunpack.c.l.b16 %v395
        %v613 = vunpack.c.h.b16 %v395
        %v614 = vunpack.c.l.b16 %v396
        %v615 = vunpack.c.h.b16 %v396
        %v616 = vunpack.c.l.b16 %v397
        %v617 = vunpack.c.h.b16 %v397
        %v618 = vunpack.c.l.b16 %v398
        %v619 = vunpack.c.h.b16 %v398
        %v620 = vunpack.c.l.b16 %v399
        %v621 = vunpack.c.h.b16 %v399
        %v622 = vunpack.c.l.b16 %v400
        %v623 = vunpack.c.h.b16 %v400
        %v624 = vunpack.c.l.b16 %v401
        %v625 = vunpack.c.h.b16 %v401
        %v626 = vunpack.c.l.b16 %v402
        %v627 = vunpack.c.h.b16 %v402
        %v628 = vunpack.c.l.b16 %v403
        %v629 = vunpack.c.h.b16 %v403
        %v630 = vunpack.c.l.b16 %v404
        %v631 = vunpack.c.h.b16 %v404
        %v632 = vunpack.c.l.b16 %v405
        %v633 = vunpack.c.h.b16 %v405
        %v634 = vunpack.c.l.b16 %v406
        %v635 = vunpack.c.h.b16 %v406
        %v636 = vunpack.c.l.b16 %v407
        %v637 = vunpack.c.h.b16 %v407
        %v638 = vunpack.c.l.b16 %v408
        %v639 = vunpack.c.h.b16 %v408
        %v640 = vunpack.c.l.b16 %v409
        %v641 = vunpack.c.h.b16 %v409
        %v642 = vunpack.c.l.b16 %v410
        %v643 = vunpack.c.h.b16 %v410
        %v644 = vunpack.c.l.b16 %v411
        %v645 = vunpack.c.h.b16 %v411
        %v646 = vunpack.c.l.b16 %v412
        %v647 = vunpack.c.h.b16 %v412
        %v648 = vpack.c.b16 %v528, %v520
        %v649 = vpack.c.b16 %v529, %v521
        %v650 = vpack.c.b16 %v530, %v522
        %v651 = vpack.c.b16 %v531, %v523
        %v652 = vpack.c.b16 %v532, %v524
        %v653 = vpack.c.b16 %v533, %v525
        %v654 = vpack.c.b16 %v534, %v526
        %v655 = vpack.c.b16 %v535, %v527
        %v656 = vpack.c.b16 %v544, %v536
        %v657 = vpack.c.b16 %v545, %v537
        %v658 = vpack.c.b16 %v546, %v538
        %v659 = vpack.c.b16 %v547, %v539
        %v660 = vpack.c.b16 %v548, %v540
        %v661 = vpack.c.b16 %v549, %v541
        %v662 = vpack.c.b16 %v550, %v542
        %v663 = vpack.c.b16 %v551, %v543
        %v664 = vpack.c.b16 %v560, %v552
        %v665 = vpack.c.b16 %v561, %v553
        %v666 = vpack.c.b16 %v562, %v554
        %v667 = vpack.c.b16 %v563, %v555
        %v668 = vpack.c.b16 %v564, %v556
        %v669 = vpack.c.b16 %v565, %v557
        %v670 = vpack.c.b16 %v566, %v558
        %v671 = vpack.c.b16 %v567, %v559
        %v672 = vpack.c.b16 %v576, %v568
        %v673 = vpack.c.b16 %v577, %v569
        %v674 = vpack.c.b16 %v578, %v570
        %v675 = vpack.c.b16 %v579, %v571
        %v676 = vpack.c.b16 %v580, %v572
        %v677 = vpack.c.b16 %v581, %v573
        %v678 = vpack.c.b16 %v582, %v574
        %v679 = vpack.c.b16 %v583, %v575
        %v680 = vpack.c.b16 %v592, %v584
        %v681 = vpack.c.b16 %v593, %v585
        %v682 = vpack.c.b16 %v594, %v586
        %v683 = vpack.c.b16 %v595, %v587
        %v684 = vpack.c.b16 %v596, %v588
        %v685 = vpack.c.b16 %v597, %v589
        %v686 = vpack.c.b16 %v598, %v590
        %v687 = vpack.c.b16 %v599, %v591
        %v688 = vpack.c.b16 %v608, %v600
        %v689 = vpack.c.b16 %v609, %v601
        %v690 = vpack.c.b16 %v610, %v602
        %v691 = vpack.c.b16 %v611, %v603
        %v692 = vpack.c.b16 %v612, %v604
        %v693 = vpack.c.b16 %v613, %v605
        %v694 = vpack.c.b16 %v614, %v606
        %v695 = vpack.c.b16 %v615, %v607
        %v696 = vpack.c.b16 %v624, %v616
        %v697 = vpack.c.b16 %v625, %v617
        %v698 = vpack.c.b16 %v626, %v618
        %v699 = vpack.c.b16 %v627, %v619
        %v700 = vpack.c.b16 %v628, %v620
        %v701 = vpack.c.b16 %v629, %v621
        %v702 = vpack.c.b16 %v630, %v622
        %v703 = vpack.c.b16 %v631, %v623
        %v704 = vpack.c.b16 %v640, %v632
        %v705 = vpack.c.b16 %v641, %v633
        %v706 = vpack.c.b16 %v642, %v634
        %v707 = vpack.c.b16 %v643, %v635
        %v708 = vpack.c.b16 %v644, %v636
        %v709 = vpack.c.b16 %v645, %v637
        %v710 = vpack.c.b16 %v646, %v638
        %v711 = vpack.c.b16 %v647, %v639
        %776 = vmatprep.subr.bf16.mxu0 %v649
        %777 = vmatpush1.bf16.msra.mxu0 %v648
        %778 = vmatprep.subr.bf16.mxu0 %v657
        %779 = vmatpush1.bf16.msra.mxu0 %v656
        %780 = vmatprep.subr.bf16.mxu0 %v665
        %781 = vmatpush1.bf16.msra.mxu0 %v664
        %782 = vmatprep.subr.bf16.mxu0 %v673
        %783 = vmatpush1.bf16.msra.mxu0 %v672
        %784 = vmatprep.subr.bf16.mxu0 %v681
        %785 = vmatpush1.bf16.msra.mxu0 %v680
        %786 = vmatprep.subr.bf16.mxu0 %v689
        %787 = vmatpush1.bf16.msra.mxu0 %v688
        %788 = vmatprep.subr.bf16.mxu0 %v697
        %789 = vmatpush1.bf16.msra.mxu0 %v696
        %790 = vmatprep.subr.bf16.mxu0 %v705
        %791 = vmatpush1.bf16.msra.mxu0 %v704
        %792 = vmatprep.subr.bf16.mxu0 0
        %793 = vmatpush1.bf16.msra.mxu0 0
        %794 = vmatprep.subr.bf16.mxu0 0
        %795 = vmatpush1.bf16.msra.mxu0 0
        %796 = vmatprep.subr.bf16.mxu0 0
        %797 = vmatpush1.bf16.msra.mxu0 0
        %798 = vmatprep.subr.bf16.mxu0 0
        %799 = vmatpush1.bf16.msra.mxu0 0
        %800 = vmatprep.subr.bf16.mxu0 0
        %801 = vmatpush1.bf16.msra.mxu0 0
        %802 = vmatprep.subr.bf16.mxu0 0
        %803 = vmatpush1.bf16.msra.mxu0 0
        %804 = vmatprep.subr.bf16.mxu0 0
        %805 = vmatpush1.bf16.msra.mxu0 0
        %806 = vmatprep.subr.bf16.mxu0 0
        %807 = vmatpush1.bf16.msra.mxu0 0
        %808 = vmatprep.mubr.bf16.mxu0 0
        %809 = vmatmul.mubr.bf16.gmra.mrb[0].mxu0 %v414
        %v810 = vpop.f32.mrb[0].mxu0
        %v811 = vadd.f32 %v419, %v810
        %v812 = vpop.f32.mrb[0].mxu0
        %v813 = vadd.f32 %v423, %v812
        %v814 = vpop.f32.mrb[0].mxu0
        %v815 = vpop.f32.mrb[0].mxu0
        %816 = vdwg.mxu0
        %817 = vmatprep.subr.bf16.mxu0 %v651
        %818 = vmatpush1.bf16.msra.mxu0 %v650
        %819 = vmatprep.subr.bf16.mxu0 %v659
        %820 = vmatpush1.bf16.msra.mxu0 %v658
        %821 = vmatprep.subr.bf16.mxu0 %v667
        %822 = vmatpush1.bf16.msra.mxu0 %v666
        %823 = vmatprep.subr.bf16.mxu0 %v675
        %824 = vmatpush1.bf16.msra.mxu0 %v674
        %825 = vmatprep.subr.bf16.mxu0 %v683
        %826 = vmatpush1.bf16.msra.mxu0 %v682
        %827 = vmatprep.subr.bf16.mxu0 %v691
        %828 = vmatpush1.bf16.msra.mxu0 %v690
        %829 = vmatprep.subr.bf16.mxu0 %v699
        %830 = vmatpush1.bf16.msra.mxu0 %v698
        %831 = vmatprep.subr.bf16.mxu0 %v707
        %832 = vmatpush1.bf16.msra.mxu0 %v706
        %833 = vmatprep.subr.bf16.mxu0 0
        %834 = vmatpush1.bf16.msra.mxu0 0
        %835 = vmatprep.subr.bf16.mxu0 0
        %836 = vmatpush1.bf16.msra.mxu0 0
        %837 = vmatprep.subr.bf16.mxu0 0
        %838 = vmatpush1.bf16.msra.mxu0 0
        %839 = vmatprep.subr.bf16.mxu0 0
        %840 = vmatpush1.bf16.msra.mxu0 0
        %841 = vmatprep.subr.bf16.mxu0 0
        %842 = vmatpush1.bf16.msra.mxu0 0
        %843 = vmatprep.subr.bf16.mxu0 0
        %844 = vmatpush1.bf16.msra.mxu0 0
        %845 = vmatprep.subr.bf16.mxu0 0
        %846 = vmatpush1.bf16.msra.mxu0 0
        %847 = vmatprep.subr.bf16.mxu0 0
        %848 = vmatpush1.bf16.msra.mxu0 0
        %849 = vmatprep.mubr.bf16.mxu0 0
        %850 = vmatmul.mubr.bf16.gmra.mrb[0].mxu0 %v414
        %v851 = vpop.f32.mrb[0].mxu0
        %v852 = vadd.f32 %v427, %v851
        %v853 = vpop.f32.mrb[0].mxu0
        %v854 = vadd.f32 %v431, %v853
        %v855 = vpop.f32.mrb[0].mxu0
        %v856 = vpop.f32.mrb[0].mxu0
        %857 = vdwg.mxu0
        %858 = vmatprep.subr.bf16.mxu0 %v653
        %859 = vmatpush1.bf16.msra.mxu0 %v652
        %860 = vmatprep.subr.bf16.mxu0 %v661
        %861 = vmatpush1.bf16.msra.mxu0 %v660
        %862 = vmatprep.subr.bf16.mxu0 %v669
        %863 = vmatpush1.bf16.msra.mxu0 %v668
        %864 = vmatprep.subr.bf16.mxu0 %v677
        %865 = vmatpush1.bf16.msra.mxu0 %v676
        %866 = vmatprep.subr.bf16.mxu0 %v685
        %867 = vmatpush1.bf16.msra.mxu0 %v684
        %868 = vmatprep.subr.bf16.mxu0 %v693
        %869 = vmatpush1.bf16.msra.mxu0 %v692
        %870 = vmatprep.subr.bf16.mxu0 %v701
        %871 = vmatpush1.bf16.msra.mxu0 %v700
        %872 = vmatprep.subr.bf16.mxu0 %v709
        %873 = vmatpush1.bf16.msra.mxu0 %v708
        %874 = vmatprep.subr.bf16.mxu0 0
        %875 = vmatpush1.bf16.msra.mxu0 0
        %876 = vmatprep.subr.bf16.mxu0 0
        %877 = vmatpush1.bf16.msra.mxu0 0
        %878 = vmatprep.subr.bf16.mxu0 0
        %879 = vmatpush1.bf16.msra.mxu0 0
        %880 = vmatprep.subr.bf16.mxu0 0
        %881 = vmatpush1.bf16.msra.mxu0 0
        %882 = vmatprep.subr.bf16.mxu0 0
        %883 = vmatpush1.bf16.msra.mxu0 0
        %884 = vmatprep.subr.bf16.mxu0 0
        %885 = vmatpush1.bf16.msra.mxu0 0
        %886 = vmatprep.subr.bf16.mxu0 0
        %887 = vmatpush1.bf16.msra.mxu0 0
        %888 = vmatprep.subr.bf16.mxu0 0
        %889 = vmatpush1.bf16.msra.mxu0 0
        %890 = vmatprep.mubr.bf16.mxu0 0
        %891 = vmatmul.mubr.bf16.gmra.mrb[0].mxu0 %v414
        %v892 = vpop.f32.mrb[0].mxu0
        %v893 = vadd.f32 %v435, %v892
        %v894 = vpop.f32.mrb[0].mxu0
        %v895 = vadd.f32 %v439, %v894
        %v896 = vpop.f32.mrb[0].mxu0
        %v897 = vpop.f32.mrb[0].mxu0
        %898 = vdwg.mxu0
        %899 = vmatprep.subr.bf16.mxu0 %v655
        %900 = vmatpush1.bf16.msra.mxu0 %v654
        %901 = vmatprep.subr.bf16.mxu0 %v663
        %902 = vmatpush1.bf16.msra.mxu0 %v662
        %903 = vmatprep.subr.bf16.mxu0 %v671
        %904 = vmatpush1.bf16.msra.mxu0 %v670
        %905 = vmatprep.subr.bf16.mxu0 %v679
        %906 = vmatpush1.bf16.msra.mxu0 %v678
        %907 = vmatprep.subr.bf16.mxu0 %v687
        %908 = vmatpush1.bf16.msra.mxu0 %v686
        %909 = vmatprep.subr.bf16.mxu0 %v695
        %910 = vmatpush1.bf16.msra.mxu0 %v694
        %911 = vmatprep.subr.bf16.mxu0 %v703
        %912 = vmatpush1.bf16.msra.mxu0 %v702
        %913 = vmatprep.subr.bf16.mxu0 %v711
        %914 = vmatpush1.bf16.msra.mxu0 %v710
        %915 = vmatprep.subr.bf16.mxu0 0
        %916 = vmatpush1.bf16.msra.mxu0 0
        %917 = vmatprep.subr.bf16.mxu0 0
        %918 = vmatpush1.bf16.msra.mxu0 0
        %919 = vmatprep.subr.bf16.mxu0 0
        %920 = vmatpush1.bf16.msra.mxu0 0
        %921 = vmatprep.subr.bf16.mxu0 0
        %922 = vmatpush1.bf16.msra.mxu0 0
        %923 = vmatprep.subr.bf16.mxu0 0
        %924 = vmatpush1.bf16.msra.mxu0 0
        %925 = vmatprep.subr.bf16.mxu0 0
        %926 = vmatpush1.bf16.msra.mxu0 0
        %927 = vmatprep.subr.bf16.mxu0 0
        %928 = vmatpush1.bf16.msra.mxu0 0
        %929 = vmatprep.subr.bf16.mxu0 0
        %930 = vmatpush1.bf16.msra.mxu0 0
        %931 = vmatprep.mubr.bf16.mxu0 0
        %932 = vmatmul.mubr.bf16.gmra.mrb[0].mxu0 %v414
        %v933 = vpop.f32.mrb[0].mxu0
        %v934 = vadd.f32 %v443, %v933
        %v935 = vpop.f32.mrb[0].mxu0
        %v936 = vadd.f32 %v447, %v935
        %v937 = vpop.f32.mrb[0].mxu0
        %v938 = vpop.f32.mrb[0].mxu0
        %939 = vdwg.mxu0
        %v940 = vmax.f32 %v811, 0.0
        %v941 = vmax.f32 %v813, 0.0
        %v942 = vmax.f32 %v852, 0.0
        %v943 = vmax.f32 %v854, 0.0
        %v944 = vmax.f32 %v893, 0.0
        %v945 = vmax.f32 %v895, 0.0
        %v946 = vmax.f32 %v934, 0.0
        %v947 = vmax.f32 %v936, 0.0
        %v948 = vld [vmem:[#allocation4] sm:$0xff]
        %v949 = vld [vmem:[#allocation4 + $0x8] sm:$0xff]
        %v950 = vld [vmem:[#allocation4 + $0x10] sm:$0xff]
        %v951 = vld [vmem:[#allocation4 + $0x18] sm:$0xff]
        %v952 = vld [vmem:[#allocation4 + $0x20] sm:$0xff]
        %v953 = vld [vmem:[#allocation4 + $0x28] sm:$0xff]
        %v954 = vld [vmem:[#allocation4 + $0x30] sm:$0xff]
        %v955 = vld [vmem:[#allocation4 + $0x38] sm:$0xff]
        %v956 = vld [vmem:[#allocation4 + $0x40] sm:$0xff]
        %v957 = vld [vmem:[#allocation4 + $0x48] sm:$0xff]
        %v958 = vld [vmem:[#allocation4 + $0x50] sm:$0xff]
        %v959 = vld [vmem:[#allocation4 + $0x58] sm:$0xff]
        %v960 = vld [vmem:[#allocation4 + $0x60] sm:$0xff]
        %v961 = vld [vmem:[#allocation4 + $0x68] sm:$0xff]
        %v962 = vld [vmem:[#allocation4 + $0x70] sm:$0xff]
        %v963 = vld [vmem:[#allocation4 + $0x78] sm:$0xff]
        %v964 = vld [vmem:[#allocation4 + $0x80] sm:$0xff]
        %v965 = vld [vmem:[#allocation4 + $0x88] sm:$0xff]
        %v966 = vld [vmem:[#allocation4 + $0x90] sm:$0xff]
        %v967 = vld [vmem:[#allocation4 + $0x98] sm:$0xff]
        %v968 = vld [vmem:[#allocation4 + $0xa0] sm:$0xff]
        %v969 = vld [vmem:[#allocation4 + $0xa8] sm:$0xff]
        %v970 = vld [vmem:[#allocation4 + $0xb0] sm:$0xff]
        %v971 = vld [vmem:[#allocation4 + $0xb8] sm:$0xff]
        %v972 = vld [vmem:[#allocation4 + $0xc0] sm:$0xff]
        %v973 = vld [vmem:[#allocation4 + $0xc8] sm:$0xff]
        %v974 = vld [vmem:[#allocation4 + $0xd0] sm:$0xff]
        %v975 = vld [vmem:[#allocation4 + $0xd8] sm:$0xff]
        %v976 = vld [vmem:[#allocation4 + $0xe0] sm:$0xff]
        %v977 = vld [vmem:[#allocation4 + $0xe8] sm:$0xff]
        %v978 = vld [vmem:[#allocation4 + $0xf0] sm:$0xff]
        %v979 = vld [vmem:[#allocation4 + $0xf8] sm:$0xff]
        %v980 = vld [vmem:[#allocation4 + $0x100] sm:$0xff]
        %v981 = vld [vmem:[#allocation4 + $0x108] sm:$0xff]
        %v982 = vld [vmem:[#allocation4 + $0x110] sm:$0xff]
        %v983 = vld [vmem:[#allocation4 + $0x118] sm:$0xff]
        %v984 = vld [vmem:[#allocation4 + $0x120] sm:$0xff]
        %v985 = vld [vmem:[#allocation4 + $0x128] sm:$0xff]
        %v986 = vld [vmem:[#allocation4 + $0x130] sm:$0xff]
        %v987 = vld [vmem:[#allocation4 + $0x138] sm:$0xff]
        %v988 = vld [vmem:[#allocation4 + $0x140] sm:$0xff]
        %v989 = vld [vmem:[#allocation4 + $0x148] sm:$0xff]
        %v990 = vld [vmem:[#allocation4 + $0x150] sm:$0xff]
        %v991 = vld [vmem:[#allocation4 + $0x158] sm:$0xff]
        %v992 = vld [vmem:[#allocation4 + $0x160] sm:$0xff]
        %v993 = vld [vmem:[#allocation4 + $0x168] sm:$0xff]
        %v994 = vld [vmem:[#allocation4 + $0x170] sm:$0xff]
        %v995 = vld [vmem:[#allocation4 + $0x178] sm:$0xff]
        %v996 = vld [vmem:[#allocation4 + $0x180] sm:$0xff]
        %v997 = vld [vmem:[#allocation4 + $0x188] sm:$0xff]
        %v998 = vld [vmem:[#allocation4 + $0x190] sm:$0xff]
        %v999 = vld [vmem:[#allocation4 + $0x198] sm:$0xff]
        %v1000 = vld [vmem:[#allocation4 + $0x1a0] sm:$0xff]
        %v1001 = vld [vmem:[#allocation4 + $0x1a8] sm:$0xff]
        %v1002 = vld [vmem:[#allocation4 + $0x1b0] sm:$0xff]
        %v1003 = vld [vmem:[#allocation4 + $0x1b8] sm:$0xff]
        %v1004 = vld [vmem:[#allocation4 + $0x1c0] sm:$0xff]
        %v1005 = vld [vmem:[#allocation4 + $0x1c8] sm:$0xff]
        %v1006 = vld [vmem:[#allocation4 + $0x1d0] sm:$0xff]
        %v1007 = vld [vmem:[#allocation4 + $0x1d8] sm:$0xff]
        %v1008 = vld [vmem:[#allocation4 + $0x1e0] sm:$0xff]
        %v1009 = vld [vmem:[#allocation4 + $0x1e8] sm:$0xff]
        %v1010 = vld [vmem:[#allocation4 + $0x1f0] sm:$0xff]
        %v1011 = vld [vmem:[#allocation4 + $0x1f8] sm:$0xff]
        %v1012 = vld [vmem:[#allocation4 + $0x200] sm:$0xff]
        %v1013 = vld [vmem:[#allocation4 + $0x208] sm:$0xff]
        %v1014 = vld [vmem:[#allocation4 + $0x210] sm:$0xff]
        %v1015 = vld [vmem:[#allocation4 + $0x218] sm:$0xff]
        %v1016 = vld [vmem:[#allocation4 + $0x220] sm:$0xff]
        %v1017 = vld [vmem:[#allocation4 + $0x228] sm:$0xff]
        %v1018 = vld [vmem:[#allocation4 + $0x230] sm:$0xff]
        %v1019 = vld [vmem:[#allocation4 + $0x238] sm:$0xff]
        %v1020 = vld [vmem:[#allocation4 + $0x240] sm:$0xff]
        %v1021 = vld [vmem:[#allocation4 + $0x248] sm:$0xff]
        %v1022 = vld [vmem:[#allocation4 + $0x250] sm:$0xff]
        %v1023 = vld [vmem:[#allocation4 + $0x258] sm:$0xff]
        %v1024 = vld [vmem:[#allocation4 + $0x260] sm:$0xff]
        %v1025 = vld [vmem:[#allocation4 + $0x268] sm:$0xff]
        %v1026 = vld [vmem:[#allocation4 + $0x270] sm:$0xff]
        %v1027 = vld [vmem:[#allocation4 + $0x278] sm:$0xff]
        %v1028 = vld [vmem:[#allocation4 + $0x280] sm:$0xff]
        %v1029 = vld [vmem:[#allocation4 + $0x288] sm:$0xff]
        %v1030 = vld [vmem:[#allocation4 + $0x290] sm:$0xff]
        %v1031 = vld [vmem:[#allocation4 + $0x298] sm:$0xff]
        %v1032 = vld [vmem:[#allocation4 + $0x2a0] sm:$0xff]
        %v1033 = vld [vmem:[#allocation4 + $0x2a8] sm:$0xff]
        %v1034 = vld [vmem:[#allocation4 + $0x2b0] sm:$0xff]
        %v1035 = vld [vmem:[#allocation4 + $0x2b8] sm:$0xff]
        %v1036 = vld [vmem:[#allocation4 + $0x2c0] sm:$0xff]
        %v1037 = vld [vmem:[#allocation4 + $0x2c8] sm:$0xff]
        %v1038 = vld [vmem:[#allocation4 + $0x2d0] sm:$0xff]
        %v1039 = vld [vmem:[#allocation4 + $0x2d8] sm:$0xff]
        %v1040 = vld [vmem:[#allocation4 + $0x2e0] sm:$0xff]
        %v1041 = vld [vmem:[#allocation4 + $0x2e8] sm:$0xff]
        %v1042 = vld [vmem:[#allocation4 + $0x2f0] sm:$0xff]
        %v1043 = vld [vmem:[#allocation4 + $0x2f8] sm:$0xff]
        %v1044 = vld [vmem:[#allocation4 + $0x300] sm:$0xff]
        %v1045 = vld [vmem:[#allocation4 + $0x308] sm:$0xff]
        %v1046 = vld [vmem:[#allocation4 + $0x310] sm:$0xff]
        %v1047 = vld [vmem:[#allocation4 + $0x318] sm:$0xff]
        %v1048 = vld [vmem:[#allocation4 + $0x320] sm:$0xff]
        %v1049 = vld [vmem:[#allocation4 + $0x328] sm:$0xff]
        %v1050 = vld [vmem:[#allocation4 + $0x330] sm:$0xff]
        %v1051 = vld [vmem:[#allocation4 + $0x338] sm:$0xff]
        %v1052 = vld [vmem:[#allocation4 + $0x340] sm:$0xff]
        %v1053 = vld [vmem:[#allocation4 + $0x348] sm:$0xff]
        %v1054 = vld [vmem:[#allocation4 + $0x350] sm:$0xff]
        %v1055 = vld [vmem:[#allocation4 + $0x358] sm:$0xff]
        %v1056 = vld [vmem:[#allocation4 + $0x360] sm:$0xff]
        %v1057 = vld [vmem:[#allocation4 + $0x368] sm:$0xff]
        %v1058 = vld [vmem:[#allocation4 + $0x370] sm:$0xff]
        %v1059 = vld [vmem:[#allocation4 + $0x378] sm:$0xff]
        %v1060 = vld [vmem:[#allocation4 + $0x380] sm:$0xff]
        %v1061 = vld [vmem:[#allocation4 + $0x388] sm:$0xff]
        %v1062 = vld [vmem:[#allocation4 + $0x390] sm:$0xff]
        %v1063 = vld [vmem:[#allocation4 + $0x398] sm:$0xff]
        %v1064 = vld [vmem:[#allocation4 + $0x3a0] sm:$0xff]
        %v1065 = vld [vmem:[#allocation4 + $0x3a8] sm:$0xff]
        %v1066 = vld [vmem:[#allocation4 + $0x3b0] sm:$0xff]
        %v1067 = vld [vmem:[#allocation4 + $0x3b8] sm:$0xff]
        %v1068 = vld [vmem:[#allocation4 + $0x3c0] sm:$0xff]
        %v1069 = vld [vmem:[#allocation4 + $0x3c8] sm:$0xff]
        %v1070 = vld [vmem:[#allocation4 + $0x3d0] sm:$0xff]
        %v1071 = vld [vmem:[#allocation4 + $0x3d8] sm:$0xff]
        %v1072 = vld [vmem:[#allocation4 + $0x3e0] sm:$0xff]
        %v1073 = vld [vmem:[#allocation4 + $0x3e8] sm:$0xff]
        %v1074 = vld [vmem:[#allocation4 + $0x3f0] sm:$0xff]
        %v1075 = vld [vmem:[#allocation4 + $0x3f8] sm:$0xff]
        %v1076 = vld [vmem:[#allocation4 + $0x400] sm:$0xff]
        %v1077 = vld [vmem:[#allocation4 + $0x408] sm:$0xff]
        %v1078 = vld [vmem:[#allocation4 + $0x410] sm:$0xff]
        %v1079 = vld [vmem:[#allocation4 + $0x418] sm:$0xff]
        %v1080 = vld [vmem:[#allocation4 + $0x420] sm:$0xff]
        %v1081 = vld [vmem:[#allocation4 + $0x428] sm:$0xff]
        %v1082 = vld [vmem:[#allocation4 + $0x430] sm:$0xff]
        %v1083 = vld [vmem:[#allocation4 + $0x438] sm:$0xff]
        %v1084 = vld [vmem:[#allocation4 + $0x440] sm:$0xff]
        %v1085 = vld [vmem:[#allocation4 + $0x448] sm:$0xff]
        %v1086 = vld [vmem:[#allocation4 + $0x450] sm:$0xff]
        %v1087 = vld [vmem:[#allocation4 + $0x458] sm:$0xff]
        %v1088 = vld [vmem:[#allocation4 + $0x460] sm:$0xff]
        %v1089 = vld [vmem:[#allocation4 + $0x468] sm:$0xff]
        %v1090 = vld [vmem:[#allocation4 + $0x470] sm:$0xff]
        %v1091 = vld [vmem:[#allocation4 + $0x478] sm:$0xff]
        %v1092 = vld [vmem:[#allocation4 + $0x480] sm:$0xff]
        %v1093 = vld [vmem:[#allocation4 + $0x488] sm:$0xff]
        %v1094 = vld [vmem:[#allocation4 + $0x490] sm:$0xff]
        %v1095 = vld [vmem:[#allocation4 + $0x498] sm:$0xff]
        %v1096 = vld [vmem:[#allocation4 + $0x4a0] sm:$0xff]
        %v1097 = vld [vmem:[#allocation4 + $0x4a8] sm:$0xff]
        %v1098 = vld [vmem:[#allocation4 + $0x4b0] sm:$0xff]
        %v1099 = vld [vmem:[#allocation4 + $0x4b8] sm:$0xff]
        %v1100 = vld [vmem:[#allocation4 + $0x4c0] sm:$0xff]
        %v1101 = vld [vmem:[#allocation4 + $0x4c8] sm:$0xff]
        %v1102 = vld [vmem:[#allocation4 + $0x4d0] sm:$0xff]
        %v1103 = vld [vmem:[#allocation4 + $0x4d8] sm:$0xff]
        %v1104 = vld [vmem:[#allocation4 + $0x4e0] sm:$0xff]
        %v1105 = vld [vmem:[#allocation4 + $0x4e8] sm:$0xff]
        %v1106 = vld [vmem:[#allocation4 + $0x4f0] sm:$0xff]
        %v1107 = vld [vmem:[#allocation4 + $0x4f8] sm:$0xff]
        %v1108 = vld [vmem:[#allocation4 + $0x500] sm:$0xff]
        %v1109 = vld [vmem:[#allocation4 + $0x508] sm:$0xff]
        %v1110 = vld [vmem:[#allocation4 + $0x510] sm:$0xff]
        %v1111 = vld [vmem:[#allocation4 + $0x518] sm:$0xff]
        %v1112 = vld [vmem:[#allocation4 + $0x520] sm:$0xff]
        %v1113 = vld [vmem:[#allocation4 + $0x528] sm:$0xff]
        %v1114 = vld [vmem:[#allocation4 + $0x530] sm:$0xff]
        %v1115 = vld [vmem:[#allocation4 + $0x538] sm:$0xff]
        %v1116 = vld [vmem:[#allocation4 + $0x540] sm:$0xff]
        %v1117 = vld [vmem:[#allocation4 + $0x548] sm:$0xff]
        %v1118 = vld [vmem:[#allocation4 + $0x550] sm:$0xff]
        %v1119 = vld [vmem:[#allocation4 + $0x558] sm:$0xff]
        %v1120 = vld [vmem:[#allocation4 + $0x560] sm:$0xff]
        %v1121 = vld [vmem:[#allocation4 + $0x568] sm:$0xff]
        %v1122 = vld [vmem:[#allocation4 + $0x570] sm:$0xff]
        %v1123 = vld [vmem:[#allocation4 + $0x578] sm:$0xff]
        %v1124 = vld [vmem:[#allocation4 + $0x580] sm:$0xff]
        %v1125 = vld [vmem:[#allocation4 + $0x588] sm:$0xff]
        %v1126 = vld [vmem:[#allocation4 + $0x590] sm:$0xff]
        %v1127 = vld [vmem:[#allocation4 + $0x598] sm:$0xff]
        %v1128 = vld [vmem:[#allocation4 + $0x5a0] sm:$0xff]
        %v1129 = vld [vmem:[#allocation4 + $0x5a8] sm:$0xff]
        %v1130 = vld [vmem:[#allocation4 + $0x5b0] sm:$0xff]
        %v1131 = vld [vmem:[#allocation4 + $0x5b8] sm:$0xff]
        %v1132 = vld [vmem:[#allocation4 + $0x5c0] sm:$0xff]
        %v1133 = vld [vmem:[#allocation4 + $0x5c8] sm:$0xff]
        %v1134 = vld [vmem:[#allocation4 + $0x5d0] sm:$0xff]
        %v1135 = vld [vmem:[#allocation4 + $0x5d8] sm:$0xff]
        %v1136 = vld [vmem:[#allocation4 + $0x5e0] sm:$0xff]
        %v1137 = vld [vmem:[#allocation4 + $0x5e8] sm:$0xff]
        %v1138 = vld [vmem:[#allocation4 + $0x5f0] sm:$0xff]
        %v1139 = vld [vmem:[#allocation4 + $0x5f8] sm:$0xff]
        %v1140 = vld [vmem:[#allocation4 + $0x600] sm:$0xff]
        %v1141 = vld [vmem:[#allocation4 + $0x608] sm:$0xff]
        %v1142 = vld [vmem:[#allocation4 + $0x610] sm:$0xff]
        %v1143 = vld [vmem:[#allocation4 + $0x618] sm:$0xff]
        %v1144 = vld [vmem:[#allocation4 + $0x620] sm:$0xff]
        %v1145 = vld [vmem:[#allocation4 + $0x628] sm:$0xff]
        %v1146 = vld [vmem:[#allocation4 + $0x630] sm:$0xff]
        %v1147 = vld [vmem:[#allocation4 + $0x638] sm:$0xff]
        %v1148 = vld [vmem:[#allocation4 + $0x640] sm:$0xff]
        %v1149 = vld [vmem:[#allocation4 + $0x648] sm:$0xff]
        %v1150 = vld [vmem:[#allocation4 + $0x650] sm:$0xff]
        %v1151 = vld [vmem:[#allocation4 + $0x658] sm:$0xff]
        %v1152 = vld [vmem:[#allocation4 + $0x660] sm:$0xff]
        %v1153 = vld [vmem:[#allocation4 + $0x668] sm:$0xff]
        %v1154 = vld [vmem:[#allocation4 + $0x670] sm:$0xff]
        %v1155 = vld [vmem:[#allocation4 + $0x678] sm:$0xff]
        %v1156 = vld [vmem:[#allocation4 + $0x680] sm:$0xff]
        %v1157 = vld [vmem:[#allocation4 + $0x688] sm:$0xff]
        %v1158 = vld [vmem:[#allocation4 + $0x690] sm:$0xff]
        %v1159 = vld [vmem:[#allocation4 + $0x698] sm:$0xff]
        %v1160 = vld [vmem:[#allocation4 + $0x6a0] sm:$0xff]
        %v1161 = vld [vmem:[#allocation4 + $0x6a8] sm:$0xff]
        %v1162 = vld [vmem:[#allocation4 + $0x6b0] sm:$0xff]
        %v1163 = vld [vmem:[#allocation4 + $0x6b8] sm:$0xff]
        %v1164 = vld [vmem:[#allocation4 + $0x6c0] sm:$0xff]
        %v1165 = vld [vmem:[#allocation4 + $0x6c8] sm:$0xff]
        %v1166 = vld [vmem:[#allocation4 + $0x6d0] sm:$0xff]
        %v1167 = vld [vmem:[#allocation4 + $0x6d8] sm:$0xff]
        %v1168 = vld [vmem:[#allocation4 + $0x6e0] sm:$0xff]
        %v1169 = vld [vmem:[#allocation4 + $0x6e8] sm:$0xff]
        %v1170 = vld [vmem:[#allocation4 + $0x6f0] sm:$0xff]
        %v1171 = vld [vmem:[#allocation4 + $0x6f8] sm:$0xff]
        %v1172 = vld [vmem:[#allocation4 + $0x700] sm:$0xff]
        %v1173 = vld [vmem:[#allocation4 + $0x708] sm:$0xff]
        %v1174 = vld [vmem:[#allocation4 + $0x710] sm:$0xff]
        %v1175 = vld [vmem:[#allocation4 + $0x718] sm:$0xff]
        %v1176 = vld [vmem:[#allocation4 + $0x720] sm:$0xff]
        %v1177 = vld [vmem:[#allocation4 + $0x728] sm:$0xff]
        %v1178 = vld [vmem:[#allocation4 + $0x730] sm:$0xff]
        %v1179 = vld [vmem:[#allocation4 + $0x738] sm:$0xff]
        %v1180 = vld [vmem:[#allocation4 + $0x740] sm:$0xff]
        %v1181 = vld [vmem:[#allocation4 + $0x748] sm:$0xff]
        %v1182 = vld [vmem:[#allocation4 + $0x750] sm:$0xff]
        %v1183 = vld [vmem:[#allocation4 + $0x758] sm:$0xff]
        %v1184 = vld [vmem:[#allocation4 + $0x760] sm:$0xff]
        %v1185 = vld [vmem:[#allocation4 + $0x768] sm:$0xff]
        %v1186 = vld [vmem:[#allocation4 + $0x770] sm:$0xff]
        %v1187 = vld [vmem:[#allocation4 + $0x778] sm:$0xff]
        %v1188 = vld [vmem:[#allocation4 + $0x780] sm:$0xff]
        %v1189 = vld [vmem:[#allocation4 + $0x788] sm:$0xff]
        %v1190 = vld [vmem:[#allocation4 + $0x790] sm:$0xff]
        %v1191 = vld [vmem:[#allocation4 + $0x798] sm:$0xff]
        %v1192 = vld [vmem:[#allocation4 + $0x7a0] sm:$0xff]
        %v1193 = vld [vmem:[#allocation4 + $0x7a8] sm:$0xff]
        %v1194 = vld [vmem:[#allocation4 + $0x7b0] sm:$0xff]
        %v1195 = vld [vmem:[#allocation4 + $0x7b8] sm:$0xff]
        %v1196 = vld [vmem:[#allocation4 + $0x7c0] sm:$0xff]
        %v1197 = vld [vmem:[#allocation4 + $0x7c8] sm:$0xff]
        %v1198 = vld [vmem:[#allocation4 + $0x7d0] sm:$0xff]
        %v1199 = vld [vmem:[#allocation4 + $0x7d8] sm:$0xff]
        %v1200 = vld [vmem:[#allocation4 + $0x7e0] sm:$0xff]
        %v1201 = vld [vmem:[#allocation4 + $0x7e8] sm:$0xff]
        %v1202 = vld [vmem:[#allocation4 + $0x7f0] sm:$0xff]
        %v1203 = vld [vmem:[#allocation4 + $0x7f8] sm:$0xff]
        %v1204 = vld [vmem:[%s6 + $0x8] sm:$0xf]
        %v1205 = vpack.c.bf16 %v940, %v940
        %v1206 = vpack.c.bf16 %v941, %v941
        %v1207 = vpack.c.bf16 %v942, %v942
        %v1208 = vpack.c.bf16 %v943, %v943
        %v1209 = vpack.c.bf16 %v944, %v944
        %v1210 = vpack.c.bf16 %v945, %v945
        %v1211 = vpack.c.bf16 %v946, %v946
        %v1212 = vpack.c.bf16 %v947, %v947
        %v1214 = vlaneseq
        %v1215 = vshrl.u32 %v1214, 7
        %v1216 = vsub.s32 0, %v1215
        %v1217 = vrot.slane %v1204, %v1216
        %v1218 = vlaneseq
        %v1219 = vshrl.u32 %v1218, 7
        %v1220 = vsub.s32 1, %v1219
        %v1221 = vrot.slane %v1204, %v1220
        %v1222 = vlaneseq
        %v1223 = vshrl.u32 %v1222, 7
        %v1224 = vsub.s32 2, %v1223
        %v1225 = vrot.slane %v1204, %v1224
        %v1226 = vlaneseq
        %v1227 = vshrl.u32 %v1226, 7
        %v1228 = vsub.s32 3, %v1227
        %v1229 = vrot.slane %v1204, %v1228
        %v1490 = vunpack.c.l.b16 %v948
        %v1491 = vunpack.c.h.b16 %v948
        %v1492 = vunpack.c.l.b16 %v949
        %v1493 = vunpack.c.h.b16 %v949
        %v1494 = vunpack.c.l.b16 %v950
        %v1495 = vunpack.c.h.b16 %v950
        %v1496 = vunpack.c.l.b16 %v951
        %v1497 = vunpack.c.h.b16 %v951
        %v1498 = vunpack.c.l.b16 %v952
        %v1499 = vunpack.c.h.b16 %v952
        %v1500 = vunpack.c.l.b16 %v953
        %v1501 = vunpack.c.h.b16 %v953
        %v1502 = vunpack.c.l.b16 %v954
        %v1503 = vunpack.c.h.b16 %v954
        %v1504 = vunpack.c.l.b16 %v955
        %v1505 = vunpack.c.h.b16 %v955
        %v1506 = vunpack.c.l.b16 %v956
        %v1507 = vunpack.c.h.b16 %v956
        %v1508 = vunpack.c.l.b16 %v957
        %v1509 = vunpack.c.h.b16 %v957
        %v1510 = vunpack.c.l.b16 %v958
        %v1511 = vunpack.c.h.b16 %v958
        %v1512 = vunpack.c.l.b16 %v959
        %v1513 = vunpack.c.h.b16 %v959
        %v1514 = vunpack.c.l.b16 %v960
        %v1515 = vunpack.c.h.b16 %v960
        %v1516 = vunpack.c.l.b16 %v961
        %v1517 = vunpack.c.h.b16 %v961
        %v1518 = vunpack.c.l.b16 %v962
        %v1519 = vunpack.c.h.b16 %v962
        %v1520 = vunpack.c.l.b16 %v963
        %v1521 = vunpack.c.h.b16 %v963
        %v1522 = vunpack.c.l.b16 %v964
        %v1523 = vunpack.c.h.b16 %v964
        %v1524 = vunpack.c.l.b16 %v965
        %v1525 = vunpack.c.h.b16 %v965
        %v1526 = vunpack.c.l.b16 %v966
        %v1527 = vunpack.c.h.b16 %v966
        %v1528 = vunpack.c.l.b16 %v967
        %v1529 = vunpack.c.h.b16 %v967
        %v1530 = vunpack.c.l.b16 %v968
        %v1531 = vunpack.c.h.b16 %v968
        %v1532 = vunpack.c.l.b16 %v969
        %v1533 = vunpack.c.h.b16 %v969
        %v1534 = vunpack.c.l.b16 %v970
        %v1535 = vunpack.c.h.b16 %v970
        %v1536 = vunpack.c.l.b16 %v971
        %v1537 = vunpack.c.h.b16 %v971
        %v1538 = vunpack.c.l.b16 %v972
        %v1539 = vunpack.c.h.b16 %v972
        %v1540 = vunpack.c.l.b16 %v973
        %v1541 = vunpack.c.h.b16 %v973
        %v1542 = vunpack.c.l.b16 %v974
        %v1543 = vunpack.c.h.b16 %v974
        %v1544 = vunpack.c.l.b16 %v975
        %v1545 = vunpack.c.h.b16 %v975
        %v1546 = vunpack.c.l.b16 %v976
        %v1547 = vunpack.c.h.b16 %v976
        %v1548 = vunpack.c.l.b16 %v977
        %v1549 = vunpack.c.h.b16 %v977
        %v1550 = vunpack.c.l.b16 %v978
        %v1551 = vunpack.c.h.b16 %v978
        %v1552 = vunpack.c.l.b16 %v979
        %v1553 = vunpack.c.h.b16 %v979
        %v1554 = vunpack.c.l.b16 %v980
        %v1555 = vunpack.c.h.b16 %v980
        %v1556 = vunpack.c.l.b16 %v981
        %v1557 = vunpack.c.h.b16 %v981
        %v1558 = vunpack.c.l.b16 %v982
        %v1559 = vunpack.c.h.b16 %v982
        %v1560 = vunpack.c.l.b16 %v983
        %v1561 = vunpack.c.h.b16 %v983
        %v1562 = vunpack.c.l.b16 %v984
        %v1563 = vunpack.c.h.b16 %v984
        %v1564 = vunpack.c.l.b16 %v985
        %v1565 = vunpack.c.h.b16 %v985
        %v1566 = vunpack.c.l.b16 %v986
        %v1567 = vunpack.c.h.b16 %v986
        %v1568 = vunpack.c.l.b16 %v987
        %v1569 = vunpack.c.h.b16 %v987
        %v1570 = vunpack.c.l.b16 %v988
        %v1571 = vunpack.c.h.b16 %v988
        %v1572 = vunpack.c.l.b16 %v989
        %v1573 = vunpack.c.h.b16 %v989
        %v1574 = vunpack.c.l.b16 %v990
        %v1575 = vunpack.c.h.b16 %v990
        %v1576 = vunpack.c.l.b16 %v991
        %v1577 = vunpack.c.h.b16 %v991
        %v1578 = vunpack.c.l.b16 %v992
        %v1579 = vunpack.c.h.b16 %v992
        %v1580 = vunpack.c.l.b16 %v993
        %v1581 = vunpack.c.h.b16 %v993
        %v1582 = vunpack.c.l.b16 %v994
        %v1583 = vunpack.c.h.b16 %v994
        %v1584 = vunpack.c.l.b16 %v995
        %v1585 = vunpack.c.h.b16 %v995
        %v1586 = vunpack.c.l.b16 %v996
        %v1587 = vunpack.c.h.b16 %v996
        %v1588 = vunpack.c.l.b16 %v997
        %v1589 = vunpack.c.h.b16 %v997
        %v1590 = vunpack.c.l.b16 %v998
        %v1591 = vunpack.c.h.b16 %v998
        %v1592 = vunpack.c.l.b16 %v999
        %v1593 = vunpack.c.h.b16 %v999
        %v1594 = vunpack.c.l.b16 %v1000
        %v1595 = vunpack.c.h.b16 %v1000
        %v1596 = vunpack.c.l.b16 %v1001
        %v1597 = vunpack.c.h.b16 %v1001
        %v1598 = vunpack.c.l.b16 %v1002
        %v1599 = vunpack.c.h.b16 %v1002
        %v1600 = vunpack.c.l.b16 %v1003
        %v1601 = vunpack.c.h.b16 %v1003
        %v1602 = vunpack.c.l.b16 %v1004
        %v1603 = vunpack.c.h.b16 %v1004
        %v1604 = vunpack.c.l.b16 %v1005
        %v1605 = vunpack.c.h.b16 %v1005
        %v1606 = vunpack.c.l.b16 %v1006
        %v1607 = vunpack.c.h.b16 %v1006
        %v1608 = vunpack.c.l.b16 %v1007
        %v1609 = vunpack.c.h.b16 %v1007
        %v1610 = vunpack.c.l.b16 %v1008
        %v1611 = vunpack.c.h.b16 %v1008
        %v1612 = vunpack.c.l.b16 %v1009
        %v1613 = vunpack.c.h.b16 %v1009
        %v1614 = vunpack.c.l.b16 %v1010
        %v1615 = vunpack.c.h.b16 %v1010
        %v1616 = vunpack.c.l.b16 %v1011
        %v1617 = vunpack.c.h.b16 %v1011
        %v1618 = vunpack.c.l.b16 %v1012
        %v1619 = vunpack.c.h.b16 %v1012
        %v1620 = vunpack.c.l.b16 %v1013
        %v1621 = vunpack.c.h.b16 %v1013
        %v1622 = vunpack.c.l.b16 %v1014
        %v1623 = vunpack.c.h.b16 %v1014
        %v1624 = vunpack.c.l.b16 %v1015
        %v1625 = vunpack.c.h.b16 %v1015
        %v1626 = vunpack.c.l.b16 %v1016
        %v1627 = vunpack.c.h.b16 %v1016
        %v1628 = vunpack.c.l.b16 %v1017
        %v1629 = vunpack.c.h.b16 %v1017
        %v1630 = vunpack.c.l.b16 %v1018
        %v1631 = vunpack.c.h.b16 %v1018
        %v1632 = vunpack.c.l.b16 %v1019
        %v1633 = vunpack.c.h.b16 %v1019
        %v1634 = vunpack.c.l.b16 %v1020
        %v1635 = vunpack.c.h.b16 %v1020
        %v1636 = vunpack.c.l.b16 %v1021
        %v1637 = vunpack.c.h.b16 %v1021
        %v1638 = vunpack.c.l.b16 %v1022
        %v1639 = vunpack.c.h.b16 %v1022
        %v1640 = vunpack.c.l.b16 %v1023
        %v1641 = vunpack.c.h.b16 %v1023
        %v1642 = vunpack.c.l.b16 %v1024
        %v1643 = vunpack.c.h.b16 %v1024
        %v1644 = vunpack.c.l.b16 %v1025
        %v1645 = vunpack.c.h.b16 %v1025
        %v1646 = vunpack.c.l.b16 %v1026
        %v1647 = vunpack.c.h.b16 %v1026
        %v1648 = vunpack.c.l.b16 %v1027
        %v1649 = vunpack.c.h.b16 %v1027
        %v1650 = vunpack.c.l.b16 %v1028
        %v1651 = vunpack.c.h.b16 %v1028
        %v1652 = vunpack.c.l.b16 %v1029
        %v1653 = vunpack.c.h.b16 %v1029
        %v1654 = vunpack.c.l.b16 %v1030
        %v1655 = vunpack.c.h.b16 %v1030
        %v1656 = vunpack.c.l.b16 %v1031
        %v1657 = vunpack.c.h.b16 %v1031
        %v1658 = vunpack.c.l.b16 %v1032
        %v1659 = vunpack.c.h.b16 %v1032
        %v1660 = vunpack.c.l.b16 %v1033
        %v1661 = vunpack.c.h.b16 %v1033
        %v1662 = vunpack.c.l.b16 %v1034
        %v1663 = vunpack.c.h.b16 %v1034
        %v1664 = vunpack.c.l.b16 %v1035
        %v1665 = vunpack.c.h.b16 %v1035
        %v1666 = vunpack.c.l.b16 %v1036
        %v1667 = vunpack.c.h.b16 %v1036
        %v1668 = vunpack.c.l.b16 %v1037
        %v1669 = vunpack.c.h.b16 %v1037
        %v1670 = vunpack.c.l.b16 %v1038
        %v1671 = vunpack.c.h.b16 %v1038
        %v1672 = vunpack.c.l.b16 %v1039
        %v1673 = vunpack.c.h.b16 %v1039
        %v1674 = vunpack.c.l.b16 %v1040
        %v1675 = vunpack.c.h.b16 %v1040
        %v1676 = vunpack.c.l.b16 %v1041
        %v1677 = vunpack.c.h.b16 %v1041
        %v1678 = vunpack.c.l.b16 %v1042
        %v1679 = vunpack.c.h.b16 %v1042
        %v1680 = vunpack.c.l.b16 %v1043
        %v1681 = vunpack.c.h.b16 %v1043
        %v1682 = vunpack.c.l.b16 %v1044
        %v1683 = vunpack.c.h.b16 %v1044
        %v1684 = vunpack.c.l.b16 %v1045
        %v1685 = vunpack.c.h.b16 %v1045
        %v1686 = vunpack.c.l.b16 %v1046
        %v1687 = vunpack.c.h.b16 %v1046
        %v1688 = vunpack.c.l.b16 %v1047
        %v1689 = vunpack.c.h.b16 %v1047
        %v1690 = vunpack.c.l.b16 %v1048
        %v1691 = vunpack.c.h.b16 %v1048
        %v1692 = vunpack.c.l.b16 %v1049
        %v1693 = vunpack.c.h.b16 %v1049
        %v1694 = vunpack.c.l.b16 %v1050
        %v1695 = vunpack.c.h.b16 %v1050
        %v1696 = vunpack.c.l.b16 %v1051
        %v1697 = vunpack.c.h.b16 %v1051
        %v1698 = vunpack.c.l.b16 %v1052
        %v1699 = vunpack.c.h.b16 %v1052
        %v1700 = vunpack.c.l.b16 %v1053
        %v1701 = vunpack.c.h.b16 %v1053
        %v1702 = vunpack.c.l.b16 %v1054
        %v1703 = vunpack.c.h.b16 %v1054
        %v1704 = vunpack.c.l.b16 %v1055
        %v1705 = vunpack.c.h.b16 %v1055
        %v1706 = vunpack.c.l.b16 %v1056
        %v1707 = vunpack.c.h.b16 %v1056
        %v1708 = vunpack.c.l.b16 %v1057
        %v1709 = vunpack.c.h.b16 %v1057
        %v1710 = vunpack.c.l.b16 %v1058
        %v1711 = vunpack.c.h.b16 %v1058
        %v1712 = vunpack.c.l.b16 %v1059
        %v1713 = vunpack.c.h.b16 %v1059
        %v1714 = vunpack.c.l.b16 %v1060
        %v1715 = vunpack.c.h.b16 %v1060
        %v1716 = vunpack.c.l.b16 %v1061
        %v1717 = vunpack.c.h.b16 %v1061
        %v1718 = vunpack.c.l.b16 %v1062
        %v1719 = vunpack.c.h.b16 %v1062
        %v1720 = vunpack.c.l.b16 %v1063
        %v1721 = vunpack.c.h.b16 %v1063
        %v1722 = vunpack.c.l.b16 %v1064
        %v1723 = vunpack.c.h.b16 %v1064
        %v1724 = vunpack.c.l.b16 %v1065
        %v1725 = vunpack.c.h.b16 %v1065
        %v1726 = vunpack.c.l.b16 %v1066
        %v1727 = vunpack.c.h.b16 %v1066
        %v1728 = vunpack.c.l.b16 %v1067
        %v1729 = vunpack.c.h.b16 %v1067
        %v1730 = vunpack.c.l.b16 %v1068
        %v1731 = vunpack.c.h.b16 %v1068
        %v1732 = vunpack.c.l.b16 %v1069
        %v1733 = vunpack.c.h.b16 %v1069
        %v1734 = vunpack.c.l.b16 %v1070
        %v1735 = vunpack.c.h.b16 %v1070
        %v1736 = vunpack.c.l.b16 %v1071
        %v1737 = vunpack.c.h.b16 %v1071
        %v1738 = vunpack.c.l.b16 %v1072
        %v1739 = vunpack.c.h.b16 %v1072
        %v1740 = vunpack.c.l.b16 %v1073
        %v1741 = vunpack.c.h.b16 %v1073
        %v1742 = vunpack.c.l.b16 %v1074
        %v1743 = vunpack.c.h.b16 %v1074
        %v1744 = vunpack.c.l.b16 %v1075
        %v1745 = vunpack.c.h.b16 %v1075
        %v1746 = vunpack.c.l.b16 %v1076
        %v1747 = vunpack.c.h.b16 %v1076
        %v1748 = vunpack.c.l.b16 %v1077
        %v1749 = vunpack.c.h.b16 %v1077
        %v1750 = vunpack.c.l.b16 %v1078
        %v1751 = vunpack.c.h.b16 %v1078
        %v1752 = vunpack.c.l.b16 %v1079
        %v1753 = vunpack.c.h.b16 %v1079
        %v1754 = vunpack.c.l.b16 %v1080
        %v1755 = vunpack.c.h.b16 %v1080
        %v1756 = vunpack.c.l.b16 %v1081
        %v1757 = vunpack.c.h.b16 %v1081
        %v1758 = vunpack.c.l.b16 %v1082
        %v1759 = vunpack.c.h.b16 %v1082
        %v1760 = vunpack.c.l.b16 %v1083
        %v1761 = vunpack.c.h.b16 %v1083
        %v1762 = vunpack.c.l.b16 %v1084
        %v1763 = vunpack.c.h.b16 %v1084
        %v1764 = vunpack.c.l.b16 %v1085
        %v1765 = vunpack.c.h.b16 %v1085
        %v1766 = vunpack.c.l.b16 %v1086
        %v1767 = vunpack.c.h.b16 %v1086
        %v1768 = vunpack.c.l.b16 %v1087
        %v1769 = vunpack.c.h.b16 %v1087
        %v1770 = vunpack.c.l.b16 %v1088
        %v1771 = vunpack.c.h.b16 %v1088
        %v1772 = vunpack.c.l.b16 %v1089
        %v1773 = vunpack.c.h.b16 %v1089
        %v1774 = vunpack.c.l.b16 %v1090
        %v1775 = vunpack.c.h.b16 %v1090
        %v1776 = vunpack.c.l.b16 %v1091
        %v1777 = vunpack.c.h.b16 %v1091
        %v1778 = vunpack.c.l.b16 %v1092
        %v1779 = vunpack.c.h.b16 %v1092
        %v1780 = vunpack.c.l.b16 %v1093
        %v1781 = vunpack.c.h.b16 %v1093
        %v1782 = vunpack.c.l.b16 %v1094
        %v1783 = vunpack.c.h.b16 %v1094
        %v1784 = vunpack.c.l.b16 %v1095
        %v1785 = vunpack.c.h.b16 %v1095
        %v1786 = vunpack.c.l.b16 %v1096
        %v1787 = vunpack.c.h.b16 %v1096
        %v1788 = vunpack.c.l.b16 %v1097
        %v1789 = vunpack.c.h.b16 %v1097
        %v1790 = vunpack.c.l.b16 %v1098
        %v1791 = vunpack.c.h.b16 %v1098
        %v1792 = vunpack.c.l.b16 %v1099
        %v1793 = vunpack.c.h.b16 %v1099
        %v1794 = vunpack.c.l.b16 %v1100
        %v1795 = vunpack.c.h.b16 %v1100
        %v1796 = vunpack.c.l.b16 %v1101
        %v1797 = vunpack.c.h.b16 %v1101
        %v1798 = vunpack.c.l.b16 %v1102
        %v1799 = vunpack.c.h.b16 %v1102
        %v1800 = vunpack.c.l.b16 %v1103
        %v1801 = vunpack.c.h.b16 %v1103
        %v1802 = vunpack.c.l.b16 %v1104
        %v1803 = vunpack.c.h.b16 %v1104
        %v1804 = vunpack.c.l.b16 %v1105
        %v1805 = vunpack.c.h.b16 %v1105
        %v1806 = vunpack.c.l.b16 %v1106
        %v1807 = vunpack.c.h.b16 %v1106
        %v1808 = vunpack.c.l.b16 %v1107
        %v1809 = vunpack.c.h.b16 %v1107
        %v1810 = vunpack.c.l.b16 %v1108
        %v1811 = vunpack.c.h.b16 %v1108
        %v1812 = vunpack.c.l.b16 %v1109
        %v1813 = vunpack.c.h.b16 %v1109
        %v1814 = vunpack.c.l.b16 %v1110
        %v1815 = vunpack.c.h.b16 %v1110
        %v1816 = vunpack.c.l.b16 %v1111
        %v1817 = vunpack.c.h.b16 %v1111
        %v1818 = vunpack.c.l.b16 %v1112
        %v1819 = vunpack.c.h.b16 %v1112
        %v1820 = vunpack.c.l.b16 %v1113
        %v1821 = vunpack.c.h.b16 %v1113
        %v1822 = vunpack.c.l.b16 %v1114
        %v1823 = vunpack.c.h.b16 %v1114
        %v1824 = vunpack.c.l.b16 %v1115
        %v1825 = vunpack.c.h.b16 %v1115
        %v1826 = vunpack.c.l.b16 %v1116
        %v1827 = vunpack.c.h.b16 %v1116
        %v1828 = vunpack.c.l.b16 %v1117
        %v1829 = vunpack.c.h.b16 %v1117
        %v1830 = vunpack.c.l.b16 %v1118
        %v1831 = vunpack.c.h.b16 %v1118
        %v1832 = vunpack.c.l.b16 %v1119
        %v1833 = vunpack.c.h.b16 %v1119
        %v1834 = vunpack.c.l.b16 %v1120
        %v1835 = vunpack.c.h.b16 %v1120
        %v1836 = vunpack.c.l.b16 %v1121
        %v1837 = vunpack.c.h.b16 %v1121
        %v1838 = vunpack.c.l.b16 %v1122
        %v1839 = vunpack.c.h.b16 %v1122
        %v1840 = vunpack.c.l.b16 %v1123
        %v1841 = vunpack.c.h.b16 %v1123
        %v1842 = vunpack.c.l.b16 %v1124
        %v1843 = vunpack.c.h.b16 %v1124
        %v1844 = vunpack.c.l.b16 %v1125
        %v1845 = vunpack.c.h.b16 %v1125
        %v1846 = vunpack.c.l.b16 %v1126
        %v1847 = vunpack.c.h.b16 %v1126
        %v1848 = vunpack.c.l.b16 %v1127
        %v1849 = vunpack.c.h.b16 %v1127
        %v1850 = vunpack.c.l.b16 %v1128
        %v1851 = vunpack.c.h.b16 %v1128
        %v1852 = vunpack.c.l.b16 %v1129
        %v1853 = vunpack.c.h.b16 %v1129
        %v1854 = vunpack.c.l.b16 %v1130
        %v1855 = vunpack.c.h.b16 %v1130
        %v1856 = vunpack.c.l.b16 %v1131
        %v1857 = vunpack.c.h.b16 %v1131
        %v1858 = vunpack.c.l.b16 %v1132
        %v1859 = vunpack.c.h.b16 %v1132
        %v1860 = vunpack.c.l.b16 %v1133
        %v1861 = vunpack.c.h.b16 %v1133
        %v1862 = vunpack.c.l.b16 %v1134
        %v1863 = vunpack.c.h.b16 %v1134
        %v1864 = vunpack.c.l.b16 %v1135
        %v1865 = vunpack.c.h.b16 %v1135
        %v1866 = vunpack.c.l.b16 %v1136
        %v1867 = vunpack.c.h.b16 %v1136
        %v1868 = vunpack.c.l.b16 %v1137
        %v1869 = vunpack.c.h.b16 %v1137
        %v1870 = vunpack.c.l.b16 %v1138
        %v1871 = vunpack.c.h.b16 %v1138
        %v1872 = vunpack.c.l.b16 %v1139
        %v1873 = vunpack.c.h.b16 %v1139
        %v1874 = vunpack.c.l.b16 %v1140
        %v1875 = vunpack.c.h.b16 %v1140
        %v1876 = vunpack.c.l.b16 %v1141
        %v1877 = vunpack.c.h.b16 %v1141
        %v1878 = vunpack.c.l.b16 %v1142
        %v1879 = vunpack.c.h.b16 %v1142
        %v1880 = vunpack.c.l.b16 %v1143
        %v1881 = vunpack.c.h.b16 %v1143
        %v1882 = vunpack.c.l.b16 %v1144
        %v1883 = vunpack.c.h.b16 %v1144
        %v1884 = vunpack.c.l.b16 %v1145
        %v1885 = vunpack.c.h.b16 %v1145
        %v1886 = vunpack.c.l.b16 %v1146
        %v1887 = vunpack.c.h.b16 %v1146
        %v1888 = vunpack.c.l.b16 %v1147
        %v1889 = vunpack.c.h.b16 %v1147
        %v1890 = vunpack.c.l.b16 %v1148
        %v1891 = vunpack.c.h.b16 %v1148
        %v1892 = vunpack.c.l.b16 %v1149
        %v1893 = vunpack.c.h.b16 %v1149
        %v1894 = vunpack.c.l.b16 %v1150
        %v1895 = vunpack.c.h.b16 %v1150
        %v1896 = vunpack.c.l.b16 %v1151
        %v1897 = vunpack.c.h.b16 %v1151
        %v1898 = vunpack.c.l.b16 %v1152
        %v1899 = vunpack.c.h.b16 %v1152
        %v1900 = vunpack.c.l.b16 %v1153
        %v1901 = vunpack.c.h.b16 %v1153
        %v1902 = vunpack.c.l.b16 %v1154
        %v1903 = vunpack.c.h.b16 %v1154
        %v1904 = vunpack.c.l.b16 %v1155
        %v1905 = vunpack.c.h.b16 %v1155
        %v1906 = vunpack.c.l.b16 %v1156
        %v1907 = vunpack.c.h.b16 %v1156
        %v1908 = vunpack.c.l.b16 %v1157
        %v1909 = vunpack.c.h.b16 %v1157
        %v1910 = vunpack.c.l.b16 %v1158
        %v1911 = vunpack.c.h.b16 %v1158
        %v1912 = vunpack.c.l.b16 %v1159
        %v1913 = vunpack.c.h.b16 %v1159
        %v1914 = vunpack.c.l.b16 %v1160
        %v1915 = vunpack.c.h.b16 %v1160
        %v1916 = vunpack.c.l.b16 %v1161
        %v1917 = vunpack.c.h.b16 %v1161
        %v1918 = vunpack.c.l.b16 %v1162
        %v1919 = vunpack.c.h.b16 %v1162
        %v1920 = vunpack.c.l.b16 %v1163
        %v1921 = vunpack.c.h.b16 %v1163
        %v1922 = vunpack.c.l.b16 %v1164
        %v1923 = vunpack.c.h.b16 %v1164
        %v1924 = vunpack.c.l.b16 %v1165
        %v1925 = vunpack.c.h.b16 %v1165
        %v1926 = vunpack.c.l.b16 %v1166
        %v1927 = vunpack.c.h.b16 %v1166
        %v1928 = vunpack.c.l.b16 %v1167
        %v1929 = vunpack.c.h.b16 %v1167
        %v1930 = vunpack.c.l.b16 %v1168
        %v1931 = vunpack.c.h.b16 %v1168
        %v1932 = vunpack.c.l.b16 %v1169
        %v1933 = vunpack.c.h.b16 %v1169
        %v1934 = vunpack.c.l.b16 %v1170
        %v1935 = vunpack.c.h.b16 %v1170
        %v1936 = vunpack.c.l.b16 %v1171
        %v1937 = vunpack.c.h.b16 %v1171
        %v1938 = vunpack.c.l.b16 %v1172
        %v1939 = vunpack.c.h.b16 %v1172
        %v1940 = vunpack.c.l.b16 %v1173
        %v1941 = vunpack.c.h.b16 %v1173
        %v1942 = vunpack.c.l.b16 %v1174
        %v1943 = vunpack.c.h.b16 %v1174
        %v1944 = vunpack.c.l.b16 %v1175
        %v1945 = vunpack.c.h.b16 %v1175
        %v1946 = vunpack.c.l.b16 %v1176
        %v1947 = vunpack.c.h.b16 %v1176
        %v1948 = vunpack.c.l.b16 %v1177
        %v1949 = vunpack.c.h.b16 %v1177
        %v1950 = vunpack.c.l.b16 %v1178
        %v1951 = vunpack.c.h.b16 %v1178
        %v1952 = vunpack.c.l.b16 %v1179
        %v1953 = vunpack.c.h.b16 %v1179
        %v1954 = vunpack.c.l.b16 %v1180
        %v1955 = vunpack.c.h.b16 %v1180
        %v1956 = vunpack.c.l.b16 %v1181
        %v1957 = vunpack.c.h.b16 %v1181
        %v1958 = vunpack.c.l.b16 %v1182
        %v1959 = vunpack.c.h.b16 %v1182
        %v1960 = vunpack.c.l.b16 %v1183
        %v1961 = vunpack.c.h.b16 %v1183
        %v1962 = vunpack.c.l.b16 %v1184
        %v1963 = vunpack.c.h.b16 %v1184
        %v1964 = vunpack.c.l.b16 %v1185
        %v1965 = vunpack.c.h.b16 %v1185
        %v1966 = vunpack.c.l.b16 %v1186
        %v1967 = vunpack.c.h.b16 %v1186
        %v1968 = vunpack.c.l.b16 %v1187
        %v1969 = vunpack.c.h.b16 %v1187
        %v1970 = vunpack.c.l.b16 %v1188
        %v1971 = vunpack.c.h.b16 %v1188
        %v1972 = vunpack.c.l.b16 %v1189
        %v1973 = vunpack.c.h.b16 %v1189
        %v1974 = vunpack.c.l.b16 %v1190
        %v1975 = vunpack.c.h.b16 %v1190
        %v1976 = vunpack.c.l.b16 %v1191
        %v1977 = vunpack.c.h.b16 %v1191
        %v1978 = vunpack.c.l.b16 %v1192
        %v1979 = vunpack.c.h.b16 %v1192
        %v1980 = vunpack.c.l.b16 %v1193
        %v1981 = vunpack.c.h.b16 %v1193
        %v1982 = vunpack.c.l.b16 %v1194
        %v1983 = vunpack.c.h.b16 %v1194
        %v1984 = vunpack.c.l.b16 %v1195
        %v1985 = vunpack.c.h.b16 %v1195
        %v1986 = vunpack.c.l.b16 %v1196
        %v1987 = vunpack.c.h.b16 %v1196
        %v1988 = vunpack.c.l.b16 %v1197
        %v1989 = vunpack.c.h.b16 %v1197
        %v1990 = vunpack.c.l.b16 %v1198
        %v1991 = vunpack.c.h.b16 %v1198
        %v1992 = vunpack.c.l.b16 %v1199
        %v1993 = vunpack.c.h.b16 %v1199
        %v1994 = vunpack.c.l.b16 %v1200
        %v1995 = vunpack.c.h.b16 %v1200
        %v1996 = vunpack.c.l.b16 %v1201
        %v1997 = vunpack.c.h.b16 %v1201
        %v1998 = vunpack.c.l.b16 %v1202
        %v1999 = vunpack.c.h.b16 %v1202
        %v2000 = vunpack.c.l.b16 %v1203
        %v2001 = vunpack.c.h.b16 %v1203
        %v2002 = vpack.c.b16 %v1494, %v1490
        %v2003 = vpack.c.b16 %v1495, %v1491
        %v2004 = vpack.c.b16 %v1496, %v1492
        %v2005 = vpack.c.b16 %v1497, %v1493
        %v2006 = vpack.c.b16 %v1502, %v1498
        %v2007 = vpack.c.b16 %v1503, %v1499
        %v2008 = vpack.c.b16 %v1504, %v1500
        %v2009 = vpack.c.b16 %v1505, %v1501
        %v2010 = vpack.c.b16 %v1510, %v1506
        %v2011 = vpack.c.b16 %v1511, %v1507
        %v2012 = vpack.c.b16 %v1512, %v1508
        %v2013 = vpack.c.b16 %v1513, %v1509
        %v2014 = vpack.c.b16 %v1518, %v1514
        %v2015 = vpack.c.b16 %v1519, %v1515
        %v2016 = vpack.c.b16 %v1520, %v1516
        %v2017 = vpack.c.b16 %v1521, %v1517
        %v2018 = vpack.c.b16 %v1526, %v1522
        %v2019 = vpack.c.b16 %v1527, %v1523
        %v2020 = vpack.c.b16 %v1528, %v1524
        %v2021 = vpack.c.b16 %v1529, %v1525
        %v2022 = vpack.c.b16 %v1534, %v1530
        %v2023 = vpack.c.b16 %v1535, %v1531
        %v2024 = vpack.c.b16 %v1536, %v1532
        %v2025 = vpack.c.b16 %v1537, %v1533
        %v2026 = vpack.c.b16 %v1542, %v1538
        %v2027 = vpack.c.b16 %v1543, %v1539
        %v2028 = vpack.c.b16 %v1544, %v1540
        %v2029 = vpack.c.b16 %v1545, %v1541
        %v2030 = vpack.c.b16 %v1550, %v1546
        %v2031 = vpack.c.b16 %v1551, %v1547
        %v2032 = vpack.c.b16 %v1552, %v1548
        %v2033 = vpack.c.b16 %v1553, %v1549
        %v2034 = vpack.c.b16 %v1558, %v1554
        %v2035 = vpack.c.b16 %v1559, %v1555
        %v2036 = vpack.c.b16 %v1560, %v1556
        %v2037 = vpack.c.b16 %v1561, %v1557
        %v2038 = vpack.c.b16 %v1566, %v1562
        %v2039 = vpack.c.b16 %v1567, %v1563
        %v2040 = vpack.c.b16 %v1568, %v1564
        %v2041 = vpack.c.b16 %v1569, %v1565
        %v2042 = vpack.c.b16 %v1574, %v1570
        %v2043 = vpack.c.b16 %v1575, %v1571
        %v2044 = vpack.c.b16 %v1576, %v1572
        %v2045 = vpack.c.b16 %v1577, %v1573
        %v2046 = vpack.c.b16 %v1582, %v1578
        %v2047 = vpack.c.b16 %v1583, %v1579
        %v2048 = vpack.c.b16 %v1584, %v1580
        %v2049 = vpack.c.b16 %v1585, %v1581
        %v2050 = vpack.c.b16 %v1590, %v1586
        %v2051 = vpack.c.b16 %v1591, %v1587
        %v2052 = vpack.c.b16 %v1592, %v1588
        %v2053 = vpack.c.b16 %v1593, %v1589
        %v2054 = vpack.c.b16 %v1598, %v1594
        %v2055 = vpack.c.b16 %v1599, %v1595
        %v2056 = vpack.c.b16 %v1600, %v1596
        %v2057 = vpack.c.b16 %v1601, %v1597
        %v2058 = vpack.c.b16 %v1606, %v1602
        %v2059 = vpack.c.b16 %v1607, %v1603
        %v2060 = vpack.c.b16 %v1608, %v1604
        %v2061 = vpack.c.b16 %v1609, %v1605
        %v2062 = vpack.c.b16 %v1614, %v1610
        %v2063 = vpack.c.b16 %v1615, %v1611
        %v2064 = vpack.c.b16 %v1616, %v1612
        %v2065 = vpack.c.b16 %v1617, %v1613
        %v2066 = vpack.c.b16 %v1622, %v1618
        %v2067 = vpack.c.b16 %v1623, %v1619
        %v2068 = vpack.c.b16 %v1624, %v1620
        %v2069 = vpack.c.b16 %v1625, %v1621
        %v2070 = vpack.c.b16 %v1630, %v1626
        %v2071 = vpack.c.b16 %v1631, %v1627
        %v2072 = vpack.c.b16 %v1632, %v1628
        %v2073 = vpack.c.b16 %v1633, %v1629
        %v2074 = vpack.c.b16 %v1638, %v1634
        %v2075 = vpack.c.b16 %v1639, %v1635
        %v2076 = vpack.c.b16 %v1640, %v1636
        %v2077 = vpack.c.b16 %v1641, %v1637
        %v2078 = vpack.c.b16 %v1646, %v1642
        %v2079 = vpack.c.b16 %v1647, %v1643
        %v2080 = vpack.c.b16 %v1648, %v1644
        %v2081 = vpack.c.b16 %v1649, %v1645
        %v2082 = vpack.c.b16 %v1654, %v1650
        %v2083 = vpack.c.b16 %v1655, %v1651
        %v2084 = vpack.c.b16 %v1656, %v1652
        %v2085 = vpack.c.b16 %v1657, %v1653
        %v2086 = vpack.c.b16 %v1662, %v1658
        %v2087 = vpack.c.b16 %v1663, %v1659
        %v2088 = vpack.c.b16 %v1664, %v1660
        %v2089 = vpack.c.b16 %v1665, %v1661
        %v2090 = vpack.c.b16 %v1670, %v1666
        %v2091 = vpack.c.b16 %v1671, %v1667
        %v2092 = vpack.c.b16 %v1672, %v1668
        %v2093 = vpack.c.b16 %v1673, %v1669
        %v2094 = vpack.c.b16 %v1678, %v1674
        %v2095 = vpack.c.b16 %v1679, %v1675
        %v2096 = vpack.c.b16 %v1680, %v1676
        %v2097 = vpack.c.b16 %v1681, %v1677
        %v2098 = vpack.c.b16 %v1686, %v1682
        %v2099 = vpack.c.b16 %v1687, %v1683
        %v2100 = vpack.c.b16 %v1688, %v1684
        %v2101 = vpack.c.b16 %v1689, %v1685
        %v2102 = vpack.c.b16 %v1694, %v1690
        %v2103 = vpack.c.b16 %v1695, %v1691
        %v2104 = vpack.c.b16 %v1696, %v1692
        %v2105 = vpack.c.b16 %v1697, %v1693
        %v2106 = vpack.c.b16 %v1702, %v1698
        %v2107 = vpack.c.b16 %v1703, %v1699
        %v2108 = vpack.c.b16 %v1704, %v1700
        %v2109 = vpack.c.b16 %v1705, %v1701
        %v2110 = vpack.c.b16 %v1710, %v1706
        %v2111 = vpack.c.b16 %v1711, %v1707
        %v2112 = vpack.c.b16 %v1712, %v1708
        %v2113 = vpack.c.b16 %v1713, %v1709
        %v2114 = vpack.c.b16 %v1718, %v1714
        %v2115 = vpack.c.b16 %v1719, %v1715
        %v2116 = vpack.c.b16 %v1720, %v1716
        %v2117 = vpack.c.b16 %v1721, %v1717
        %v2118 = vpack.c.b16 %v1726, %v1722
        %v2119 = vpack.c.b16 %v1727, %v1723
        %v2120 = vpack.c.b16 %v1728, %v1724
        %v2121 = vpack.c.b16 %v1729, %v1725
        %v2122 = vpack.c.b16 %v1734, %v1730
        %v2123 = vpack.c.b16 %v1735, %v1731
        %v2124 = vpack.c.b16 %v1736, %v1732
        %v2125 = vpack.c.b16 %v1737, %v1733
        %v2126 = vpack.c.b16 %v1742, %v1738
        %v2127 = vpack.c.b16 %v1743, %v1739
        %v2128 = vpack.c.b16 %v1744, %v1740
        %v2129 = vpack.c.b16 %v1745, %v1741
        %v2130 = vpack.c.b16 %v1750, %v1746
        %v2131 = vpack.c.b16 %v1751, %v1747
        %v2132 = vpack.c.b16 %v1752, %v1748
        %v2133 = vpack.c.b16 %v1753, %v1749
        %v2134 = vpack.c.b16 %v1758, %v1754
        %v2135 = vpack.c.b16 %v1759, %v1755
        %v2136 = vpack.c.b16 %v1760, %v1756
        %v2137 = vpack.c.b16 %v1761, %v1757
        %v2138 = vpack.c.b16 %v1766, %v1762
        %v2139 = vpack.c.b16 %v1767, %v1763
        %v2140 = vpack.c.b16 %v1768, %v1764
        %v2141 = vpack.c.b16 %v1769, %v1765
        %v2142 = vpack.c.b16 %v1774, %v1770
        %v2143 = vpack.c.b16 %v1775, %v1771
        %v2144 = vpack.c.b16 %v1776, %v1772
        %v2145 = vpack.c.b16 %v1777, %v1773
        %v2146 = vpack.c.b16 %v1782, %v1778
        %v2147 = vpack.c.b16 %v1783, %v1779
        %v2148 = vpack.c.b16 %v1784, %v1780
        %v2149 = vpack.c.b16 %v1785, %v1781
        %v2150 = vpack.c.b16 %v1790, %v1786
        %v2151 = vpack.c.b16 %v1791, %v1787
        %v2152 = vpack.c.b16 %v1792, %v1788
        %v2153 = vpack.c.b16 %v1793, %v1789
        %v2154 = vpack.c.b16 %v1798, %v1794
        %v2155 = vpack.c.b16 %v1799, %v1795
        %v2156 = vpack.c.b16 %v1800, %v1796
        %v2157 = vpack.c.b16 %v1801, %v1797
        %v2158 = vpack.c.b16 %v1806, %v1802
        %v2159 = vpack.c.b16 %v1807, %v1803
        %v2160 = vpack.c.b16 %v1808, %v1804
        %v2161 = vpack.c.b16 %v1809, %v1805
        %v2162 = vpack.c.b16 %v1814, %v1810
        %v2163 = vpack.c.b16 %v1815, %v1811
        %v2164 = vpack.c.b16 %v1816, %v1812
        %v2165 = vpack.c.b16 %v1817, %v1813
        %v2166 = vpack.c.b16 %v1822, %v1818
        %v2167 = vpack.c.b16 %v1823, %v1819
        %v2168 = vpack.c.b16 %v1824, %v1820
        %v2169 = vpack.c.b16 %v1825, %v1821
        %v2170 = vpack.c.b16 %v1830, %v1826
        %v2171 = vpack.c.b16 %v1831, %v1827
        %v2172 = vpack.c.b16 %v1832, %v1828
        %v2173 = vpack.c.b16 %v1833, %v1829
        %v2174 = vpack.c.b16 %v1838, %v1834
        %v2175 = vpack.c.b16 %v1839, %v1835
        %v2176 = vpack.c.b16 %v1840, %v1836
        %v2177 = vpack.c.b16 %v1841, %v1837
        %v2178 = vpack.c.b16 %v1846, %v1842
        %v2179 = vpack.c.b16 %v1847, %v1843
        %v2180 = vpack.c.b16 %v1848, %v1844
        %v2181 = vpack.c.b16 %v1849, %v1845
        %v2182 = vpack.c.b16 %v1854, %v1850
        %v2183 = vpack.c.b16 %v1855, %v1851
        %v2184 = vpack.c.b16 %v1856, %v1852
        %v2185 = vpack.c.b16 %v1857, %v1853
        %v2186 = vpack.c.b16 %v1862, %v1858
        %v2187 = vpack.c.b16 %v1863, %v1859
        %v2188 = vpack.c.b16 %v1864, %v1860
        %v2189 = vpack.c.b16 %v1865, %v1861
        %v2190 = vpack.c.b16 %v1870, %v1866
        %v2191 = vpack.c.b16 %v1871, %v1867
        %v2192 = vpack.c.b16 %v1872, %v1868
        %v2193 = vpack.c.b16 %v1873, %v1869
        %v2194 = vpack.c.b16 %v1878, %v1874
        %v2195 = vpack.c.b16 %v1879, %v1875
        %v2196 = vpack.c.b16 %v1880, %v1876
        %v2197 = vpack.c.b16 %v1881, %v1877
        %v2198 = vpack.c.b16 %v1886, %v1882
        %v2199 = vpack.c.b16 %v1887, %v1883
        %v2200 = vpack.c.b16 %v1888, %v1884
        %v2201 = vpack.c.b16 %v1889, %v1885
        %v2202 = vpack.c.b16 %v1894, %v1890
        %v2203 = vpack.c.b16 %v1895, %v1891
        %v2204 = vpack.c.b16 %v1896, %v1892
        %v2205 = vpack.c.b16 %v1897, %v1893
        %v2206 = vpack.c.b16 %v1902, %v1898
        %v2207 = vpack.c.b16 %v1903, %v1899
        %v2208 = vpack.c.b16 %v1904, %v1900
        %v2209 = vpack.c.b16 %v1905, %v1901
        %v2210 = vpack.c.b16 %v1910, %v1906
        %v2211 = vpack.c.b16 %v1911, %v1907
        %v2212 = vpack.c.b16 %v1912, %v1908
        %v2213 = vpack.c.b16 %v1913, %v1909
        %v2214 = vpack.c.b16 %v1918, %v1914
        %v2215 = vpack.c.b16 %v1919, %v1915
        %v2216 = vpack.c.b16 %v1920, %v1916
        %v2217 = vpack.c.b16 %v1921, %v1917
        %v2218 = vpack.c.b16 %v1926, %v1922
        %v2219 = vpack.c.b16 %v1927, %v1923
        %v2220 = vpack.c.b16 %v1928, %v1924
        %v2221 = vpack.c.b16 %v1929, %v1925
        %v2222 = vpack.c.b16 %v1934, %v1930
        %v2223 = vpack.c.b16 %v1935, %v1931
        %v2224 = vpack.c.b16 %v1936, %v1932
        %v2225 = vpack.c.b16 %v1937, %v1933
        %v2226 = vpack.c.b16 %v1942, %v1938
        %v2227 = vpack.c.b16 %v1943, %v1939
        %v2228 = vpack.c.b16 %v1944, %v1940
        %v2229 = vpack.c.b16 %v1945, %v1941
        %v2230 = vpack.c.b16 %v1950, %v1946
        %v2231 = vpack.c.b16 %v1951, %v1947
        %v2232 = vpack.c.b16 %v1952, %v1948
        %v2233 = vpack.c.b16 %v1953, %v1949
        %v2234 = vpack.c.b16 %v1958, %v1954
        %v2235 = vpack.c.b16 %v1959, %v1955
        %v2236 = vpack.c.b16 %v1960, %v1956
        %v2237 = vpack.c.b16 %v1961, %v1957
        %v2238 = vpack.c.b16 %v1966, %v1962
        %v2239 = vpack.c.b16 %v1967, %v1963
        %v2240 = vpack.c.b16 %v1968, %v1964
        %v2241 = vpack.c.b16 %v1969, %v1965
        %v2242 = vpack.c.b16 %v1974, %v1970
        %v2243 = vpack.c.b16 %v1975, %v1971
        %v2244 = vpack.c.b16 %v1976, %v1972
        %v2245 = vpack.c.b16 %v1977, %v1973
        %v2246 = vpack.c.b16 %v1982, %v1978
        %v2247 = vpack.c.b16 %v1983, %v1979
        %v2248 = vpack.c.b16 %v1984, %v1980
        %v2249 = vpack.c.b16 %v1985, %v1981
        %v2250 = vpack.c.b16 %v1990, %v1986
        %v2251 = vpack.c.b16 %v1991, %v1987
        %v2252 = vpack.c.b16 %v1992, %v1988
        %v2253 = vpack.c.b16 %v1993, %v1989
        %v2254 = vpack.c.b16 %v1998, %v1994
        %v2255 = vpack.c.b16 %v1999, %v1995
        %v2256 = vpack.c.b16 %v2000, %v1996
        %v2257 = vpack.c.b16 %v2001, %v1997
        %2514 = vmatprep.subr.bf16.mxu0 %v2003
        %2515 = vmatpush1.bf16.msra.mxu0 %v2002
        %2516 = vmatprep.subr.bf16.mxu0 %v2007
        %2517 = vmatpush1.bf16.msra.mxu0 %v2006
        %2518 = vmatprep.subr.bf16.mxu0 %v2011
        %2519 = vmatpush1.bf16.msra.mxu0 %v2010
        %2520 = vmatprep.subr.bf16.mxu0 %v2015
        %2521 = vmatpush1.bf16.msra.mxu0 %v2014
        %2522 = vmatprep.subr.bf16.mxu0 %v2019
        %2523 = vmatpush1.bf16.msra.mxu0 %v2018
        %2524 = vmatprep.subr.bf16.mxu0 %v2023
        %2525 = vmatpush1.bf16.msra.mxu0 %v2022
        %2526 = vmatprep.subr.bf16.mxu0 %v2027
        %2527 = vmatpush1.bf16.msra.mxu0 %v2026
        %2528 = vmatprep.subr.bf16.mxu0 %v2031
        %2529 = vmatpush1.bf16.msra.mxu0 %v2030
        %2530 = vmatprep.subr.bf16.mxu0 %v2035
        %2531 = vmatpush1.bf16.msra.mxu0 %v2034
        %2532 = vmatprep.subr.bf16.mxu0 %v2039
        %2533 = vmatpush1.bf16.msra.mxu0 %v2038
        %2534 = vmatprep.subr.bf16.mxu0 %v2043
        %2535 = vmatpush1.bf16.msra.mxu0 %v2042
        %2536 = vmatprep.subr.bf16.mxu0 %v2047
        %2537 = vmatpush1.bf16.msra.mxu0 %v2046
        %2538 = vmatprep.subr.bf16.mxu0 %v2051
        %2539 = vmatpush1.bf16.msra.mxu0 %v2050
        %2540 = vmatprep.subr.bf16.mxu0 %v2055
        %2541 = vmatpush1.bf16.msra.mxu0 %v2054
        %2542 = vmatprep.subr.bf16.mxu0 %v2059
        %2543 = vmatpush1.bf16.msra.mxu0 %v2058
        %2544 = vmatprep.subr.bf16.mxu0 %v2063
        %2545 = vmatpush1.bf16.msra.mxu0 %v2062
        %2546 = vmatprep.mubr.bf16.mxu0 %v1206
        %2547 = vmatmul.mubr.bf16.gmra.mrb[0].mxu0 %v1205
        %v2548 = vpop.f32.mrb[0].mxu0
        %v2549 = vadd.f32 %v1217, %v2548
        %v2550 = vpop.f32.mrb[0].mxu0
        %v2551 = vadd.f32 %v1221, %v2550
        %v2552 = vpop.f32.mrb[0].mxu0
        %v2553 = vpop.f32.mrb[0].mxu0
        %2554 = vdwg.mxu0
        %2555 = vmatprep.subr.bf16.mxu0 %v2067
        %2556 = vmatpush1.bf16.msra.mxu0 %v2066
        %2557 = vmatprep.subr.bf16.mxu0 %v2071
        %2558 = vmatpush1.bf16.msra.mxu0 %v2070
        %2559 = vmatprep.subr.bf16.mxu0 %v2075
        %2560 = vmatpush1.bf16.msra.mxu0 %v2074
        %2561 = vmatprep.subr.bf16.mxu0 %v2079
        %2562 = vmatpush1.bf16.msra.mxu0 %v2078
        %2563 = vmatprep.subr.bf16.mxu0 %v2083
        %2564 = vmatpush1.bf16.msra.mxu0 %v2082
        %2565 = vmatprep.subr.bf16.mxu0 %v2087
        %2566 = vmatpush1.bf16.msra.mxu0 %v2086
        %2567 = vmatprep.subr.bf16.mxu0 %v2091
        %2568 = vmatpush1.bf16.msra.mxu0 %v2090
        %2569 = vmatprep.subr.bf16.mxu0 %v2095
        %2570 = vmatpush1.bf16.msra.mxu0 %v2094
        %2571 = vmatprep.subr.bf16.mxu0 %v2099
        %2572 = vmatpush1.bf16.msra.mxu0 %v2098
        %2573 = vmatprep.subr.bf16.mxu0 %v2103
        %2574 = vmatpush1.bf16.msra.mxu0 %v2102
        %2575 = vmatprep.subr.bf16.mxu0 %v2107
        %2576 = vmatpush1.bf16.msra.mxu0 %v2106
        %2577 = vmatprep.subr.bf16.mxu0 %v2111
        %2578 = vmatpush1.bf16.msra.mxu0 %v2110
        %2579 = vmatprep.subr.bf16.mxu0 %v2115
        %2580 = vmatpush1.bf16.msra.mxu0 %v2114
        %2581 = vmatprep.subr.bf16.mxu0 %v2119
        %2582 = vmatpush1.bf16.msra.mxu0 %v2118
        %2583 = vmatprep.subr.bf16.mxu0 %v2123
        %2584 = vmatpush1.bf16.msra.mxu0 %v2122
        %2585 = vmatprep.subr.bf16.mxu0 %v2127
        %2586 = vmatpush1.bf16.msra.mxu0 %v2126
        %2587 = vmatprep.mubr.bf16.mxu0 %v1208
        %2588 = vmatmul.mubr.bf16.gmra.mrb[0].mxu0 %v1207
        %v2589 = vpop.f32.mrb[0].mxu0
        %v2590 = vadd.f32 %v2549, %v2589
        %v2591 = vpop.f32.mrb[0].mxu0
        %v2592 = vadd.f32 %v2551, %v2591
        %v2593 = vpop.f32.mrb[0].mxu0
        %v2594 = vpop.f32.mrb[0].mxu0
        %2595 = vdwg.mxu0
        %2596 = vmatprep.subr.bf16.mxu0 %v2131
        %2597 = vmatpush1.bf16.msra.mxu0 %v2130
        %2598 = vmatprep.subr.bf16.mxu0 %v2135
        %2599 = vmatpush1.bf16.msra.mxu0 %v2134
        %2600 = vmatprep.subr.bf16.mxu0 %v2139
        %2601 = vmatpush1.bf16.msra.mxu0 %v2138
        %2602 = vmatprep.subr.bf16.mxu0 %v2143
        %2603 = vmatpush1.bf16.msra.mxu0 %v2142
        %2604 = vmatprep.subr.bf16.mxu0 %v2147
        %2605 = vmatpush1.bf16.msra.mxu0 %v2146
        %2606 = vmatprep.subr.bf16.mxu0 %v2151
        %2607 = vmatpush1.bf16.msra.mxu0 %v2150
        %2608 = vmatprep.subr.bf16.mxu0 %v2155
        %2609 = vmatpush1.bf16.msra.mxu0 %v2154
        %2610 = vmatprep.subr.bf16.mxu0 %v2159
        %2611 = vmatpush1.bf16.msra.mxu0 %v2158
        %2612 = vmatprep.subr.bf16.mxu0 %v2163
        %2613 = vmatpush1.bf16.msra.mxu0 %v2162
        %2614 = vmatprep.subr.bf16.mxu0 %v2167
        %2615 = vmatpush1.bf16.msra.mxu0 %v2166
        %2616 = vmatprep.subr.bf16.mxu0 %v2171
        %2617 = vmatpush1.bf16.msra.mxu0 %v2170
        %2618 = vmatprep.subr.bf16.mxu0 %v2175
        %2619 = vmatpush1.bf16.msra.mxu0 %v2174
        %2620 = vmatprep.subr.bf16.mxu0 %v2179
        %2621 = vmatpush1.bf16.msra.mxu0 %v2178
        %2622 = vmatprep.subr.bf16.mxu0 %v2183
        %2623 = vmatpush1.bf16.msra.mxu0 %v2182
        %2624 = vmatprep.subr.bf16.mxu0 %v2187
        %2625 = vmatpush1.bf16.msra.mxu0 %v2186
        %2626 = vmatprep.subr.bf16.mxu0 %v2191
        %2627 = vmatpush1.bf16.msra.mxu0 %v2190
        %2628 = vmatprep.mubr.bf16.mxu0 %v1210
        %2629 = vmatmul.mubr.bf16.gmra.mrb[0].mxu0 %v1209
        %v2630 = vpop.f32.mrb[0].mxu0
        %v2631 = vadd.f32 %v2590, %v2630
        %v2632 = vpop.f32.mrb[0].mxu0
        %v2633 = vadd.f32 %v2592, %v2632
        %v2634 = vpop.f32.mrb[0].mxu0
        %v2635 = vpop.f32.mrb[0].mxu0
        %2636 = vdwg.mxu0
        %2637 = vmatprep.subr.bf16.mxu0 %v2195
        %2638 = vmatpush1.bf16.msra.mxu0 %v2194
        %2639 = vmatprep.subr.bf16.mxu0 %v2199
        %2640 = vmatpush1.bf16.msra.mxu0 %v2198
        %2641 = vmatprep.subr.bf16.mxu0 %v2203
        %2642 = vmatpush1.bf16.msra.mxu0 %v2202
        %2643 = vmatprep.subr.bf16.mxu0 %v2207
        %2644 = vmatpush1.bf16.msra.mxu0 %v2206
        %2645 = vmatprep.subr.bf16.mxu0 %v2211
        %2646 = vmatpush1.bf16.msra.mxu0 %v2210
        %2647 = vmatprep.subr.bf16.mxu0 %v2215
        %2648 = vmatpush1.bf16.msra.mxu0 %v2214
        %2649 = vmatprep.subr.bf16.mxu0 %v2219
        %2650 = vmatpush1.bf16.msra.mxu0 %v2218
        %2651 = vmatprep.subr.bf16.mxu0 %v2223
        %2652 = vmatpush1.bf16.msra.mxu0 %v2222
        %2653 = vmatprep.subr.bf16.mxu0 %v2227
        %2654 = vmatpush1.bf16.msra.mxu0 %v2226
        %2655 = vmatprep.subr.bf16.mxu0 %v2231
        %2656 = vmatpush1.bf16.msra.mxu0 %v2230
        %2657 = vmatprep.subr.bf16.mxu0 %v2235
        %2658 = vmatpush1.bf16.msra.mxu0 %v2234
        %2659 = vmatprep.subr.bf16.mxu0 %v2239
        %2660 = vmatpush1.bf16.msra.mxu0 %v2238
        %2661 = vmatprep.subr.bf16.mxu0 %v2243
        %2662 = vmatpush1.bf16.msra.mxu0 %v2242
        %2663 = vmatprep.subr.bf16.mxu0 %v2247
        %2664 = vmatpush1.bf16.msra.mxu0 %v2246
        %2665 = vmatprep.subr.bf16.mxu0 %v2251
        %2666 = vmatpush1.bf16.msra.mxu0 %v2250
        %2667 = vmatprep.subr.bf16.mxu0 %v2255
        %2668 = vmatpush1.bf16.msra.mxu0 %v2254
        %2669 = vmatprep.mubr.bf16.mxu0 %v1212
        %2670 = vmatmul.mubr.bf16.gmra.mrb[0].mxu0 %v1211
        %v2671 = vpop.f32.mrb[0].mxu0
        %v2672 = vadd.f32 %v2631, %v2671
        %v2673 = vpop.f32.mrb[0].mxu0
        %v2674 = vadd.f32 %v2633, %v2673
        %v2675 = vpop.f32.mrb[0].mxu0
        %v2676 = vpop.f32.mrb[0].mxu0
        %2677 = vdwg.mxu0
        %2678 = vmatprep.subr.bf16.mxu0 %v2005
        %2679 = vmatpush1.bf16.msra.mxu0 %v2004
        %2680 = vmatprep.subr.bf16.mxu0 %v2009
        %2681 = vmatpush1.bf16.msra.mxu0 %v2008
        %2682 = vmatprep.subr.bf16.mxu0 %v2013
        %2683 = vmatpush1.bf16.msra.mxu0 %v2012
        %2684 = vmatprep.subr.bf16.mxu0 %v2017
        %2685 = vmatpush1.bf16.msra.mxu0 %v2016
        %2686 = vmatprep.subr.bf16.mxu0 %v2021
        %2687 = vmatpush1.bf16.msra.mxu0 %v2020
        %2688 = vmatprep.subr.bf16.mxu0 %v2025
        %2689 = vmatpush1.bf16.msra.mxu0 %v2024
        %2690 = vmatprep.subr.bf16.mxu0 %v2029
        %2691 = vmatpush1.bf16.msra.mxu0 %v2028
        %2692 = vmatprep.subr.bf16.mxu0 %v2033
        %2693 = vmatpush1.bf16.msra.mxu0 %v2032
        %2694 = vmatprep.subr.bf16.mxu0 %v2037
        %2695 = vmatpush1.bf16.msra.mxu0 %v2036
        %2696 = vmatprep.subr.bf16.mxu0 %v2041
        %2697 = vmatpush1.bf16.msra.mxu0 %v2040
        %2698 = vmatprep.subr.bf16.mxu0 %v2045
        %2699 = vmatpush1.bf16.msra.mxu0 %v2044
        %2700 = vmatprep.subr.bf16.mxu0 %v2049
        %2701 = vmatpush1.bf16.msra.mxu0 %v2048
        %2702 = vmatprep.subr.bf16.mxu0 %v2053
        %2703 = vmatpush1.bf16.msra.mxu0 %v2052
        %2704 = vmatprep.subr.bf16.mxu0 %v2057
        %2705 = vmatpush1.bf16.msra.mxu0 %v2056
        %2706 = vmatprep.subr.bf16.mxu0 %v2061
        %2707 = vmatpush1.bf16.msra.mxu0 %v2060
        %2708 = vmatprep.subr.bf16.mxu0 %v2065
        %2709 = vmatpush1.bf16.msra.mxu0 %v2064
        %2710 = vmatprep.mubr.bf16.mxu0 %v1206
        %2711 = vmatmul.mubr.bf16.gmra.mrb[0].mxu0 %v1205
        %v2712 = vpop.f32.mrb[0].mxu0
        %v2713 = vadd.f32 %v1225, %v2712
        %v2714 = vpop.f32.mrb[0].mxu0
        %v2715 = vadd.f32 %v1229, %v2714
        %v2716 = vpop.f32.mrb[0].mxu0
        %v2717 = vpop.f32.mrb[0].mxu0
        %2718 = vdwg.mxu0
        %2719 = vmatprep.subr.bf16.mxu0 %v2069
        %2720 = vmatpush1.bf16.msra.mxu0 %v2068
        %2721 = vmatprep.subr.bf16.mxu0 %v2073
        %2722 = vmatpush1.bf16.msra.mxu0 %v2072
        %2723 = vmatprep.subr.bf16.mxu0 %v2077
        %2724 = vmatpush1.bf16.msra.mxu0 %v2076
        %2725 = vmatprep.subr.bf16.mxu0 %v2081
        %2726 = vmatpush1.bf16.msra.mxu0 %v2080
        %2727 = vmatprep.subr.bf16.mxu0 %v2085
        %2728 = vmatpush1.bf16.msra.mxu0 %v2084
        %2729 = vmatprep.subr.bf16.mxu0 %v2089
        %2730 = vmatpush1.bf16.msra.mxu0 %v2088
        %2731 = vmatprep.subr.bf16.mxu0 %v2093
        %2732 = vmatpush1.bf16.msra.mxu0 %v2092
        %2733 = vmatprep.subr.bf16.mxu0 %v2097
        %2734 = vmatpush1.bf16.msra.mxu0 %v2096
        %2735 = vmatprep.subr.bf16.mxu0 %v2101
        %2736 = vmatpush1.bf16.msra.mxu0 %v2100
        %2737 = vmatprep.subr.bf16.mxu0 %v2105
        %2738 = vmatpush1.bf16.msra.mxu0 %v2104
        %2739 = vmatprep.subr.bf16.mxu0 %v2109
        %2740 = vmatpush1.bf16.msra.mxu0 %v2108
        %2741 = vmatprep.subr.bf16.mxu0 %v2113
        %2742 = vmatpush1.bf16.msra.mxu0 %v2112
        %2743 = vmatprep.subr.bf16.mxu0 %v2117
        %2744 = vmatpush1.bf16.msra.mxu0 %v2116
        %2745 = vmatprep.subr.bf16.mxu0 %v2121
        %2746 = vmatpush1.bf16.msra.mxu0 %v2120
        %2747 = vmatprep.subr.bf16.mxu0 %v2125
        %2748 = vmatpush1.bf16.msra.mxu0 %v2124
        %2749 = vmatprep.subr.bf16.mxu0 %v2129
        %2750 = vmatpush1.bf16.msra.mxu0 %v2128
        %2751 = vmatprep.mubr.bf16.mxu0 %v1208
        %2752 = vmatmul.mubr.bf16.gmra.mrb[0].mxu0 %v1207
        %v2753 = vpop.f32.mrb[0].mxu0
        %v2754 = vadd.f32 %v2713, %v2753
        %v2755 = vpop.f32.mrb[0].mxu0
        %v2756 = vadd.f32 %v2715, %v2755
        %v2757 = vpop.f32.mrb[0].mxu0
        %v2758 = vpop.f32.mrb[0].mxu0
        %2759 = vdwg.mxu0
        %2760 = vmatprep.subr.bf16.mxu0 %v2133
        %2761 = vmatpush1.bf16.msra.mxu0 %v2132
        %2762 = vmatprep.subr.bf16.mxu0 %v2137
        %2763 = vmatpush1.bf16.msra.mxu0 %v2136
        %2764 = vmatprep.subr.bf16.mxu0 %v2141
        %2765 = vmatpush1.bf16.msra.mxu0 %v2140
        %2766 = vmatprep.subr.bf16.mxu0 %v2145
        %2767 = vmatpush1.bf16.msra.mxu0 %v2144
        %2768 = vmatprep.subr.bf16.mxu0 %v2149
        %2769 = vmatpush1.bf16.msra.mxu0 %v2148
        %2770 = vmatprep.subr.bf16.mxu0 %v2153
        %2771 = vmatpush1.bf16.msra.mxu0 %v2152
        %2772 = vmatprep.subr.bf16.mxu0 %v2157
        %2773 = vmatpush1.bf16.msra.mxu0 %v2156
        %2774 = vmatprep.subr.bf16.mxu0 %v2161
        %2775 = vmatpush1.bf16.msra.mxu0 %v2160
        %2776 = vmatprep.subr.bf16.mxu0 %v2165
        %2777 = vmatpush1.bf16.msra.mxu0 %v2164
        %2778 = vmatprep.subr.bf16.mxu0 %v2169
        %2779 = vmatpush1.bf16.msra.mxu0 %v2168
        %2780 = vmatprep.subr.bf16.mxu0 %v2173
        %2781 = vmatpush1.bf16.msra.mxu0 %v2172
        %2782 = vmatprep.subr.bf16.mxu0 %v2177
        %2783 = vmatpush1.bf16.msra.mxu0 %v2176
        %2784 = vmatprep.subr.bf16.mxu0 %v2181
        %2785 = vmatpush1.bf16.msra.mxu0 %v2180
        %2786 = vmatprep.subr.bf16.mxu0 %v2185
        %2787 = vmatpush1.bf16.msra.mxu0 %v2184
        %2788 = vmatprep.subr.bf16.mxu0 %v2189
        %2789 = vmatpush1.bf16.msra.mxu0 %v2188
        %2790 = vmatprep.subr.bf16.mxu0 %v2193
        %2791 = vmatpush1.bf16.msra.mxu0 %v2192
        %2792 = vmatprep.mubr.bf16.mxu0 %v1210
        %2793 = vmatmul.mubr.bf16.gmra.mrb[0].mxu0 %v1209
        %v2794 = vpop.f32.mrb[0].mxu0
        %v2795 = vadd.f32 %v2754, %v2794
        %v2796 = vpop.f32.mrb[0].mxu0
        %v2797 = vadd.f32 %v2756, %v2796
        %v2798 = vpop.f32.mrb[0].mxu0
        %v2799 = vpop.f32.mrb[0].mxu0
        %2800 = vdwg.mxu0
        %2801 = vmatprep.subr.bf16.mxu0 %v2197
        %2802 = vmatpush1.bf16.msra.mxu0 %v2196
        %2803 = vmatprep.subr.bf16.mxu0 %v2201
        %2804 = vmatpush1.bf16.msra.mxu0 %v2200
        %2805 = vmatprep.subr.bf16.mxu0 %v2205
        %2806 = vmatpush1.bf16.msra.mxu0 %v2204
        %2807 = vmatprep.subr.bf16.mxu0 %v2209
        %2808 = vmatpush1.bf16.msra.mxu0 %v2208
        %2809 = vmatprep.subr.bf16.mxu0 %v2213
        %2810 = vmatpush1.bf16.msra.mxu0 %v2212
        %2811 = vmatprep.subr.bf16.mxu0 %v2217
        %2812 = vmatpush1.bf16.msra.mxu0 %v2216
        %2813 = vmatprep.subr.bf16.mxu0 %v2221
        %2814 = vmatpush1.bf16.msra.mxu0 %v2220
        %2815 = vmatprep.subr.bf16.mxu0 %v2225
        %2816 = vmatpush1.bf16.msra.mxu0 %v2224
        %2817 = vmatprep.subr.bf16.mxu0 %v2229
        %2818 = vmatpush1.bf16.msra.mxu0 %v2228
        %2819 = vmatprep.subr.bf16.mxu0 %v2233
        %2820 = vmatpush1.bf16.msra.mxu0 %v2232
        %2821 = vmatprep.subr.bf16.mxu0 %v2237
        %2822 = vmatpush1.bf16.msra.mxu0 %v2236
        %2823 = vmatprep.subr.bf16.mxu0 %v2241
        %2824 = vmatpush1.bf16.msra.mxu0 %v2240
        %2825 = vmatprep.subr.bf16.mxu0 %v2245
        %2826 = vmatpush1.bf16.msra.mxu0 %v2244
        %2827 = vmatprep.subr.bf16.mxu0 %v2249
        %2828 = vmatpush1.bf16.msra.mxu0 %v2248
        %2829 = vmatprep.subr.bf16.mxu0 %v2253
        %2830 = vmatpush1.bf16.msra.mxu0 %v2252
        %2831 = vmatprep.subr.bf16.mxu0 %v2257
        %2832 = vmatpush1.bf16.msra.mxu0 %v2256
        %2833 = vmatprep.mubr.bf16.mxu0 %v1212
        %2834 = vmatmul.mubr.bf16.gmra.mrb[0].mxu0 %v1211
        %v2835 = vpop.f32.mrb[0].mxu0
        %v2836 = vadd.f32 %v2795, %v2835
        %v2837 = vpop.f32.mrb[0].mxu0
        %v2838 = vadd.f32 %v2797, %v2837
        %v2839 = vpop.f32.mrb[0].mxu0
        %v2840 = vpop.f32.mrb[0].mxu0
        %2841 = vdwg.mxu0
        %v2842 = vmax.f32 %v2672, 0.0
        %v2843 = vmax.f32 %v2674, 0.0
        %v2844 = vmax.f32 %v2836, 0.0
        %v2845 = vmax.f32 %v2838, 0.0
        %v2846 = vld [vmem:[#allocation6] sm:$0xff]
        %v2847 = vld [vmem:[#allocation6 + $0x8] sm:$0xff]
        %v2848 = vld [vmem:[#allocation6 + $0x10] sm:$0xff]
        %v2849 = vld [vmem:[#allocation6 + $0x18] sm:$0xff]
        %v2850 = vld [vmem:[#allocation6 + $0x20] sm:$0xff]
        %v2851 = vld [vmem:[#allocation6 + $0x28] sm:$0xff]
        %v2852 = vld [vmem:[#allocation6 + $0x30] sm:$0xff]
        %v2853 = vld [vmem:[#allocation6 + $0x38] sm:$0xff]
        %v2854 = vld [vmem:[#allocation6 + $0x40] sm:$0xff]
        %v2855 = vld [vmem:[#allocation6 + $0x48] sm:$0xff]
        %v2856 = vld [vmem:[#allocation6 + $0x50] sm:$0xff]
        %v2857 = vld [vmem:[#allocation6 + $0x58] sm:$0xff]
        %v2858 = vld [vmem:[#allocation6 + $0x60] sm:$0xff]
        %v2859 = vld [vmem:[#allocation6 + $0x68] sm:$0xff]
        %v2860 = vld [vmem:[#allocation6 + $0x70] sm:$0xff]
        %v2861 = vld [vmem:[#allocation6 + $0x78] sm:$0xff]
        %v2862 = vld [vmem:[#allocation6 + $0x80] sm:$0xff]
        %v2863 = vld [vmem:[#allocation6 + $0x88] sm:$0xff]
        %v2864 = vld [vmem:[#allocation6 + $0x90] sm:$0xff]
        %v2865 = vld [vmem:[#allocation6 + $0x98] sm:$0xff]
        %v2866 = vld [vmem:[#allocation6 + $0xa0] sm:$0xff]
        %v2867 = vld [vmem:[#allocation6 + $0xa8] sm:$0xff]
        %v2868 = vld [vmem:[#allocation6 + $0xb0] sm:$0xff]
        %v2869 = vld [vmem:[#allocation6 + $0xb8] sm:$0xff]
        %v2870 = vld [vmem:[#allocation6 + $0xc0] sm:$0xff]
        %v2871 = vld [vmem:[#allocation6 + $0xc8] sm:$0xff]
        %v2872 = vld [vmem:[#allocation6 + $0xd0] sm:$0xff]
        %v2873 = vld [vmem:[#allocation6 + $0xd8] sm:$0xff]
        %v2874 = vld [vmem:[#allocation6 + $0xe0] sm:$0xff]
        %v2875 = vld [vmem:[#allocation6 + $0xe8] sm:$0xff]
        %v2876 = vld [vmem:[#allocation6 + $0xf0] sm:$0xff]
        %v2877 = vld [vmem:[#allocation6 + $0xf8] sm:$0xff]
        %v2878 = vld [vmem:[#allocation6 + $0x100] sm:$0xff]
        %v2879 = vld [vmem:[#allocation6 + $0x108] sm:$0xff]
        %v2880 = vld [vmem:[#allocation6 + $0x110] sm:$0xff]
        %v2881 = vld [vmem:[#allocation6 + $0x118] sm:$0xff]
        %v2882 = vld [vmem:[#allocation6 + $0x120] sm:$0xff]
        %v2883 = vld [vmem:[#allocation6 + $0x128] sm:$0xff]
        %v2884 = vld [vmem:[#allocation6 + $0x130] sm:$0xff]
        %v2885 = vld [vmem:[#allocation6 + $0x138] sm:$0xff]
        %v2886 = vld [vmem:[#allocation6 + $0x140] sm:$0xff]
        %v2887 = vld [vmem:[#allocation6 + $0x148] sm:$0xff]
        %v2888 = vld [vmem:[#allocation6 + $0x150] sm:$0xff]
        %v2889 = vld [vmem:[#allocation6 + $0x158] sm:$0xff]
        %v2890 = vld [vmem:[#allocation6 + $0x160] sm:$0xff]
        %v2891 = vld [vmem:[#allocation6 + $0x168] sm:$0xff]
        %v2892 = vld [vmem:[#allocation6 + $0x170] sm:$0xff]
        %v2893 = vld [vmem:[#allocation6 + $0x178] sm:$0xff]
        %v2894 = vld [vmem:[#allocation6 + $0x180] sm:$0xff]
        %v2895 = vld [vmem:[#allocation6 + $0x188] sm:$0xff]
        %v2896 = vld [vmem:[#allocation6 + $0x190] sm:$0xff]
        %v2897 = vld [vmem:[#allocation6 + $0x198] sm:$0xff]
        %v2898 = vld [vmem:[#allocation6 + $0x1a0] sm:$0xff]
        %v2899 = vld [vmem:[#allocation6 + $0x1a8] sm:$0xff]
        %v2900 = vld [vmem:[#allocation6 + $0x1b0] sm:$0xff]
        %v2901 = vld [vmem:[#allocation6 + $0x1b8] sm:$0xff]
        %v2902 = vld [vmem:[#allocation6 + $0x1c0] sm:$0xff]
        %v2903 = vld [vmem:[#allocation6 + $0x1c8] sm:$0xff]
        %v2904 = vld [vmem:[#allocation6 + $0x1d0] sm:$0xff]
        %v2905 = vld [vmem:[#allocation6 + $0x1d8] sm:$0xff]
        %v2906 = vld [vmem:[#allocation6 + $0x1e0] sm:$0xff]
        %v2907 = vld [vmem:[#allocation6 + $0x1e8] sm:$0xff]
        %v2908 = vld [vmem:[#allocation6 + $0x1f0] sm:$0xff]
        %v2909 = vld [vmem:[#allocation6 + $0x1f8] sm:$0xff]
        %v2910 = vld [vmem:[%s6 + $0xc] sm:$0x3]
        %v2911 = vpack.c.bf16 %v2842, %v2842
        %v2912 = vpack.c.bf16 %v2843, %v2843
        %v2913 = vpack.c.bf16 %v2844, %v2844
        %v2914 = vpack.c.bf16 %v2845, %v2845
        %v2916 = vlaneseq
        %v2917 = vshrl.u32 %v2916, 7
        %v2918 = vsub.s32 0, %v2917
        %v2919 = vrot.slane %v2910, %v2918
        %v2920 = vlaneseq
        %v2921 = vshrl.u32 %v2920, 7
        %v2922 = vsub.s32 1, %v2921
        %v2923 = vrot.slane %v2910, %v2922
        %v2990 = vunpack.c.l.b16 %v2846
        %v2991 = vunpack.c.h.b16 %v2846
        %v2992 = vunpack.c.l.b16 %v2847
        %v2993 = vunpack.c.h.b16 %v2847
        %v2994 = vunpack.c.l.b16 %v2848
        %v2995 = vunpack.c.h.b16 %v2848
        %v2996 = vunpack.c.l.b16 %v2849
        %v2997 = vunpack.c.h.b16 %v2849
        %v2998 = vunpack.c.l.b16 %v2850
        %v2999 = vunpack.c.h.b16 %v2850
        %v3000 = vunpack.c.l.b16 %v2851
        %v3001 = vunpack.c.h.b16 %v2851
        %v3002 = vunpack.c.l.b16 %v2852
        %v3003 = vunpack.c.h.b16 %v2852
        %v3004 = vunpack.c.l.b16 %v2853
        %v3005 = vunpack.c.h.b16 %v2853
        %v3006 = vunpack.c.l.b16 %v2854
        %v3007 = vunpack.c.h.b16 %v2854
        %v3008 = vunpack.c.l.b16 %v2855
        %v3009 = vunpack.c.h.b16 %v2855
        %v3010 = vunpack.c.l.b16 %v2856
        %v3011 = vunpack.c.h.b16 %v2856
        %v3012 = vunpack.c.l.b16 %v2857
        %v3013 = vunpack.c.h.b16 %v2857
        %v3014 = vunpack.c.l.b16 %v2858
        %v3015 = vunpack.c.h.b16 %v2858
        %v3016 = vunpack.c.l.b16 %v2859
        %v3017 = vunpack.c.h.b16 %v2859
        %v3018 = vunpack.c.l.b16 %v2860
        %v3019 = vunpack.c.h.b16 %v2860
        %v3020 = vunpack.c.l.b16 %v2861
        %v3021 = vunpack.c.h.b16 %v2861
        %v3022 = vunpack.c.l.b16 %v2862
        %v3023 = vunpack.c.h.b16 %v2862
        %v3024 = vunpack.c.l.b16 %v2863
        %v3025 = vunpack.c.h.b16 %v2863
        %v3026 = vunpack.c.l.b16 %v2864
        %v3027 = vunpack.c.h.b16 %v2864
        %v3028 = vunpack.c.l.b16 %v2865
        %v3029 = vunpack.c.h.b16 %v2865
        %v3030 = vunpack.c.l.b16 %v2866
        %v3031 = vunpack.c.h.b16 %v2866
        %v3032 = vunpack.c.l.b16 %v2867
        %v3033 = vunpack.c.h.b16 %v2867
        %v3034 = vunpack.c.l.b16 %v2868
        %v3035 = vunpack.c.h.b16 %v2868
        %v3036 = vunpack.c.l.b16 %v2869
        %v3037 = vunpack.c.h.b16 %v2869
        %v3038 = vunpack.c.l.b16 %v2870
        %v3039 = vunpack.c.h.b16 %v2870
        %v3040 = vunpack.c.l.b16 %v2871
        %v3041 = vunpack.c.h.b16 %v2871
        %v3042 = vunpack.c.l.b16 %v2872
        %v3043 = vunpack.c.h.b16 %v2872
        %v3044 = vunpack.c.l.b16 %v2873
        %v3045 = vunpack.c.h.b16 %v2873
        %v3046 = vunpack.c.l.b16 %v2874
        %v3047 = vunpack.c.h.b16 %v2874
        %v3048 = vunpack.c.l.b16 %v2875
        %v3049 = vunpack.c.h.b16 %v2875
        %v3050 = vunpack.c.l.b16 %v2876
        %v3051 = vunpack.c.h.b16 %v2876
        %v3052 = vunpack.c.l.b16 %v2877
        %v3053 = vunpack.c.h.b16 %v2877
        %v3054 = vunpack.c.l.b16 %v2878
        %v3055 = vunpack.c.h.b16 %v2878
        %v3056 = vunpack.c.l.b16 %v2879
        %v3057 = vunpack.c.h.b16 %v2879
        %v3058 = vunpack.c.l.b16 %v2880
        %v3059 = vunpack.c.h.b16 %v2880
        %v3060 = vunpack.c.l.b16 %v2881
        %v3061 = vunpack.c.h.b16 %v2881
        %v3062 = vunpack.c.l.b16 %v2882
        %v3063 = vunpack.c.h.b16 %v2882
        %v3064 = vunpack.c.l.b16 %v2883
        %v3065 = vunpack.c.h.b16 %v2883
        %v3066 = vunpack.c.l.b16 %v2884
        %v3067 = vunpack.c.h.b16 %v2884
        %v3068 = vunpack.c.l.b16 %v2885
        %v3069 = vunpack.c.h.b16 %v2885
        %v3070 = vunpack.c.l.b16 %v2886
        %v3071 = vunpack.c.h.b16 %v2886
        %v3072 = vunpack.c.l.b16 %v2887
        %v3073 = vunpack.c.h.b16 %v2887
        %v3074 = vunpack.c.l.b16 %v2888
        %v3075 = vunpack.c.h.b16 %v2888
        %v3076 = vunpack.c.l.b16 %v2889
        %v3077 = vunpack.c.h.b16 %v2889
        %v3078 = vunpack.c.l.b16 %v2890
        %v3079 = vunpack.c.h.b16 %v2890
        %v3080 = vunpack.c.l.b16 %v2891
        %v3081 = vunpack.c.h.b16 %v2891
        %v3082 = vunpack.c.l.b16 %v2892
        %v3083 = vunpack.c.h.b16 %v2892
        %v3084 = vunpack.c.l.b16 %v2893
        %v3085 = vunpack.c.h.b16 %v2893
        %v3086 = vunpack.c.l.b16 %v2894
        %v3087 = vunpack.c.h.b16 %v2894
        %v3088 = vunpack.c.l.b16 %v2895
        %v3089 = vunpack.c.h.b16 %v2895
        %v3090 = vunpack.c.l.b16 %v2896
        %v3091 = vunpack.c.h.b16 %v2896
        %v3092 = vunpack.c.l.b16 %v2897
        %v3093 = vunpack.c.h.b16 %v2897
        %v3094 = vunpack.c.l.b16 %v2898
        %v3095 = vunpack.c.h.b16 %v2898
        %v3096 = vunpack.c.l.b16 %v2899
        %v3097 = vunpack.c.h.b16 %v2899
        %v3098 = vunpack.c.l.b16 %v2900
        %v3099 = vunpack.c.h.b16 %v2900
        %v3100 = vunpack.c.l.b16 %v2901
        %v3101 = vunpack.c.h.b16 %v2901
        %v3102 = vunpack.c.l.b16 %v2902
        %v3103 = vunpack.c.h.b16 %v2902
        %v3104 = vunpack.c.l.b16 %v2903
        %v3105 = vunpack.c.h.b16 %v2903
        %v3106 = vunpack.c.l.b16 %v2904
        %v3107 = vunpack.c.h.b16 %v2904
        %v3108 = vunpack.c.l.b16 %v2905
        %v3109 = vunpack.c.h.b16 %v2905
        %v3110 = vunpack.c.l.b16 %v2906
        %v3111 = vunpack.c.h.b16 %v2906
        %v3112 = vunpack.c.l.b16 %v2907
        %v3113 = vunpack.c.h.b16 %v2907
        %v3114 = vunpack.c.l.b16 %v2908
        %v3115 = vunpack.c.h.b16 %v2908
        %v3116 = vunpack.c.l.b16 %v2909
        %v3117 = vunpack.c.h.b16 %v2909
        %v3118 = vpack.c.b16 %v2992, %v2990
        %v3119 = vpack.c.b16 %v2993, %v2991
        %v3120 = vpack.c.b16 %v2996, %v2994
        %v3121 = vpack.c.b16 %v2997, %v2995
        %v3122 = vpack.c.b16 %v3000, %v2998
        %v3123 = vpack.c.b16 %v3001, %v2999
        %v3124 = vpack.c.b16 %v3004, %v3002
        %v3125 = vpack.c.b16 %v3005, %v3003
        %v3126 = vpack.c.b16 %v3008, %v3006
        %v3127 = vpack.c.b16 %v3009, %v3007
        %v3128 = vpack.c.b16 %v3012, %v3010
        %v3129 = vpack.c.b16 %v3013, %v3011
        %v3130 = vpack.c.b16 %v3016, %v3014
        %v3131 = vpack.c.b16 %v3017, %v3015
        %v3132 = vpack.c.b16 %v3020, %v3018
        %v3133 = vpack.c.b16 %v3021, %v3019
        %v3134 = vpack.c.b16 %v3024, %v3022
        %v3135 = vpack.c.b16 %v3025, %v3023
        %v3136 = vpack.c.b16 %v3028, %v3026
        %v3137 = vpack.c.b16 %v3029, %v3027
        %v3138 = vpack.c.b16 %v3032, %v3030
        %v3139 = vpack.c.b16 %v3033, %v3031
        %v3140 = vpack.c.b16 %v3036, %v3034
        %v3141 = vpack.c.b16 %v3037, %v3035
        %v3142 = vpack.c.b16 %v3040, %v3038
        %v3143 = vpack.c.b16 %v3041, %v3039
        %v3144 = vpack.c.b16 %v3044, %v3042
        %v3145 = vpack.c.b16 %v3045, %v3043
        %v3146 = vpack.c.b16 %v3048, %v3046
        %v3147 = vpack.c.b16 %v3049, %v3047
        %v3148 = vpack.c.b16 %v3052, %v3050
        %v3149 = vpack.c.b16 %v3053, %v3051
        %v3150 = vpack.c.b16 %v3056, %v3054
        %v3151 = vpack.c.b16 %v3057, %v3055
        %v3152 = vpack.c.b16 %v3060, %v3058
        %v3153 = vpack.c.b16 %v3061, %v3059
        %v3154 = vpack.c.b16 %v3064, %v3062
        %v3155 = vpack.c.b16 %v3065, %v3063
        %v3156 = vpack.c.b16 %v3068, %v3066
        %v3157 = vpack.c.b16 %v3069, %v3067
        %v3158 = vpack.c.b16 %v3072, %v3070
        %v3159 = vpack.c.b16 %v3073, %v3071
        %v3160 = vpack.c.b16 %v3076, %v3074
        %v3161 = vpack.c.b16 %v3077, %v3075
        %v3162 = vpack.c.b16 %v3080, %v3078
        %v3163 = vpack.c.b16 %v3081, %v3079
        %v3164 = vpack.c.b16 %v3084, %v3082
        %v3165 = vpack.c.b16 %v3085, %v3083
        %v3166 = vpack.c.b16 %v3088, %v3086
        %v3167 = vpack.c.b16 %v3089, %v3087
        %v3168 = vpack.c.b16 %v3092, %v3090
        %v3169 = vpack.c.b16 %v3093, %v3091
        %v3170 = vpack.c.b16 %v3096, %v3094
        %v3171 = vpack.c.b16 %v3097, %v3095
        %v3172 = vpack.c.b16 %v3100, %v3098
        %v3173 = vpack.c.b16 %v3101, %v3099
        %v3174 = vpack.c.b16 %v3104, %v3102
        %v3175 = vpack.c.b16 %v3105, %v3103
        %v3176 = vpack.c.b16 %v3108, %v3106
        %v3177 = vpack.c.b16 %v3109, %v3107
        %v3178 = vpack.c.b16 %v3112, %v3110
        %v3179 = vpack.c.b16 %v3113, %v3111
        %v3180 = vpack.c.b16 %v3116, %v3114
        %v3181 = vpack.c.b16 %v3117, %v3115
        %3246 = vmatprep.subr.bf16.mxu0 %v3119
        %3247 = vmatpush1.bf16.msra.mxu0 %v3118
        %3248 = vmatprep.subr.bf16.mxu0 %v3121
        %3249 = vmatpush1.bf16.msra.mxu0 %v3120
        %3250 = vmatprep.subr.bf16.mxu0 %v3123
        %3251 = vmatpush1.bf16.msra.mxu0 %v3122
        %3252 = vmatprep.subr.bf16.mxu0 %v3125
        %3253 = vmatpush1.bf16.msra.mxu0 %v3124
        %3254 = vmatprep.subr.bf16.mxu0 %v3127
        %3255 = vmatpush1.bf16.msra.mxu0 %v3126
        %3256 = vmatprep.subr.bf16.mxu0 %v3129
        %3257 = vmatpush1.bf16.msra.mxu0 %v3128
        %3258 = vmatprep.subr.bf16.mxu0 %v3131
        %3259 = vmatpush1.bf16.msra.mxu0 %v3130
        %3260 = vmatprep.subr.bf16.mxu0 %v3133
        %3261 = vmatpush1.bf16.msra.mxu0 %v3132
        %3262 = vmatprep.subr.bf16.mxu0 %v3135
        %3263 = vmatpush1.bf16.msra.mxu0 %v3134
        %3264 = vmatprep.subr.bf16.mxu0 %v3137
        %3265 = vmatpush1.bf16.msra.mxu0 %v3136
        %3266 = vmatprep.subr.bf16.mxu0 %v3139
        %3267 = vmatpush1.bf16.msra.mxu0 %v3138
        %3268 = vmatprep.subr.bf16.mxu0 %v3141
        %3269 = vmatpush1.bf16.msra.mxu0 %v3140
        %3270 = vmatprep.subr.bf16.mxu0 %v3143
        %3271 = vmatpush1.bf16.msra.mxu0 %v3142
        %3272 = vmatprep.subr.bf16.mxu0 %v3145
        %3273 = vmatpush1.bf16.msra.mxu0 %v3144
        %3274 = vmatprep.subr.bf16.mxu0 %v3147
        %3275 = vmatpush1.bf16.msra.mxu0 %v3146
        %3276 = vmatprep.subr.bf16.mxu0 %v3149
        %3277 = vmatpush1.bf16.msra.mxu0 %v3148
        %3278 = vmatprep.mubr.bf16.mxu0 %v2912
        %3279 = vmatmul.mubr.bf16.gmra.mrb[0].mxu0 %v2911
        %v3280 = vpop.f32.mrb[0].mxu0
        %v3281 = vadd.f32 %v2919, %v3280
        %v3282 = vpop.f32.mrb[0].mxu0
        %v3283 = vadd.f32 %v2923, %v3282
        %v3284 = vpop.f32.mrb[0].mxu0
        %v3285 = vpop.f32.mrb[0].mxu0
        %3286 = vdwg.mxu0
        %3287 = vmatprep.subr.bf16.mxu0 %v3151
        %3288 = vmatpush1.bf16.msra.mxu0 %v3150
        %3289 = vmatprep.subr.bf16.mxu0 %v3153
        %3290 = vmatpush1.bf16.msra.mxu0 %v3152
        %3291 = vmatprep.subr.bf16.mxu0 %v3155
        %3292 = vmatpush1.bf16.msra.mxu0 %v3154
        %3293 = vmatprep.subr.bf16.mxu0 %v3157
        %3294 = vmatpush1.bf16.msra.mxu0 %v3156
        %3295 = vmatprep.subr.bf16.mxu0 %v3159
        %3296 = vmatpush1.bf16.msra.mxu0 %v3158
        %3297 = vmatprep.subr.bf16.mxu0 %v3161
        %3298 = vmatpush1.bf16.msra.mxu0 %v3160
        %3299 = vmatprep.subr.bf16.mxu0 %v3163
        %3300 = vmatpush1.bf16.msra.mxu0 %v3162
        %3301 = vmatprep.subr.bf16.mxu0 %v3165
        %3302 = vmatpush1.bf16.msra.mxu0 %v3164
        %3303 = vmatprep.subr.bf16.mxu0 %v3167
        %3304 = vmatpush1.bf16.msra.mxu0 %v3166
        %3305 = vmatprep.subr.bf16.mxu0 %v3169
        %3306 = vmatpush1.bf16.msra.mxu0 %v3168
        %3307 = vmatprep.subr.bf16.mxu0 %v3171
        %3308 = vmatpush1.bf16.msra.mxu0 %v3170
        %3309 = vmatprep.subr.bf16.mxu0 %v3173
        %3310 = vmatpush1.bf16.msra.mxu0 %v3172
        %3311 = vmatprep.subr.bf16.mxu0 %v3175
        %3312 = vmatpush1.bf16.msra.mxu0 %v3174
        %3313 = vmatprep.subr.bf16.mxu0 %v3177
        %3314 = vmatpush1.bf16.msra.mxu0 %v3176
        %3315 = vmatprep.subr.bf16.mxu0 %v3179
        %3316 = vmatpush1.bf16.msra.mxu0 %v3178
        %3317 = vmatprep.subr.bf16.mxu0 %v3181
        %3318 = vmatpush1.bf16.msra.mxu0 %v3180
        %3319 = vmatprep.mubr.bf16.mxu0 %v2914
        %3320 = vmatmul.mubr.bf16.gmra.mrb[0].mxu0 %v2913
        %v3321 = vpop.f32.mrb[0].mxu0
        %v3322 = vadd.f32 %v3281, %v3321
        %v3323 = vpop.f32.mrb[0].mxu0
        %v3324 = vadd.f32 %v3283, %v3323
        %v3325 = vpop.f32.mrb[0].mxu0
        %v3326 = vpop.f32.mrb[0].mxu0
        %3327 = vdwg.mxu0
        %v3328 = vmax.f32 %v3322, 0.0
        %v3329 = vmax.f32 %v3324, 0.0
        %v3330 = vld [vmem:[#allocation7] sm:$0xf]
        %v3331 = vld [vmem:[#allocation7 + $0x4] sm:$0xf]
        %v3332 = vld [vmem:[#allocation7 + $0x8] sm:$0xf]
        %v3333 = vld [vmem:[#allocation7 + $0xc] sm:$0xf]
        %v3334 = vld [vmem:[#allocation7 + $0x10] sm:$0xf]
        %v3335 = vld [vmem:[#allocation7 + $0x14] sm:$0xf]
        %v3336 = vld [vmem:[#allocation7 + $0x18] sm:$0xf]
        %v3337 = vld [vmem:[#allocation7 + $0x1c] sm:$0xf]
        %v3338 = vld [vmem:[#allocation7 + $0x20] sm:$0xf]
        %v3339 = vld [vmem:[#allocation7 + $0x24] sm:$0xf]
        %v3340 = vld [vmem:[#allocation7 + $0x28] sm:$0xf]
        %v3341 = vld [vmem:[#allocation7 + $0x2c] sm:$0xf]
        %v3342 = vld [vmem:[#allocation7 + $0x30] sm:$0xf]
        %v3343 = vld [vmem:[#allocation7 + $0x34] sm:$0xf]
        %v3344 = vld [vmem:[#allocation7 + $0x38] sm:$0xf]
        %v3345 = vld [vmem:[#allocation7 + $0x3c] sm:$0xf]
        %v3346 = vld [vmem:[#allocation7 + $0x40] sm:$0xf]
        %v3347 = vld [vmem:[#allocation7 + $0x44] sm:$0xf]
        %v3348 = vld [vmem:[#allocation7 + $0x48] sm:$0xf]
        %v3349 = vld [vmem:[#allocation7 + $0x4c] sm:$0xf]
        %v3350 = vld [vmem:[#allocation7 + $0x50] sm:$0xf]
        %v3351 = vld [vmem:[#allocation7 + $0x54] sm:$0xf]
        %v3352 = vld [vmem:[#allocation7 + $0x58] sm:$0xf]
        %v3353 = vld [vmem:[#allocation7 + $0x5c] sm:$0xf]
        %v3354 = vld [vmem:[#allocation7 + $0x60] sm:$0xf]
        %v3355 = vld [vmem:[#allocation7 + $0x64] sm:$0xf]
        %v3356 = vld [vmem:[#allocation7 + $0x68] sm:$0xf]
        %v3357 = vld [vmem:[#allocation7 + $0x6c] sm:$0xf]
        %v3358 = vld [vmem:[#allocation7 + $0x70] sm:$0xf]
        %v3359 = vld [vmem:[#allocation7 + $0x74] sm:$0xf]
        %v3360 = vld [vmem:[#allocation7 + $0x78] sm:$0xf]
        %v3361 = vld [vmem:[#allocation7 + $0x7c] sm:$0xf]
        %v3362 = vld [vmem:[%s6 + $0xe] sm:$0x1]
        %v3363 = vpack.c.bf16 %v3328, %v3328
        %v3364 = vpack.c.bf16 %v3329, %v3329
        %v3366 = vlaneseq
        %v3367 = vshrl.u32 %v3366, 7
        %v3368 = vsub.s32 0, %v3367
        %v3369 = vrot.slane %v3362, %v3368
        %v3403 = vunpack.c.l.b16 %v3330
        %v3404 = vunpack.c.l.b16 %v3331
        %v3405 = vunpack.c.l.b16 %v3332
        %v3406 = vunpack.c.l.b16 %v3333
        %v3407 = vunpack.c.l.b16 %v3334
        %v3408 = vunpack.c.l.b16 %v3335
        %v3409 = vunpack.c.l.b16 %v3336
        %v3410 = vunpack.c.l.b16 %v3337
        %v3411 = vunpack.c.l.b16 %v3338
        %v3412 = vunpack.c.l.b16 %v3339
        %v3413 = vunpack.c.l.b16 %v3340
        %v3414 = vunpack.c.l.b16 %v3341
        %v3415 = vunpack.c.l.b16 %v3342
        %v3416 = vunpack.c.l.b16 %v3343
        %v3417 = vunpack.c.l.b16 %v3344
        %v3418 = vunpack.c.l.b16 %v3345
        %v3419 = vunpack.c.l.b16 %v3346
        %v3420 = vunpack.c.l.b16 %v3347
        %v3421 = vunpack.c.l.b16 %v3348
        %v3422 = vunpack.c.l.b16 %v3349
        %v3423 = vunpack.c.l.b16 %v3350
        %v3424 = vunpack.c.l.b16 %v3351
        %v3425 = vunpack.c.l.b16 %v3352
        %v3426 = vunpack.c.l.b16 %v3353
        %v3427 = vunpack.c.l.b16 %v3354
        %v3428 = vunpack.c.l.b16 %v3355
        %v3429 = vunpack.c.l.b16 %v3356
        %v3430 = vunpack.c.l.b16 %v3357
        %v3431 = vunpack.c.l.b16 %v3358
        %v3432 = vunpack.c.l.b16 %v3359
        %v3433 = vunpack.c.l.b16 %v3360
        %v3434 = vunpack.c.l.b16 %v3361
        %v3435 = vpack.c.b16 %v3404, %v3403
        %v3436 = vpack.c.b16 %v3406, %v3405
        %v3437 = vpack.c.b16 %v3408, %v3407
        %v3438 = vpack.c.b16 %v3410, %v3409
        %v3439 = vpack.c.b16 %v3412, %v3411
        %v3440 = vpack.c.b16 %v3414, %v3413
        %v3441 = vpack.c.b16 %v3416, %v3415
        %v3442 = vpack.c.b16 %v3418, %v3417
        %v3443 = vpack.c.b16 %v3420, %v3419
        %v3444 = vpack.c.b16 %v3422, %v3421
        %v3445 = vpack.c.b16 %v3424, %v3423
        %v3446 = vpack.c.b16 %v3426, %v3425
        %v3447 = vpack.c.b16 %v3428, %v3427
        %v3448 = vpack.c.b16 %v3430, %v3429
        %v3449 = vpack.c.b16 %v3432, %v3431
        %v3450 = vpack.c.b16 %v3434, %v3433
        %3467 = vmatprep.subr.bf16.mxu0 0
        %3468 = vmatpush1.bf16.msra.mxu0 %v3435
        %3469 = vmatprep.subr.bf16.mxu0 0
        %3470 = vmatpush1.bf16.msra.mxu0 %v3436
        %3471 = vmatprep.subr.bf16.mxu0 0
        %3472 = vmatpush1.bf16.msra.mxu0 %v3437
        %3473 = vmatprep.subr.bf16.mxu0 0
        %3474 = vmatpush1.bf16.msra.mxu0 %v3438
        %3475 = vmatprep.subr.bf16.mxu0 0
        %3476 = vmatpush1.bf16.msra.mxu0 %v3439
        %3477 = vmatprep.subr.bf16.mxu0 0
        %3478 = vmatpush1.bf16.msra.mxu0 %v3440
        %3479 = vmatprep.subr.bf16.mxu0 0
        %3480 = vmatpush1.bf16.msra.mxu0 %v3441
        %3481 = vmatprep.subr.bf16.mxu0 0
        %3482 = vmatpush1.bf16.msra.mxu0 %v3442
        %3483 = vmatprep.subr.bf16.mxu0 0
        %3484 = vmatpush1.bf16.msra.mxu0 %v3443
        %3485 = vmatprep.subr.bf16.mxu0 0
        %3486 = vmatpush1.bf16.msra.mxu0 %v3444
        %3487 = vmatprep.subr.bf16.mxu0 0
        %3488 = vmatpush1.bf16.msra.mxu0 %v3445
        %3489 = vmatprep.subr.bf16.mxu0 0
        %3490 = vmatpush1.bf16.msra.mxu0 %v3446
        %3491 = vmatprep.subr.bf16.mxu0 0
        %3492 = vmatpush1.bf16.msra.mxu0 %v3447
        %3493 = vmatprep.subr.bf16.mxu0 0
        %3494 = vmatpush1.bf16.msra.mxu0 %v3448
        %3495 = vmatprep.subr.bf16.mxu0 0
        %3496 = vmatpush1.bf16.msra.mxu0 %v3449
        %3497 = vmatprep.subr.bf16.mxu0 0
        %3498 = vmatpush1.bf16.msra.mxu0 %v3450
        %3499 = vmatprep.mubr.bf16.mxu0 %v3364
        %3500 = vmatmul.mubr.bf16.gmra.mrb[0].mxu0 %v3363
        %v3501 = vpop.f32.mrb[0].mxu0
        %v3502 = vadd.f32 %v3369, %v3501
        %v3503 = vpop.f32.mrb[0].mxu0
        %v3504 = vpop.f32.mrb[0].mxu0
        %v3505 = vpop.f32.mrb[0].mxu0
        %3506 = vdwg.mxu0
        %v3507 = vmax.f32 %v3502, 0.0
        %v3508 = vld [vmem:[#allocation9] sm:$0xf]
        %v3509 = vld [vmem:[#allocation9 + $0x4] sm:$0xf]
        %v3510 = vld [vmem:[#allocation9 + $0x8] sm:$0xf]
        %v3511 = vld [vmem:[#allocation9 + $0xc] sm:$0xf]
        %v3512 = vld [vmem:[#allocation9 + $0x10] sm:$0xf]
        %v3513 = vld [vmem:[#allocation9 + $0x14] sm:$0xf]
        %v3514 = vld [vmem:[#allocation9 + $0x18] sm:$0xf]
        %v3515 = vld [vmem:[#allocation9 + $0x1c] sm:$0xf]
        %v3516 = vld [vmem:[#allocation9 + $0x20] sm:$0xf]
        %v3517 = vld [vmem:[#allocation9 + $0x24] sm:$0xf]
        %v3518 = vld [vmem:[#allocation9 + $0x28] sm:$0xf]
        %v3519 = vld [vmem:[#allocation9 + $0x2c] sm:$0xf]
        %v3520 = vld [vmem:[#allocation9 + $0x30] sm:$0xf]
        %v3521 = vld [vmem:[#allocation9 + $0x34] sm:$0xf]
        %v3522 = vld [vmem:[#allocation9 + $0x38] sm:$0xf]
        %v3523 = vld [vmem:[#allocation9 + $0x3c] sm:$0xf]
        %v3524 = vld [vmem:[%s6 + $0xf] sm:$0x1]
        %v3525 = vpack.c.bf16 %v3507, %v3507
        %v3527 = vlaneseq
        %v3528 = vshrl.u32 %v3527, 7
        %v3529 = vsub.s32 0, %v3528
        %v3530 = vrot.slane %v3524, %v3529
        %v3548 = vunpack.c.l.b16 %v3508
        %v3549 = vunpack.c.l.b16 %v3509
        %v3550 = vunpack.c.l.b16 %v3510
        %v3551 = vunpack.c.l.b16 %v3511
        %v3552 = vunpack.c.l.b16 %v3512
        %v3553 = vunpack.c.l.b16 %v3513
        %v3554 = vunpack.c.l.b16 %v3514
        %v3555 = vunpack.c.l.b16 %v3515
        %v3556 = vunpack.c.l.b16 %v3516
        %v3557 = vunpack.c.l.b16 %v3517
        %v3558 = vunpack.c.l.b16 %v3518
        %v3559 = vunpack.c.l.b16 %v3519
        %v3560 = vunpack.c.l.b16 %v3520
        %v3561 = vunpack.c.l.b16 %v3521
        %v3562 = vunpack.c.l.b16 %v3522
        %v3563 = vunpack.c.l.b16 %v3523
        %v3564 = vpack.c.b16 %v3549, %v3548
        %v3565 = vpack.c.b16 %v3551, %v3550
        %v3566 = vpack.c.b16 %v3553, %v3552
        %v3567 = vpack.c.b16 %v3555, %v3554
        %v3568 = vpack.c.b16 %v3557, %v3556
        %v3569 = vpack.c.b16 %v3559, %v3558
        %v3570 = vpack.c.b16 %v3561, %v3560
        %v3571 = vpack.c.b16 %v3563, %v3562
        %3580 = vmatprep.subr.bf16.mxu0 0
        %3581 = vmatpush1.bf16.msra.mxu0 %v3564
        %3582 = vmatprep.subr.bf16.mxu0 0
        %3583 = vmatpush1.bf16.msra.mxu0 %v3565
        %3584 = vmatprep.subr.bf16.mxu0 0
        %3585 = vmatpush1.bf16.msra.mxu0 %v3566
        %3586 = vmatprep.subr.bf16.mxu0 0
        %3587 = vmatpush1.bf16.msra.mxu0 %v3567
        %3588 = vmatprep.subr.bf16.mxu0 0
        %3589 = vmatpush1.bf16.msra.mxu0 %v3568
        %3590 = vmatprep.subr.bf16.mxu0 0
        %3591 = vmatpush1.bf16.msra.mxu0 %v3569
        %3592 = vmatprep.subr.bf16.mxu0 0
        %3593 = vmatpush1.bf16.msra.mxu0 %v3570
        %3594 = vmatprep.subr.bf16.mxu0 0
        %3595 = vmatpush1.bf16.msra.mxu0 %v3571
        %3596 = vmatprep.subr.bf16.mxu0 0
        %3597 = vmatpush1.bf16.msra.mxu0 0
        %3598 = vmatprep.subr.bf16.mxu0 0
        %3599 = vmatpush1.bf16.msra.mxu0 0
        %3600 = vmatprep.subr.bf16.mxu0 0
        %3601 = vmatpush1.bf16.msra.mxu0 0
        %3602 = vmatprep.subr.bf16.mxu0 0
        %3603 = vmatpush1.bf16.msra.mxu0 0
        %3604 = vmatprep.subr.bf16.mxu0 0
        %3605 = vmatpush1.bf16.msra.mxu0 0
        %3606 = vmatprep.subr.bf16.mxu0 0
        %3607 = vmatpush1.bf16.msra.mxu0 0
        %3608 = vmatprep.subr.bf16.mxu0 0
        %3609 = vmatpush1.bf16.msra.mxu0 0
        %3610 = vmatprep.subr.bf16.mxu0 0
        %3611 = vmatpush1.bf16.msra.mxu0 0
        %3612 = vmatprep.mubr.bf16.mxu0 0
        %3613 = vmatmul.mubr.bf16.gmra.mrb[0].mxu0 %v3525
        %v3614 = vpop.f32.mrb[0].mxu0
        %v3615 = vadd.f32 %v3530, %v3614
        %v3616 = vpop.f32.mrb[0].mxu0
        %v3617 = vpop.f32.mrb[0].mxu0
        %v3618 = vpop.f32.mrb[0].mxu0
        %3619 = vdwg.mxu0
        %v3620 = vmax.f32 %v3615, 0.0
        %s3621 = scalar_lea.vmem [#allocation9], 64
        %v3622 = vld [vmem:[%s3621] sm:$0xf]
        %v3623 = vld [vmem:[%s3621 + $0x4] sm:$0xf]
        %v3624 = vld [vmem:[%s3621 + $0x8] sm:$0xf]
        %v3625 = vld [vmem:[%s3621 + $0xc] sm:$0xf]
        %v3626 = vld [vmem:[%s3621 + $0x10] sm:$0xf]
        %v3627 = vld [vmem:[%s3621 + $0x14] sm:$0xf]
        %v3628 = vld [vmem:[%s3621 + $0x18] sm:$0xf]
        %v3629 = vld [vmem:[%s3621 + $0x1c] sm:$0xf]
        %v3630 = vld [vmem:[%s3621 + $0x20] sm:$0xf]
        %v3631 = vld [vmem:[%s3621 + $0x24] sm:$0xf]
        %v3632 = vld [vmem:[%s3621 + $0x28] sm:$0xf]
        %v3633 = vld [vmem:[%s3621 + $0x2c] sm:$0xf]
        %v3634 = vld [vmem:[%s3621 + $0x30] sm:$0xf]
        %v3635 = vld [vmem:[%s3621 + $0x34] sm:$0xf]
        %v3636 = vld [vmem:[%s3621 + $0x38] sm:$0xf]
        %v3637 = vld [vmem:[%s3621 + $0x3c] sm:$0xf]
        %v3638 = vld [vmem:[%s6 + $0x10] sm:$0x1]
        %v3639 = vpack.c.bf16 %v3620, %v3620
        %v3641 = vlaneseq
        %v3642 = vshrl.u32 %v3641, 7
        %v3643 = vsub.s32 0, %v3642
        %v3644 = vrot.slane %v3638, %v3643
        %v3662 = vunpack.c.l.b16 %v3622
        %v3663 = vunpack.c.l.b16 %v3623
        %v3664 = vunpack.c.l.b16 %v3624
        %v3665 = vunpack.c.l.b16 %v3625
        %v3666 = vunpack.c.l.b16 %v3626
        %v3667 = vunpack.c.l.b16 %v3627
        %v3668 = vunpack.c.l.b16 %v3628
        %v3669 = vunpack.c.l.b16 %v3629
        %v3670 = vunpack.c.l.b16 %v3630
        %v3671 = vunpack.c.l.b16 %v3631
        %v3672 = vunpack.c.l.b16 %v3632
        %v3673 = vunpack.c.l.b16 %v3633
        %v3674 = vunpack.c.l.b16 %v3634
        %v3675 = vunpack.c.l.b16 %v3635
        %v3676 = vunpack.c.l.b16 %v3636
        %v3677 = vunpack.c.l.b16 %v3637
        %v3678 = vpack.c.b16 %v3663, %v3662
        %v3679 = vpack.c.b16 %v3665, %v3664
        %v3680 = vpack.c.b16 %v3667, %v3666
        %v3681 = vpack.c.b16 %v3669, %v3668
        %v3682 = vpack.c.b16 %v3671, %v3670
        %v3683 = vpack.c.b16 %v3673, %v3672
        %v3684 = vpack.c.b16 %v3675, %v3674
        %v3685 = vpack.c.b16 %v3677, %v3676
        %3694 = vmatprep.subr.bf16.mxu0 0
        %3695 = vmatpush1.bf16.msra.mxu0 %v3678
        %3696 = vmatprep.subr.bf16.mxu0 0
        %3697 = vmatpush1.bf16.msra.mxu0 %v3679
        %3698 = vmatprep.subr.bf16.mxu0 0
        %3699 = vmatpush1.bf16.msra.mxu0 %v3680
        %3700 = vmatprep.subr.bf16.mxu0 0
        %3701 = vmatpush1.bf16.msra.mxu0 %v3681
        %3702 = vmatprep.subr.bf16.mxu0 0
        %3703 = vmatpush1.bf16.msra.mxu0 %v3682
        %3704 = vmatprep.subr.bf16.mxu0 0
        %3705 = vmatpush1.bf16.msra.mxu0 %v3683
        %3706 = vmatprep.subr.bf16.mxu0 0
        %3707 = vmatpush1.bf16.msra.mxu0 %v3684
        %3708 = vmatprep.subr.bf16.mxu0 0
        %3709 = vmatpush1.bf16.msra.mxu0 %v3685
        %3710 = vmatprep.subr.bf16.mxu0 0
        %3711 = vmatpush1.bf16.msra.mxu0 0
        %3712 = vmatprep.subr.bf16.mxu0 0
        %3713 = vmatpush1.bf16.msra.mxu0 0
        %3714 = vmatprep.subr.bf16.mxu0 0
        %3715 = vmatpush1.bf16.msra.mxu0 0
        %3716 = vmatprep.subr.bf16.mxu0 0
        %3717 = vmatpush1.bf16.msra.mxu0 0
        %3718 = vmatprep.subr.bf16.mxu0 0
        %3719 = vmatpush1.bf16.msra.mxu0 0
        %3720 = vmatprep.subr.bf16.mxu0 0
        %3721 = vmatpush1.bf16.msra.mxu0 0
        %3722 = vmatprep.subr.bf16.mxu0 0
        %3723 = vmatpush1.bf16.msra.mxu0 0
        %3724 = vmatprep.subr.bf16.mxu0 0
        %3725 = vmatpush1.bf16.msra.mxu0 0
        %3726 = vmatprep.mubr.bf16.mxu0 0
        %3727 = vmatmul.mubr.bf16.gmra.mrb[0].mxu0 %v3639
        %v3728 = vpop.f32.mrb[0].mxu0
        %v3729 = vadd.f32 %v3644, %v3728
        %v3730 = vpop.f32.mrb[0].mxu0
        %v3731 = vpop.f32.mrb[0].mxu0
        %v3732 = vpop.f32.mrb[0].mxu0
        %3733 = vdwg.mxu0
        %v3734 = vmax.f32 %v3729, 0.0
        %s3735 = scalar_lea.vmem [#allocation9], 128
        %v3736 = vld [vmem:[%s3735] sm:$0xf]
        %v3737 = vld [vmem:[%s3735 + $0x4] sm:$0xf]
        %v3738 = vld [vmem:[%s3735 + $0x8] sm:$0xf]
        %v3739 = vld [vmem:[%s3735 + $0xc] sm:$0xf]
        %v3740 = vld [vmem:[%s3735 + $0x10] sm:$0xf]
        %v3741 = vld [vmem:[%s3735 + $0x14] sm:$0xf]
        %v3742 = vld [vmem:[%s3735 + $0x18] sm:$0xf]
        %v3743 = vld [vmem:[%s3735 + $0x1c] sm:$0xf]
        %v3744 = vld [vmem:[%s3735 + $0x20] sm:$0xf]
        %v3745 = vld [vmem:[%s3735 + $0x24] sm:$0xf]
        %v3746 = vld [vmem:[%s3735 + $0x28] sm:$0xf]
        %v3747 = vld [vmem:[%s3735 + $0x2c] sm:$0xf]
        %v3748 = vld [vmem:[%s3735 + $0x30] sm:$0xf]
        %v3749 = vld [vmem:[%s3735 + $0x34] sm:$0xf]
        %v3750 = vld [vmem:[%s3735 + $0x38] sm:$0xf]
        %v3751 = vld [vmem:[%s3735 + $0x3c] sm:$0xf]
        %v3752 = vld [vmem:[%s6 + $0x11] sm:$0x1]
        %v3753 = vpack.c.bf16 %v3734, %v3734
        %v3755 = vlaneseq
        %v3756 = vshrl.u32 %v3755, 7
        %v3757 = vsub.s32 0, %v3756
        %v3758 = vrot.slane %v3752, %v3757
        %v3776 = vunpack.c.l.b16 %v3736
        %v3777 = vunpack.c.l.b16 %v3737
        %v3778 = vunpack.c.l.b16 %v3738
        %v3779 = vunpack.c.l.b16 %v3739
        %v3780 = vunpack.c.l.b16 %v3740
        %v3781 = vunpack.c.l.b16 %v3741
        %v3782 = vunpack.c.l.b16 %v3742
        %v3783 = vunpack.c.l.b16 %v3743
        %v3784 = vunpack.c.l.b16 %v3744
        %v3785 = vunpack.c.l.b16 %v3745
        %v3786 = vunpack.c.l.b16 %v3746
        %v3787 = vunpack.c.l.b16 %v3747
        %v3788 = vunpack.c.l.b16 %v3748
        %v3789 = vunpack.c.l.b16 %v3749
        %v3790 = vunpack.c.l.b16 %v3750
        %v3791 = vunpack.c.l.b16 %v3751
        %v3792 = vpack.c.b16 %v3777, %v3776
        %v3793 = vpack.c.b16 %v3779, %v3778
        %v3794 = vpack.c.b16 %v3781, %v3780
        %v3795 = vpack.c.b16 %v3783, %v3782
        %v3796 = vpack.c.b16 %v3785, %v3784
        %v3797 = vpack.c.b16 %v3787, %v3786
        %v3798 = vpack.c.b16 %v3789, %v3788
        %v3799 = vpack.c.b16 %v3791, %v3790
        %3808 = vmatprep.subr.bf16.mxu0 0
        %3809 = vmatpush1.bf16.msra.mxu0 %v3792
        %3810 = vmatprep.subr.bf16.mxu0 0
        %3811 = vmatpush1.bf16.msra.mxu0 %v3793
        %3812 = vmatprep.subr.bf16.mxu0 0
        %3813 = vmatpush1.bf16.msra.mxu0 %v3794
        %3814 = vmatprep.subr.bf16.mxu0 0
        %3815 = vmatpush1.bf16.msra.mxu0 %v3795
        %3816 = vmatprep.subr.bf16.mxu0 0
        %3817 = vmatpush1.bf16.msra.mxu0 %v3796
        %3818 = vmatprep.subr.bf16.mxu0 0
        %3819 = vmatpush1.bf16.msra.mxu0 %v3797
        %3820 = vmatprep.subr.bf16.mxu0 0
        %3821 = vmatpush1.bf16.msra.mxu0 %v3798
        %3822 = vmatprep.subr.bf16.mxu0 0
        %3823 = vmatpush1.bf16.msra.mxu0 %v3799
        %3824 = vmatprep.subr.bf16.mxu0 0
        %3825 = vmatpush1.bf16.msra.mxu0 0
        %3826 = vmatprep.subr.bf16.mxu0 0
        %3827 = vmatpush1.bf16.msra.mxu0 0
        %3828 = vmatprep.subr.bf16.mxu0 0
        %3829 = vmatpush1.bf16.msra.mxu0 0
        %3830 = vmatprep.subr.bf16.mxu0 0
        %3831 = vmatpush1.bf16.msra.mxu0 0
        %3832 = vmatprep.subr.bf16.mxu0 0
        %3833 = vmatpush1.bf16.msra.mxu0 0
        %3834 = vmatprep.subr.bf16.mxu0 0
        %3835 = vmatpush1.bf16.msra.mxu0 0
        %3836 = vmatprep.subr.bf16.mxu0 0
        %3837 = vmatpush1.bf16.msra.mxu0 0
        %3838 = vmatprep.subr.bf16.mxu0 0
        %3839 = vmatpush1.bf16.msra.mxu0 0
        %3840 = vmatprep.mubr.bf16.mxu0 0
        %3841 = vmatmul.mubr.bf16.gmra.mrb[0].mxu0 %v3753
        %v3842 = vpop.f32.mrb[0].mxu0
        %v3843 = vadd.f32 %v3758, %v3842
        %v3844 = vpop.f32.mrb[0].mxu0
        %v3845 = vpop.f32.mrb[0].mxu0
        %v3846 = vpop.f32.mrb[0].mxu0
        %3847 = vdwg.mxu0
        %3848 = vst [vmem:[%s346] sm:$0xff] %v3843
        %p3849 = scmp.lt.s32.totalorder %s21, 1
        %s3850 = scalar_select %p3849, %s21, 1
        %s3851 = smul.addr %s3850, 8
        %s3852 = scalar_lea.vmem %s7, %s3851
        // Predicated region
        $region69: #{forward.1} parent=47 // pred_check
          %p3853 = pneg %p191
        $region70: #{forward.1} parent=47 // pred_check_branch
          %3855 = sbr.rel (%p3853) target = $region72
        $region71: #{forward.1} parent=47 // pred_region
          _
        $region72: #{forward.1} parent=47 // pred_fallthru
          _
      $region48: #{forward.1} parent=5 // pred_fallthru
        _
      %p3856 = scmp.le.s32.totalorder 2, %s16
      // Predicated region
      $region73: #{forward.1} parent=5 // pred_check
        %p3857 = pneg %p3856
      $region74: #{forward.1} parent=5 // pred_check_branch
        %3859 = sbr.rel (%p3857) target = $region76
      $region75: #{forward.1} parent=5 // pred_region
        %s3860 = ssub.s32 %s16, 2
        // Predicated region
        $region77: #{forward.1} parent=75 // pred_check
          %p3861 = pneg %p197
        $region78: #{forward.1} parent=75 // pred_check_branch
          %3863 = sbr.rel (%p3861) target = $region80
        $region79: #{forward.1} parent=75 // pred_region
          %p3864 = scmp.lt.s32.totalorder %s22, 1
          %s3865 = scalar_select %p3864, %s22, 1
          %s3866 = smul.addr %s3865, 8
          %s3867 = scalar_lea.vmem %s7, %s3866
        $region80: #{forward.1} parent=75 // pred_fallthru
          _
      $region76: #{forward.1} parent=5 // pred_fallthru
        _
    $region6: #{forward.1} parent=1 // loop_footer
      %s20 = sadd.s32 1, %s16
    $region7: #{forward.1} parent=1 // loop_footer_branch
      %15 = sbr.rel target = $region3
    $region8: #{forward.1} parent=1 // loop_exit
      _
    %3868 = vsyncpa [#allocation3], 1
    %s3869 = scalar_lea.sflag [#allocation3], 1
    %3870 = vsyncpa %s3869, 1
    %3871 = vsyncpa [#allocation5], 1
    %3872 = vsyncpa [#allocation8], 1

</llo_original>
